<compile_context>
chip_gen: v5e
topology: v5e:2x2
jax: 0.10.0
libtpu: 0.0.40
codegen_flags: <defaults>
</compile_context>

<pallas_src>
import functools

import jax
import jax.numpy as jnp
import numpy as np
from jax.experimental import pallas as pl
from jax.experimental.pallas import tpu as pltpu


# ----------------------------------------------------------------------------
# Fused Pallas kernel: per level, one MXU matmul + bias + ReLU, then a second
# MXU matmul against the block-diagonal fuse weight (fuse partial sums).
# ----------------------------------------------------------------------------

def _make_gpm_kernel(num_levels):
    def kernel(*refs):
        ins = refs[:4 * num_levels]
        outs = refs[4 * num_levels:]
        for l in range(num_levels):          # unrolled at trace time
            x_ref, w_ref, b_ref, d_ref = ins[4 * l:4 * l + 4]
            z_ref = outs[l]
            # Level conv: (tm, K) @ (K, Npad) -> f32, + folded-BN bias, ReLU.
            acc = jnp.dot(x_ref[...], w_ref[...],
                          preferred_element_type=jnp.float32)
            y = jnp.maximum(acc + b_ref[...], 0.0).astype(jnp.bfloat16)
            # Fuse partial: (tm, Npad) @ (Npad, Zpad) block-diagonal 1x1 weight.
            z_ref[...] = jnp.dot(y, d_ref[...],
                                 preferred_element_type=jnp.float32)
    return kernel


def gpm_pallas_call(xs, packed, m_split):
    """xs: list of padded bf16 im2col matrices, one per pyramid level."""
    num_levels = len(xs)
    inputs, in_specs, out_shapes, out_specs = [], [], [], []
    for l, x in enumerate(xs):
        Mp, K = x.shape
        w = packed['w'][l]
        b = packed['b'][l]
        d = packed['d'][l]
        Np = w.shape[1]
        Zp = d.shape[1]
        tm = Mp // m_split
        inputs += [x, w, b, d]
        in_specs += [
            pl.BlockSpec((tm, K), lambda i: (i, 0)),
            pl.BlockSpec((K, Np), lambda i: (0, 0)),
            pl.BlockSpec((1, Np), lambda i: (0, 0)),
            pl.BlockSpec((Np, Zp), lambda i: (0, 0)),
        ]
        out_shapes.append(jax.ShapeDtypeStruct((Mp, Zp), jnp.float32))
        out_specs.append(pl.BlockSpec((tm, Zp), lambda i: (i, 0)))

    return pl.pallas_call(
        _make_gpm_kernel(num_levels),
        out_shape=tuple(out_shapes),
        grid=(m_split,),
        in_specs=in_specs,
        out_specs=tuple(out_specs),
        compiler_params=pltpu.CompilerParams(
            dimension_semantics=("parallel",)),
    )(*inputs)


# ----------------------------------------------------------------------------
# Layout glue (chunk/cat tiling bookkeeping), matching the PyTorch semantics
# ----------------------------------------------------------------------------

def _round_up(v, m):
    return (v + m - 1) // m * m


def _tile_nhwc(x_nchw, n):
    # (B, C, H, W) -> (B, Hn, Wn, n*n*C); channel index = (i, j, c): same
    # order as torch.cat([y for x in feat.chunk(n, 2) for y in x.chunk(n, 3)], 1)
    B, C, H, W = x_nchw.shape
    Hn, Wn = H // n, W // n
    t = x_nchw.reshape(B, C, n, Hn, n, Wn).transpose(0, 3, 5, 2, 4, 1)
    return t.reshape(B, Hn, Wn, n * n * C)


def _im2col_3x3(x_nhwc):
    # (B, H, W, C) -> (B*H*W, 9*C); K ordered (dy, dx, c), 'same' padding.
    B, H, W, C = x_nhwc.shape
    xp = jnp.pad(x_nhwc, ((0, 0), (1, 1), (1, 1), (0, 0)))
    taps = [xp[:, dy:dy + H, dx:dx + W, :]
            for dy in range(3) for dx in range(3)]
    return jnp.concatenate(taps, axis=-1).reshape(B * H * W, 9 * C)


def _untile_nhwc(y_flat, n, B, Hn, Wn, C):
    # (B*Hn*Wn, n*n*C) with channel (i, j, c) -> (B, n*Hn, n*Wn, C)
    y = y_flat.reshape(B, Hn, Wn, n, n, C).transpose(0, 3, 1, 4, 2, 5)
    return y.reshape(B, n * Hn, n * Wn, C)


# NCHW tile/untile helpers (used by the pure-JAX reference only).
def _tile_to_channels(x, n):
    B, C, H, W = x.shape
    Hn, Wn = H // n, W // n
    x = x.reshape(B, C, n, Hn, n, Wn).transpose(0, 2, 4, 1, 3, 5)
    return x.reshape(B, n * n * C, Hn, Wn)


def _untile_from_channels(x, n, C):
    B, _, Hn, Wn = x.shape
    x = x.reshape(B, n, n, C, Hn, Wn).transpose(0, 3, 1, 4, 2, 5)
    return x.reshape(B, C, n * Hn, n * Wn)


# ----------------------------------------------------------------------------
# Parameters (inference-mode BN folded into scale/bias)
# ----------------------------------------------------------------------------

def init_gpm_params(key, in_C, out_C, n=(2, 4, 7)):
    eps = 1e-5
    keys = jax.random.split(key, len(n) + 1)

    def bn_fold(ks, C):
        gamma = 1.0 + 0.1 * jax.random.normal(ks[0], (C,), jnp.float32)
        beta = 0.1 * jax.random.normal(ks[1], (C,), jnp.float32)
        mean = 0.1 * jax.random.normal(ks[2], (C,), jnp.float32)
        var = 0.5 + jnp.abs(jax.random.normal(ks[3], (C,), jnp.float32))
        scale = gamma / jnp.sqrt(var + eps)
        bias = beta - mean * scale
        return scale.reshape(1, -1), bias.reshape(1, -1)

    cnn = []
    for idx, ni in enumerate(n):
        mid_C = ni * ni * in_C
        k = jax.random.split(keys[idx], 5)
        w = 0.05 * jax.random.normal(k[0], (3, 3, mid_C, mid_C), jnp.float32)
        scale, bias = bn_fold(k[1:], mid_C)
        cnn.append(dict(w=w, scale=scale, bias=bias))

    k = jax.random.split(keys[-1], 5)
    w = 0.05 * jax.random.normal(k[0], (3 * in_C, out_C), jnp.float32)
    scale, bias = bn_fold(k[1:], out_C)
    fuse = dict(w=w, scale=scale, bias=bias)
    return dict(cnn=cnn, fuse=fuse)


def prepare_gpm_params(params, in_C, out_C, n=(2, 4, 7)):
    """One-time packing: BN fold, lane padding, bf16 cast, block-diag fuse."""
    packed = {'w': [], 'b': [], 'd': []}
    wf = params['fuse']['w'] * params['fuse']['scale']        # (3*in_C, out_C)
    for l, ni in enumerate(n):
        p = params['cnn'][l]
        midC = ni * ni * in_C
        Np = _round_up(midC, 128)
        Zp = _round_up(ni * ni * out_C, 128)
        # 3x3 conv weight with BN scale folded in, Cout padded to 128-multiple.
        w = p['w'].reshape(9 * midC, midC) * p['scale']
        w = jnp.pad(w, ((0, 0), (0, Np - midC))).astype(jnp.bfloat16)
        b = jnp.pad(p['bias'], ((0, 0), (0, Np - midC))).astype(jnp.float32)
        # Block-diagonal 1x1 fuse weight in the tiled channel layout:
        # kron(I_{n*n}, Wfuse[l*in_C:(l+1)*in_C, :]); pads are zero.
        wf_l = wf[l * in_C:(l + 1) * in_C, :]
        bd = jnp.kron(jnp.eye(ni * ni, dtype=wf_l.dtype), wf_l)
        bd = jnp.pad(bd, ((0, Np - midC), (0, Zp - ni * ni * out_C)))
        packed['w'].append(w)
        packed['b'].append(b)
        packed['d'].append(bd.astype(jnp.bfloat16))
    packed['fuse_bias'] = params['fuse']['bias'].reshape(-1).astype(jnp.float32)
    return packed


def _default_m_split():
    # 2 grid steps only buy anything on 2-TensorCore chips (v7x); on v5e/v6e
    # they are just a sequential loop with extra per-step overhead.
    try:
        kind = jax.devices()[0].device_kind.lower()
    except Exception:
        return 1
    return 2 if "v7" in kind else 1


# ----------------------------------------------------------------------------
# GPM forward (single fused Pallas call)
# ----------------------------------------------------------------------------

def gpm_forward(packed, x, *, in_C, out_C, n=(2, 4, 7), m_split=1):
    # x: (B, in_C, H, W), NCHW like PyTorch.
    B, C, H, W = x.shape
    assert C == in_C and all(H % ni == 0 and W % ni == 0 for ni in n)
    row_pad = 16 * m_split

    xs = []
    for ni in n:
        Hn, Wn = H // ni, W // ni
        tiled = _tile_nhwc(x, ni)                   # (B, Hn, Wn, ni*ni*C)
        patches = _im2col_3x3(tiled)                # (B*Hn*Wn, 9*ni*ni*C)
        M = B * Hn * Wn
        Mp = _round_up(M, row_pad)                  # unmasked bf16 sublane rows
        patches = jnp.pad(patches, ((0, Mp - M), (0, 0)))
        xs.append(patches.astype(jnp.bfloat16))

    zs = gpm_pallas_call(xs, packed, m_split)       # one kernel launch

    out = None
    for l, ni in enumerate(n):
        Hn, Wn = H // ni, W // ni
        M = B * Hn * Wn
        z = zs[l][:M, :ni * ni * out_C]             # drop row/lane padding
        zl = _untile_nhwc(z, ni, B, Hn, Wn, out_C)  # (B, H, W, out_C)
        out = zl if out is None else out + zl
    out = jnp.maximum(out + packed['fuse_bias'].reshape(1, 1, 1, out_C), 0.0)
    return jnp.transpose(out, (0, 3, 1, 2))         # (B, out_C, H, W)


# ----------------------------------------------------------------------------
# Pure-JAX reference (lax.conv, f32 HIGHEST) for correctness check
# ----------------------------------------------------------------------------

def _ref_conv_bn_relu(x_nchw, w_hwio, scale, bias, padding):
    w_oihw = jnp.transpose(w_hwio, (3, 2, 0, 1))
    y = jax.lax.conv_general_dilated(
        x_nchw, w_oihw, (1, 1), padding,
        dimension_numbers=('NCHW', 'OIHW', 'NCHW'),
        precision=jax.lax.Precision.HIGHEST)
    y = y * scale.reshape(1, -1, 1, 1) + bias.reshape(1, -1, 1, 1)
    return jnp.maximum(y, 0.0)


def gpm_reference(params, x, in_C, out_C, n=(2, 4, 7)):
    feats = []
    for idx, ni in enumerate(n):
        t = _tile_to_channels(x, ni)
        p = params['cnn'][idx]
        y = _ref_conv_bn_relu(t, p['w'], p['scale'][0], p['bias'][0],
                              ((1, 1), (1, 1)))
        feats.append(_untile_from_channels(y, ni, in_C))
    cat = jnp.concatenate(feats, axis=1)
    pf = params['fuse']
    w11 = pf['w'].reshape(1, 1, *pf['w'].shape)
    return _ref_conv_bn_relu(cat, w11, pf['scale'][0], pf['bias'][0],
                             ((0, 0), (0, 0)))


# ----------------------------------------------------------------------------

if __name__ == "__main__":
    key = jax.random.PRNGKey(0)
    kx, kp = jax.random.split(key)

    # H and W must be divisible by every n in (2, 4, 7) -> smallest is 28.
    B, in_C, H, W, out_C = 2, 4, 28, 28, 8
    n = (2, 4, 7)

    x = jax.random.normal(kx, (B, in_C, H, W), jnp.float32)
    params = init_gpm_params(kp, in_C, out_C, n)

    # One-time weight packing (hoisted out of the forward pass).
    packed = prepare_gpm_params(params, in_C, out_C, n)
    m_split = _default_m_split()

    fwd = jax.jit(functools.partial(gpm_forward, in_C=in_C, out_C=out_C,
                                    n=n, m_split=m_split))
    out = jax.block_until_ready(fwd(packed, x))
    assert out.shape == (B, out_C, H, W)

    ref = gpm_reference(params, x, in_C, out_C, n)
    # bf16 MXU operands (f32 accumulation) -> loose-ish tolerance vs f32 ref.
    np.testing.assert_allclose(np.asarray(out), np.asarray(ref),
                               rtol=2e-2, atol=4e-2)
    print("KERNEL_OK")
</pallas_src>

<mosaic_0001>
module attributes {stable_mosaic.version = 11 : i64} {
  func.func @kernel(%arg0: i32, %arg1: memref<400x144xbf16, #tpu.memory_space<vmem>>, %arg2: memref<144x128xbf16, #tpu.memory_space<vmem>>, %arg3: memref<1x128xf32, #tpu.memory_space<vmem>>, %arg4: memref<128x128xbf16, #tpu.memory_space<vmem>>, %arg5: memref<112x576xbf16, #tpu.memory_space<vmem>>, %arg6: memref<576x128xbf16, #tpu.memory_space<vmem>>, %arg7: memref<1x128xf32, #tpu.memory_space<vmem>>, %arg8: memref<128x128xbf16, #tpu.memory_space<vmem>>, %arg9: memref<32x1764xbf16, #tpu.memory_space<vmem>>, %arg10: memref<1764x256xbf16, #tpu.memory_space<vmem>>, %arg11: memref<1x256xf32, #tpu.memory_space<vmem>>, %arg12: memref<256x512xbf16, #tpu.memory_space<vmem>>, %arg13: memref<400x128xf32, #tpu.memory_space<vmem>>, %arg14: memref<112x128xf32, #tpu.memory_space<vmem>>, %arg15: memref<32x512xf32, #tpu.memory_space<vmem>>) attributes {dimension_semantics = [#tpu.dimension_semantics<parallel>], iteration_bounds = array<i64: 1>, scalar_prefetch = 0 : i64, scratch_operands = 0 : i64, tpu.core_type = #tpu.core_type<tc>, window_params = [{transform_indices = @transform_0, window_bounds = array<i64: 400, 144>}, {pipeline_mode = #tpu.pipeline_mode<synchronous>, transform_indices = @transform_1, window_bounds = array<i64: 144, 128>}, {pipeline_mode = #tpu.pipeline_mode<synchronous>, transform_indices = @transform_2, window_bounds = array<i64: 1, 128>}, {pipeline_mode = #tpu.pipeline_mode<synchronous>, transform_indices = @transform_3, window_bounds = array<i64: 128, 128>}, {transform_indices = @transform_4, window_bounds = array<i64: 112, 576>}, {pipeline_mode = #tpu.pipeline_mode<synchronous>, transform_indices = @transform_5, window_bounds = array<i64: 576, 128>}, {pipeline_mode = #tpu.pipeline_mode<synchronous>, transform_indices = @transform_6, window_bounds = array<i64: 1, 128>}, {pipeline_mode = #tpu.pipeline_mode<synchronous>, transform_indices = @transform_7, window_bounds = array<i64: 128, 128>}, {transform_indices = @transform_8, window_bounds = array<i64: 32, 1764>}, {pipeline_mode = #tpu.pipeline_mode<synchronous>, transform_indices = @transform_9, window_bounds = array<i64: 1764, 256>}, {pipeline_mode = #tpu.pipeline_mode<synchronous>, transform_indices = @transform_10, window_bounds = array<i64: 1, 256>}, {pipeline_mode = #tpu.pipeline_mode<synchronous>, transform_indices = @transform_11, window_bounds = array<i64: 256, 512>}, {transform_indices = @transform_12, window_bounds = array<i64: 400, 128>}, {transform_indices = @transform_13, window_bounds = array<i64: 112, 128>}, {transform_indices = @transform_14, window_bounds = array<i64: 32, 512>}]} {
    %c0 = arith.constant 0 : index
    %c0_0 = arith.constant 0 : index
    %0 = vector.load %arg1[%c0, %c0_0] : memref<400x144xbf16, #tpu.memory_space<vmem>>, vector<400x144xbf16>
    %c0_1 = arith.constant 0 : index
    %c0_2 = arith.constant 0 : index
    %1 = vector.load %arg2[%c0_1, %c0_2] : memref<144x128xbf16, #tpu.memory_space<vmem>>, vector<144x128xbf16>
    %cst = arith.constant dense<0.000000e+00> : vector<400x128xf32>
    %2 = tpu.matmul %0, %1, %cst {dimension_numbers = #tpu.dot_dimension_numbers<[1], [0], [0], [1], [0, 0, 1, 1], [], []>} : vector<400x144xbf16>, vector<144x128xbf16>, vector<400x128xf32> -> vector<400x128xf32>
    %c0_3 = arith.constant 0 : index
    %c0_4 = arith.constant 0 : index
    %3 = vector.load %arg3[%c0_3, %c0_4] : memref<1x128xf32, #tpu.memory_space<vmem>>, vector<1x128xf32>
    %4 = vector.broadcast %3 : vector<1x128xf32> to vector<400x128xf32>
    %5 = arith.addf %2, %4 : vector<400x128xf32>
    %cst_5 = arith.constant 0.000000e+00 : f32
    %6 = vector.broadcast %cst_5 : f32 to vector<400x128xf32>
    %7 = arith.maximumf %5, %6 : vector<400x128xf32>
    %8 = arith.truncf %7 : vector<400x128xf32> to vector<400x128xbf16>
    %c0_6 = arith.constant 0 : index
    %c0_7 = arith.constant 0 : index
    %9 = vector.load %arg4[%c0_6, %c0_7] : memref<128x128xbf16, #tpu.memory_space<vmem>>, vector<128x128xbf16>
    %cst_8 = arith.constant dense<0.000000e+00> : vector<400x128xf32>
    %10 = tpu.matmul %8, %9, %cst_8 {dimension_numbers = #tpu.dot_dimension_numbers<[1], [0], [0], [1], [0, 0, 1, 1], [], []>} : vector<400x128xbf16>, vector<128x128xbf16>, vector<400x128xf32> -> vector<400x128xf32>
    %c0_9 = arith.constant 0 : index
    %c0_10 = arith.constant 0 : index
    %11 = vector.load %arg13[%c0_9, %c0_10] : memref<400x128xf32, #tpu.memory_space<vmem>>, vector<400x128xf32>
    tpu.vector_store %arg13[%c0_9, %c0_10], %10 {strides = array<i32>} : memref<400x128xf32, #tpu.memory_space<vmem>>, vector<400x128xf32>,
    %c0_11 = arith.constant 0 : index
    %c0_12 = arith.constant 0 : index
    %12 = vector.load %arg5[%c0_11, %c0_12] : memref<112x576xbf16, #tpu.memory_space<vmem>>, vector<112x576xbf16>
    %c0_13 = arith.constant 0 : index
    %c0_14 = arith.constant 0 : index
    %13 = vector.load %arg6[%c0_13, %c0_14] : memref<576x128xbf16, #tpu.memory_space<vmem>>, vector<576x128xbf16>
    %cst_15 = arith.constant dense<0.000000e+00> : vector<112x128xf32>
    %14 = tpu.matmul %12, %13, %cst_15 {dimension_numbers = #tpu.dot_dimension_numbers<[1], [0], [0], [1], [0, 0, 1, 1], [], []>} : vector<112x576xbf16>, vector<576x128xbf16>, vector<112x128xf32> -> vector<112x128xf32>
    %c0_16 = arith.constant 0 : index
    %c0_17 = arith.constant 0 : index
    %15 = vector.load %arg7[%c0_16, %c0_17] : memref<1x128xf32, #tpu.memory_space<vmem>>, vector<1x128xf32>
    %16 = vector.broadcast %15 : vector<1x128xf32> to vector<112x128xf32>
    %17 = arith.addf %14, %16 : vector<112x128xf32>
    %cst_18 = arith.constant 0.000000e+00 : f32
    %18 = vector.broadcast %cst_18 : f32 to vector<112x128xf32>
    %19 = arith.maximumf %17, %18 : vector<112x128xf32>
    %20 = arith.truncf %19 : vector<112x128xf32> to vector<112x128xbf16>
    %c0_19 = arith.constant 0 : index
    %c0_20 = arith.constant 0 : index
    %21 = vector.load %arg8[%c0_19, %c0_20] : memref<128x128xbf16, #tpu.memory_space<vmem>>, vector<128x128xbf16>
    %cst_21 = arith.constant dense<0.000000e+00> : vector<112x128xf32>
    %22 = tpu.matmul %20, %21, %cst_21 {dimension_numbers = #tpu.dot_dimension_numbers<[1], [0], [0], [1], [0, 0, 1, 1], [], []>} : vector<112x128xbf16>, vector<128x128xbf16>, vector<112x128xf32> -> vector<112x128xf32>
    %c0_22 = arith.constant 0 : index
    %c0_23 = arith.constant 0 : index
    %23 = vector.load %arg14[%c0_22, %c0_23] : memref<112x128xf32, #tpu.memory_space<vmem>>, vector<112x128xf32>
    tpu.vector_store %arg14[%c0_22, %c0_23], %22 {strides = array<i32>} : memref<112x128xf32, #tpu.memory_space<vmem>>, vector<112x128xf32>,
    %c0_24 = arith.constant 0 : index
    %c0_25 = arith.constant 0 : index
    %24 = vector.load %arg9[%c0_24, %c0_25] : memref<32x1764xbf16, #tpu.memory_space<vmem>>, vector<32x1764xbf16>
    %c0_26 = arith.constant 0 : index
    %c0_27 = arith.constant 0 : index
    %25 = vector.load %arg10[%c0_26, %c0_27] : memref<1764x256xbf16, #tpu.memory_space<vmem>>, vector<1764x256xbf16>
    %cst_28 = arith.constant dense<0.000000e+00> : vector<32x256xf32>
    %26 = tpu.matmul %24, %25, %cst_28 {dimension_numbers = #tpu.dot_dimension_numbers<[1], [0], [0], [1], [0, 0, 1, 1], [], []>} : vector<32x1764xbf16>, vector<1764x256xbf16>, vector<32x256xf32> -> vector<32x256xf32>
    %c0_29 = arith.constant 0 : index
    %c0_30 = arith.constant 0 : index
    %27 = vector.load %arg11[%c0_29, %c0_30] : memref<1x256xf32, #tpu.memory_space<vmem>>, vector<1x256xf32>
    %28 = vector.broadcast %27 : vector<1x256xf32> to vector<32x256xf32>
    %29 = arith.addf %26, %28 : vector<32x256xf32>
    %cst_31 = arith.constant 0.000000e+00 : f32
    %30 = vector.broadcast %cst_31 : f32 to vector<32x256xf32>
    %31 = arith.maximumf %29, %30 : vector<32x256xf32>
    %32 = arith.truncf %31 : vector<32x256xf32> to vector<32x256xbf16>
    %c0_32 = arith.constant 0 : index
    %c0_33 = arith.constant 0 : index
    %33 = vector.load %arg12[%c0_32, %c0_33] : memref<256x512xbf16, #tpu.memory_space<vmem>>, vector<256x512xbf16>
    %cst_34 = arith.constant dense<0.000000e+00> : vector<32x512xf32>
    %34 = tpu.matmul %32, %33, %cst_34 {dimension_numbers = #tpu.dot_dimension_numbers<[1], [0], [0], [1], [0, 0, 1, 1], [], []>} : vector<32x256xbf16>, vector<256x512xbf16>, vector<32x512xf32> -> vector<32x512xf32>
    %c0_35 = arith.constant 0 : index
    %c0_36 = arith.constant 0 : index
    %35 = vector.load %arg15[%c0_35, %c0_36] : memref<32x512xf32, #tpu.memory_space<vmem>>, vector<32x512xf32>
    tpu.vector_store %arg15[%c0_35, %c0_36], %34 {strides = array<i32>} : memref<32x512xf32, #tpu.memory_space<vmem>>, vector<32x512xf32>,
    return
  }
  func.func @transform_0(%arg0: i32) -> (i32, i32) {
    %c0_i32 = arith.constant 0 : i32
    %c0_i32_0 = arith.constant 0 : i32
    return %arg0, %c0_i32 : i32, i32
  }
  func.func @transform_1(%arg0: i32) -> (i32, i32) {
    %c0_i32 = arith.constant 0 : i32
    %c0_i32_0 = arith.constant 0 : i32
    %c0_i32_1 = arith.constant 0 : i32
    return %c0_i32, %c0_i32_0 : i32, i32
  }
  func.func @transform_2(%arg0: i32) -> (i32, i32) {
    %c0_i32 = arith.constant 0 : i32
    %c0_i32_0 = arith.constant 0 : i32
    %c0_i32_1 = arith.constant 0 : i32
    return %c0_i32, %c0_i32_0 : i32, i32
  }
  func.func @transform_3(%arg0: i32) -> (i32, i32) {
    %c0_i32 = arith.constant 0 : i32
    %c0_i32_0 = arith.constant 0 : i32
    %c0_i32_1 = arith.constant 0 : i32
    return %c0_i32, %c0_i32_0 : i32, i32
  }
  func.func @transform_4(%arg0: i32) -> (i32, i32) {
    %c0_i32 = arith.constant 0 : i32
    %c0_i32_0 = arith.constant 0 : i32
    return %arg0, %c0_i32 : i32, i32
  }
  func.func @transform_5(%arg0: i32) -> (i32, i32) {
    %c0_i32 = arith.constant 0 : i32
    %c0_i32_0 = arith.constant 0 : i32
    %c0_i32_1 = arith.constant 0 : i32
    return %c0_i32, %c0_i32_0 : i32, i32
  }
  func.func @transform_6(%arg0: i32) -> (i32, i32) {
    %c0_i32 = arith.constant 0 : i32
    %c0_i32_0 = arith.constant 0 : i32
    %c0_i32_1 = arith.constant 0 : i32
    return %c0_i32, %c0_i32_0 : i32, i32
  }
  func.func @transform_7(%arg0: i32) -> (i32, i32) {
    %c0_i32 = arith.constant 0 : i32
    %c0_i32_0 = arith.constant 0 : i32
    %c0_i32_1 = arith.constant 0 : i32
    return %c0_i32, %c0_i32_0 : i32, i32
  }
  func.func @transform_8(%arg0: i32) -> (i32, i32) {
    %c0_i32 = arith.constant 0 : i32
    %c0_i32_0 = arith.constant 0 : i32
    return %arg0, %c0_i32 : i32, i32
  }
  func.func @transform_9(%arg0: i32) -> (i32, i32) {
    %c0_i32 = arith.constant 0 : i32
    %c0_i32_0 = arith.constant 0 : i32
    %c0_i32_1 = arith.constant 0 : i32
    return %c0_i32, %c0_i32_0 : i32, i32
  }
  func.func @transform_10(%arg0: i32) -> (i32, i32) {
    %c0_i32 = arith.constant 0 : i32
    %c0_i32_0 = arith.constant 0 : i32
    %c0_i32_1 = arith.constant 0 : i32
    return %c0_i32, %c0_i32_0 : i32, i32
  }
  func.func @transform_11(%arg0: i32) -> (i32, i32) {
    %c0_i32 = arith.constant 0 : i32
    %c0_i32_0 = arith.constant 0 : i32
    %c0_i32_1 = arith.constant 0 : i32
    return %c0_i32, %c0_i32_0 : i32, i32
  }
  func.func @transform_12(%arg0: i32) -> (i32, i32) {
    %c0_i32 = arith.constant 0 : i32
    %c0_i32_0 = arith.constant 0 : i32
    return %arg0, %c0_i32 : i32, i32
  }
  func.func @transform_13(%arg0: i32) -> (i32, i32) {
    %c0_i32 = arith.constant 0 : i32
    %c0_i32_0 = arith.constant 0 : i32
    return %arg0, %c0_i32 : i32, i32
  }
  func.func @transform_14(%arg0: i32) -> (i32, i32) {
    %c0_i32 = arith.constant 0 : i32
    %c0_i32_0 = arith.constant 0 : i32
    return %arg0, %c0_i32 : i32, i32
  }
}

</mosaic_0001>

<llo_original>
// kernel: gpm_forward.1
$region0: #{gpm_forward.1}
  #allocation0 [shape = 'u32[]', space=smem, size = 0x4, offset = 0x4, fixed_abs, tag = 'smem constant byte address 0x4 - core index']
  #allocation1 [shape = 'u32[72,128]{1,0:T(1,128)}', space=vmem, size = 0x9000, scoped, tag = 'internal scratch']
  %s0 = inlined_call_operand.vmem [shape: bf16[400,144], index: 0, kind: input, shape index: {}]
  %s1 = inlined_call_operand.vmem [shape: bf16[144,128], index: 1, kind: input, shape index: {}]
  %s2 = inlined_call_operand.vmem [shape: f32[1,128], index: 2, kind: input, shape index: {}]
  %s3 = inlined_call_operand.vmem [shape: bf16[128,128], index: 3, kind: input, shape index: {}]
  %s4 = inlined_call_operand.vmem [shape: bf16[112,576], index: 4, kind: input, shape index: {}]
  %s5 = inlined_call_operand.vmem [shape: bf16[576,128], index: 5, kind: input, shape index: {}]
  %s6 = inlined_call_operand.vmem [shape: f32[1,128], index: 6, kind: input, shape index: {}]
  %s7 = inlined_call_operand.vmem [shape: bf16[128,128], index: 7, kind: input, shape index: {}]
  %s8 = inlined_call_operand.vmem [shape: bf16[32,1764], index: 8, kind: input, shape index: {}]
  %s9 = inlined_call_operand.vmem [shape: bf16[1764,256], index: 9, kind: input, shape index: {}]
  %s10 = inlined_call_operand.vmem [shape: f32[1,256], index: 10, kind: input, shape index: {}]
  %s11 = inlined_call_operand.vmem [shape: bf16[256,512], index: 11, kind: input, shape index: {}]
  %s12 = inlined_call_operand.vmem [shape: f32[400,128], index: 12, kind: output, shape index: {0}]
  %s13 = inlined_call_operand.vmem [shape: f32[112,128], index: 13, kind: output, shape index: {1}]
  %s14 = inlined_call_operand.vmem [shape: f32[32,512], index: 14, kind: output, shape index: {2}]
  %15 = xla_tuple %s12, %s13, %s14
  %s16 = sld [smem:[#allocation0]]
  $region74: #{gpm_forward.1} parent=0
    _
  %s18 = ssub.s32 1, %s16
  %s19 = scalar_select 0, %s18, %s16
  // Predicated region
  $region2: #{gpm_forward.1} parent=0 // pred_check
    _
  $region3: #{gpm_forward.1} parent=0 // pred_check_branch
    %21 = sbr.rel (0) target = $region5
  $region4: #{gpm_forward.1} parent=0 // pred_region
    _
  $region5: #{gpm_forward.1} parent=0 // pred_fallthru
    _
  // Predicated region
  $region6: #{gpm_forward.1} parent=0 // pred_check
    _
  $region7: #{gpm_forward.1} parent=0 // pred_check_branch
    %23 = sbr.rel (0) target = $region9
  $region8: #{gpm_forward.1} parent=0 // pred_region
    _
  $region9: #{gpm_forward.1} parent=0 // pred_fallthru
    _
  // Predicated region
  $region10: #{gpm_forward.1} parent=0 // pred_check
    _
  $region11: #{gpm_forward.1} parent=0 // pred_check_branch
    %25 = sbr.rel (0) target = $region13
  $region12: #{gpm_forward.1} parent=0 // pred_region
    _
  $region13: #{gpm_forward.1} parent=0 // pred_fallthru
    _
  // Predicated region
  $region14: #{gpm_forward.1} parent=0 // pred_check
    _
  $region15: #{gpm_forward.1} parent=0 // pred_check_branch
    %27 = sbr.rel (0) target = $region17
  $region16: #{gpm_forward.1} parent=0 // pred_region
    _
  $region17: #{gpm_forward.1} parent=0 // pred_fallthru
    _
  // Predicated region
  $region18: #{gpm_forward.1} parent=0 // pred_check
    _
  $region19: #{gpm_forward.1} parent=0 // pred_check_branch
    %29 = sbr.rel (0) target = $region21
  $region20: #{gpm_forward.1} parent=0 // pred_region
    _
  $region21: #{gpm_forward.1} parent=0 // pred_fallthru
    _
  // Predicated region
  $region22: #{gpm_forward.1} parent=0 // pred_check
    _
  $region23: #{gpm_forward.1} parent=0 // pred_check_branch
    %31 = sbr.rel (0) target = $region25
  $region24: #{gpm_forward.1} parent=0 // pred_region
    _
  $region25: #{gpm_forward.1} parent=0 // pred_fallthru
    _
  // Predicated region
  $region26: #{gpm_forward.1} parent=0 // pred_check
    _
  $region27: #{gpm_forward.1} parent=0 // pred_check_branch
    %33 = sbr.rel (0) target = $region29
  $region28: #{gpm_forward.1} parent=0 // pred_region
    _
  $region29: #{gpm_forward.1} parent=0 // pred_fallthru
    _
  // Predicated region
  $region30: #{gpm_forward.1} parent=0 // pred_check
    _
  $region31: #{gpm_forward.1} parent=0 // pred_check_branch
    %35 = sbr.rel (0) target = $region33
  $region32: #{gpm_forward.1} parent=0 // pred_region
    _
  $region33: #{gpm_forward.1} parent=0 // pred_fallthru
    _
  // Predicated region
  $region34: #{gpm_forward.1} parent=0 // pred_check
    _
  $region35: #{gpm_forward.1} parent=0 // pred_check_branch
    %37 = sbr.rel (0) target = $region37
  $region36: #{gpm_forward.1} parent=0 // pred_region
    _
  $region37: #{gpm_forward.1} parent=0 // pred_fallthru
    _
  // Predicated region
  $region38: #{gpm_forward.1} parent=0 // pred_check
    _
  $region39: #{gpm_forward.1} parent=0 // pred_check_branch
    %39 = sbr.rel (0) target = $region41
  $region40: #{gpm_forward.1} parent=0 // pred_region
    _
  $region41: #{gpm_forward.1} parent=0 // pred_fallthru
    _
  // Predicated region
  $region42: #{gpm_forward.1} parent=0 // pred_check
    _
  $region43: #{gpm_forward.1} parent=0 // pred_check_branch
    %41 = sbr.rel (0) target = $region45
  $region44: #{gpm_forward.1} parent=0 // pred_region
    _
  $region45: #{gpm_forward.1} parent=0 // pred_fallthru
    _
  // Predicated region
  $region46: #{gpm_forward.1} parent=0 // pred_check
    _
  $region47: #{gpm_forward.1} parent=0 // pred_check_branch
    %43 = sbr.rel (0) target = $region49
  $region48: #{gpm_forward.1} parent=0 // pred_region
    _
  $region49: #{gpm_forward.1} parent=0 // pred_fallthru
    _
  %v45 = vld [vmem:[%s0] sm:$0xff]
  %v46 = vld [vmem:[%s0 + $0x8] sm:$0xff]
  %v47 = vld [vmem:[%s0 + $0x10] sm:$0xff]
  %v48 = vld [vmem:[%s0 + $0x18] sm:$0xff]
  %v49 = vld [vmem:[%s0 + $0x20] sm:$0xff]
  %v50 = vld [vmem:[%s0 + $0x28] sm:$0xff]
  %v51 = vld [vmem:[%s0 + $0x30] sm:$0xff]
  %v52 = vld [vmem:[%s0 + $0x38] sm:$0xff]
  %v53 = vld [vmem:[%s0 + $0x40] sm:$0xff]
  %v54 = vld [vmem:[%s0 + $0x48] sm:$0xff]
  %v55 = vld [vmem:[%s0 + $0x50] sm:$0xff]
  %v56 = vld [vmem:[%s0 + $0x58] sm:$0xff]
  %v57 = vld [vmem:[%s0 + $0x60] sm:$0xff]
  %v58 = vld [vmem:[%s0 + $0x68] sm:$0xff]
  %v59 = vld [vmem:[%s0 + $0x70] sm:$0xff]
  %v60 = vld [vmem:[%s0 + $0x78] sm:$0xff]
  %v61 = vld [vmem:[%s0 + $0x80] sm:$0xff]
  %v62 = vld [vmem:[%s0 + $0x88] sm:$0xff]
  %v63 = vld [vmem:[%s0 + $0x90] sm:$0xff]
  %v64 = vld [vmem:[%s0 + $0x98] sm:$0xff]
  %v65 = vld [vmem:[%s0 + $0xa0] sm:$0xff]
  %v66 = vld [vmem:[%s0 + $0xa8] sm:$0xff]
  %v67 = vld [vmem:[%s0 + $0xb0] sm:$0xff]
  %v68 = vld [vmem:[%s0 + $0xb8] sm:$0xff]
  %v69 = vld [vmem:[%s0 + $0xc0] sm:$0xff]
  %v70 = vld [vmem:[%s0 + $0xc8] sm:$0xff]
  %v71 = vld [vmem:[%s0 + $0xd0] sm:$0xff]
  %v72 = vld [vmem:[%s0 + $0xd8] sm:$0xff]
  %v73 = vld [vmem:[%s0 + $0xe0] sm:$0xff]
  %v74 = vld [vmem:[%s0 + $0xe8] sm:$0xff]
  %v75 = vld [vmem:[%s0 + $0xf0] sm:$0xff]
  %v76 = vld [vmem:[%s0 + $0xf8] sm:$0xff]
  %v77 = vld [vmem:[%s0 + $0x100] sm:$0xff]
  %v78 = vld [vmem:[%s0 + $0x108] sm:$0xff]
  %v79 = vld [vmem:[%s0 + $0x110] sm:$0xff]
  %v80 = vld [vmem:[%s0 + $0x118] sm:$0xff]
  %v81 = vld [vmem:[%s0 + $0x120] sm:$0xff]
  %v82 = vld [vmem:[%s0 + $0x128] sm:$0xff]
  %v83 = vld [vmem:[%s0 + $0x130] sm:$0xff]
  %v84 = vld [vmem:[%s0 + $0x138] sm:$0xff]
  %v85 = vld [vmem:[%s0 + $0x140] sm:$0xff]
  %v86 = vld [vmem:[%s0 + $0x148] sm:$0xff]
  %v87 = vld [vmem:[%s0 + $0x150] sm:$0xff]
  %v88 = vld [vmem:[%s0 + $0x158] sm:$0xff]
  %v89 = vld [vmem:[%s0 + $0x160] sm:$0xff]
  %v90 = vld [vmem:[%s0 + $0x168] sm:$0xff]
  %v91 = vld [vmem:[%s0 + $0x170] sm:$0xff]
  %v92 = vld [vmem:[%s0 + $0x178] sm:$0xff]
  %v93 = vld [vmem:[%s0 + $0x180] sm:$0xff]
  %v94 = vld [vmem:[%s0 + $0x188] sm:$0xff]
  %v95 = vld [vmem:[%s1] sm:$0xf]
  %v96 = vld [vmem:[%s1 + $0x4] sm:$0xf]
  %v97 = vld [vmem:[%s1 + $0x8] sm:$0xf]
  %v98 = vld [vmem:[%s1 + $0xc] sm:$0xf]
  %v99 = vld [vmem:[%s1 + $0x10] sm:$0xf]
  %v100 = vld [vmem:[%s1 + $0x14] sm:$0xf]
  %v101 = vld [vmem:[%s1 + $0x18] sm:$0xf]
  %v102 = vld [vmem:[%s1 + $0x1c] sm:$0xf]
  %v103 = vld [vmem:[%s1 + $0x20] sm:$0xf]
  %v104 = vld [vmem:[%s1 + $0x24] sm:$0xf]
  %v105 = vld [vmem:[%s1 + $0x28] sm:$0xf]
  %v106 = vld [vmem:[%s1 + $0x2c] sm:$0xf]
  %v107 = vld [vmem:[%s1 + $0x30] sm:$0xf]
  %v108 = vld [vmem:[%s1 + $0x34] sm:$0xf]
  %v109 = vld [vmem:[%s1 + $0x38] sm:$0xf]
  %v110 = vld [vmem:[%s1 + $0x3c] sm:$0xf]
  %v111 = vld [vmem:[%s1 + $0x40] sm:$0xf]
  %v112 = vld [vmem:[%s1 + $0x44] sm:$0xf]
  %v113 = vld [vmem:[%s2] sm:$0x1]
  %v115 = vperm.slane %v113, 0
  %v167 = vunpack.c.l.b16 %v45
  %v168 = vunpack.c.h.b16 %v45
  %v169 = vunpack.c.l.b16 %v46
  %v170 = vunpack.c.h.b16 %v46
  %v171 = vunpack.c.l.b16 %v47
  %v172 = vunpack.c.h.b16 %v47
  %v173 = vunpack.c.l.b16 %v48
  %v174 = vunpack.c.h.b16 %v48
  %v175 = vunpack.c.l.b16 %v49
  %v176 = vunpack.c.h.b16 %v49
  %v177 = vunpack.c.l.b16 %v50
  %v178 = vunpack.c.h.b16 %v50
  %v179 = vunpack.c.l.b16 %v51
  %v180 = vunpack.c.h.b16 %v51
  %v181 = vunpack.c.l.b16 %v52
  %v182 = vunpack.c.h.b16 %v52
  %v183 = vunpack.c.l.b16 %v53
  %v184 = vunpack.c.h.b16 %v53
  %v185 = vunpack.c.l.b16 %v54
  %v186 = vunpack.c.h.b16 %v54
  %v187 = vunpack.c.l.b16 %v55
  %v188 = vunpack.c.h.b16 %v55
  %v189 = vunpack.c.l.b16 %v56
  %v190 = vunpack.c.h.b16 %v56
  %v191 = vunpack.c.l.b16 %v57
  %v192 = vunpack.c.h.b16 %v57
  %v193 = vunpack.c.l.b16 %v58
  %v194 = vunpack.c.h.b16 %v58
  %v195 = vunpack.c.l.b16 %v59
  %v196 = vunpack.c.h.b16 %v59
  %v197 = vunpack.c.l.b16 %v60
  %v198 = vunpack.c.h.b16 %v60
  %v199 = vunpack.c.l.b16 %v61
  %v200 = vunpack.c.h.b16 %v61
  %v201 = vunpack.c.l.b16 %v62
  %v202 = vunpack.c.h.b16 %v62
  %v203 = vunpack.c.l.b16 %v63
  %v204 = vunpack.c.h.b16 %v63
  %v205 = vunpack.c.l.b16 %v64
  %v206 = vunpack.c.h.b16 %v64
  %v207 = vunpack.c.l.b16 %v65
  %v208 = vunpack.c.h.b16 %v65
  %v209 = vunpack.c.l.b16 %v66
  %v210 = vunpack.c.h.b16 %v66
  %v211 = vunpack.c.l.b16 %v67
  %v212 = vunpack.c.h.b16 %v67
  %v213 = vunpack.c.l.b16 %v68
  %v214 = vunpack.c.h.b16 %v68
  %v215 = vunpack.c.l.b16 %v69
  %v216 = vunpack.c.h.b16 %v69
  %v217 = vunpack.c.l.b16 %v70
  %v218 = vunpack.c.h.b16 %v70
  %v219 = vunpack.c.l.b16 %v71
  %v220 = vunpack.c.h.b16 %v71
  %v221 = vunpack.c.l.b16 %v72
  %v222 = vunpack.c.h.b16 %v72
  %v223 = vunpack.c.l.b16 %v73
  %v224 = vunpack.c.h.b16 %v73
  %v225 = vunpack.c.l.b16 %v74
  %v226 = vunpack.c.h.b16 %v74
  %v227 = vunpack.c.l.b16 %v75
  %v228 = vunpack.c.h.b16 %v75
  %v229 = vunpack.c.l.b16 %v76
  %v230 = vunpack.c.h.b16 %v76
  %v231 = vunpack.c.l.b16 %v77
  %v232 = vunpack.c.h.b16 %v77
  %v233 = vunpack.c.l.b16 %v78
  %v234 = vunpack.c.h.b16 %v78
  %v235 = vunpack.c.l.b16 %v79
  %v236 = vunpack.c.h.b16 %v79
  %v237 = vunpack.c.l.b16 %v80
  %v238 = vunpack.c.h.b16 %v80
  %v239 = vunpack.c.l.b16 %v81
  %v240 = vunpack.c.h.b16 %v81
  %v241 = vunpack.c.l.b16 %v82
  %v242 = vunpack.c.h.b16 %v82
  %v243 = vunpack.c.l.b16 %v83
  %v244 = vunpack.c.h.b16 %v83
  %v245 = vunpack.c.l.b16 %v84
  %v246 = vunpack.c.h.b16 %v84
  %v247 = vunpack.c.l.b16 %v85
  %v248 = vunpack.c.h.b16 %v85
  %v249 = vunpack.c.l.b16 %v86
  %v250 = vunpack.c.h.b16 %v86
  %v251 = vunpack.c.l.b16 %v87
  %v252 = vunpack.c.h.b16 %v87
  %v253 = vunpack.c.l.b16 %v88
  %v254 = vunpack.c.h.b16 %v88
  %v255 = vunpack.c.l.b16 %v89
  %v256 = vunpack.c.h.b16 %v89
  %v257 = vunpack.c.l.b16 %v90
  %v258 = vunpack.c.h.b16 %v90
  %v259 = vunpack.c.l.b16 %v91
  %v260 = vunpack.c.h.b16 %v91
  %v261 = vunpack.c.l.b16 %v92
  %v262 = vunpack.c.h.b16 %v92
  %v263 = vunpack.c.l.b16 %v93
  %v264 = vunpack.c.h.b16 %v93
  %v265 = vunpack.c.l.b16 %v94
  %v266 = vunpack.c.h.b16 %v94
  %v267 = vpack.c.b16 %v169, %v167
  %v268 = vpack.c.b16 %v170, %v168
  %v269 = vpack.c.b16 %v173, %v171
  %v270 = vpack.c.b16 %v174, %v172
  %v271 = vpack.c.b16 %v177, %v175
  %v272 = vpack.c.b16 %v178, %v176
  %v273 = vpack.c.b16 %v181, %v179
  %v274 = vpack.c.b16 %v182, %v180
  %v275 = vpack.c.b16 %v185, %v183
  %v276 = vpack.c.b16 %v186, %v184
  %v277 = vpack.c.b16 %v189, %v187
  %v278 = vpack.c.b16 %v190, %v188
  %v279 = vpack.c.b16 %v193, %v191
  %v280 = vpack.c.b16 %v194, %v192
  %v281 = vpack.c.b16 %v197, %v195
  %v282 = vpack.c.b16 %v198, %v196
  %v283 = vpack.c.b16 %v201, %v199
  %v284 = vpack.c.b16 %v202, %v200
  %v285 = vpack.c.b16 %v205, %v203
  %v286 = vpack.c.b16 %v206, %v204
  %v287 = vpack.c.b16 %v209, %v207
  %v288 = vpack.c.b16 %v210, %v208
  %v289 = vpack.c.b16 %v213, %v211
  %v290 = vpack.c.b16 %v214, %v212
  %v291 = vpack.c.b16 %v217, %v215
  %v292 = vpack.c.b16 %v218, %v216
  %v293 = vpack.c.b16 %v221, %v219
  %v294 = vpack.c.b16 %v222, %v220
  %v295 = vpack.c.b16 %v225, %v223
  %v296 = vpack.c.b16 %v226, %v224
  %v297 = vpack.c.b16 %v229, %v227
  %v298 = vpack.c.b16 %v230, %v228
  %v299 = vpack.c.b16 %v233, %v231
  %v300 = vpack.c.b16 %v234, %v232
  %v301 = vpack.c.b16 %v237, %v235
  %v302 = vpack.c.b16 %v238, %v236
  %v303 = vpack.c.b16 %v241, %v239
  %v304 = vpack.c.b16 %v242, %v240
  %v305 = vpack.c.b16 %v245, %v243
  %v306 = vpack.c.b16 %v246, %v244
  %v307 = vpack.c.b16 %v249, %v247
  %v308 = vpack.c.b16 %v250, %v248
  %v309 = vpack.c.b16 %v253, %v251
  %v310 = vpack.c.b16 %v254, %v252
  %v311 = vpack.c.b16 %v257, %v255
  %v312 = vpack.c.b16 %v258, %v256
  %v313 = vpack.c.b16 %v261, %v259
  %v314 = vpack.c.b16 %v262, %v260
  %v315 = vpack.c.b16 %v265, %v263
  %v316 = vpack.c.b16 %v266, %v264
  %v360 = vunpack.c.l.b16 %v95
  %v361 = vunpack.c.l.b16 %v96
  %v362 = vunpack.c.l.b16 %v97
  %v363 = vunpack.c.l.b16 %v98
  %v364 = vunpack.c.l.b16 %v99
  %v365 = vunpack.c.l.b16 %v100
  %v366 = vunpack.c.l.b16 %v101
  %v367 = vunpack.c.l.b16 %v102
  %v368 = vunpack.c.l.b16 %v103
  %v369 = vunpack.c.l.b16 %v104
  %v370 = vunpack.c.l.b16 %v105
  %v371 = vunpack.c.l.b16 %v106
  %v372 = vunpack.c.l.b16 %v107
  %v373 = vunpack.c.l.b16 %v108
  %v374 = vunpack.c.l.b16 %v109
  %v375 = vunpack.c.l.b16 %v110
  %v376 = vunpack.c.l.b16 %v111
  %v377 = vunpack.c.l.b16 %v112
  %v378 = vpack.c.b16 %v361, %v360
  %v379 = vpack.c.b16 %v363, %v362
  %v380 = vpack.c.b16 %v365, %v364
  %v381 = vpack.c.b16 %v367, %v366
  %v382 = vpack.c.b16 %v369, %v368
  %v383 = vpack.c.b16 %v371, %v370
  %v384 = vpack.c.b16 %v373, %v372
  %v385 = vpack.c.b16 %v375, %v374
  %v386 = vpack.c.b16 %v377, %v376
  %vm396 = vcmask 130048
  %v398 = vsel %vm396, %v268, 0
  %v401 = vsel %vm396, %v270, 0
  %v404 = vsel %vm396, %v272, 0
  %v407 = vsel %vm396, %v274, 0
  %v410 = vsel %vm396, %v276, 0
  %v413 = vsel %vm396, %v278, 0
  %v416 = vsel %vm396, %v280, 0
  %v419 = vsel %vm396, %v282, 0
  %v422 = vsel %vm396, %v284, 0
  %v425 = vsel %vm396, %v286, 0
  %v428 = vsel %vm396, %v288, 0
  %v431 = vsel %vm396, %v290, 0
  %v434 = vsel %vm396, %v292, 0
  %v437 = vsel %vm396, %v294, 0
  %v440 = vsel %vm396, %v296, 0
  %v443 = vsel %vm396, %v298, 0
  %v446 = vsel %vm396, %v300, 0
  %v449 = vsel %vm396, %v302, 0
  %v452 = vsel %vm396, %v304, 0
  %v455 = vsel %vm396, %v306, 0
  %v458 = vsel %vm396, %v308, 0
  %v461 = vsel %vm396, %v310, 0
  %v464 = vsel %vm396, %v312, 0
  %v467 = vsel %vm396, %v314, 0
  %v470 = vsel %vm396, %v316, 0
  %472 = vmatpush.bf16.msra.mxu0 %v385
  %473 = vmatpush.bf16.msra.mxu0 %v384
  %474 = vmatpush.bf16.msra.mxu0 %v383
  %475 = vmatpush.bf16.msra.mxu0 %v382
  %476 = vmatpush.bf16.msra.mxu0 %v381
  %477 = vmatpush.bf16.msra.mxu0 %v380
  %478 = vmatpush.bf16.msra.mxu0 %v379
  %479 = vmatpush.bf16.msra.mxu0 %v378
  %480 = vmatmul.bf16.gmra.mxu0 %v267
  %v481 = vpop.f32.mrf.mxu0
  %v482 = vadd.f32 %v115, %v481
  %v483 = vpop.f32.mrf.mxu0
  %v484 = vadd.f32 %v115, %v483
  %485 = vmatmul.bf16.gmra.mxu0 %v269
  %v486 = vpop.f32.mrf.mxu0
  %v487 = vadd.f32 %v115, %v486
  %v488 = vpop.f32.mrf.mxu0
  %v489 = vadd.f32 %v115, %v488
  %490 = vmatmul.bf16.gmra.mxu0 %v271
  %v491 = vpop.f32.mrf.mxu0
  %v492 = vadd.f32 %v115, %v491
  %v493 = vpop.f32.mrf.mxu0
  %v494 = vadd.f32 %v115, %v493
  %495 = vmatmul.bf16.gmra.mxu0 %v273
  %v496 = vpop.f32.mrf.mxu0
  %v497 = vadd.f32 %v115, %v496
  %v498 = vpop.f32.mrf.mxu0
  %v499 = vadd.f32 %v115, %v498
  %500 = vmatmul.bf16.gmra.mxu0 %v275
  %v501 = vpop.f32.mrf.mxu0
  %v502 = vadd.f32 %v115, %v501
  %v503 = vpop.f32.mrf.mxu0
  %v504 = vadd.f32 %v115, %v503
  %505 = vmatmul.bf16.gmra.mxu0 %v277
  %v506 = vpop.f32.mrf.mxu0
  %v507 = vadd.f32 %v115, %v506
  %v508 = vpop.f32.mrf.mxu0
  %v509 = vadd.f32 %v115, %v508
  %510 = vmatmul.bf16.gmra.mxu0 %v279
  %v511 = vpop.f32.mrf.mxu0
  %v512 = vadd.f32 %v115, %v511
  %v513 = vpop.f32.mrf.mxu0
  %v514 = vadd.f32 %v115, %v513
  %515 = vmatmul.bf16.gmra.mxu0 %v281
  %v516 = vpop.f32.mrf.mxu0
  %v517 = vadd.f32 %v115, %v516
  %v518 = vpop.f32.mrf.mxu0
  %v519 = vadd.f32 %v115, %v518
  %520 = vmatmul.bf16.gmra.mxu0 %v283
  %v521 = vpop.f32.mrf.mxu0
  %v522 = vadd.f32 %v115, %v521
  %v523 = vpop.f32.mrf.mxu0
  %v524 = vadd.f32 %v115, %v523
  %525 = vmatmul.bf16.gmra.mxu0 %v285
  %v526 = vpop.f32.mrf.mxu0
  %v527 = vadd.f32 %v115, %v526
  %v528 = vpop.f32.mrf.mxu0
  %v529 = vadd.f32 %v115, %v528
  %530 = vmatmul.bf16.gmra.mxu0 %v287
  %v531 = vpop.f32.mrf.mxu0
  %v532 = vadd.f32 %v115, %v531
  %v533 = vpop.f32.mrf.mxu0
  %v534 = vadd.f32 %v115, %v533
  %535 = vmatmul.bf16.gmra.mxu0 %v289
  %v536 = vpop.f32.mrf.mxu0
  %v537 = vadd.f32 %v115, %v536
  %v538 = vpop.f32.mrf.mxu0
  %v539 = vadd.f32 %v115, %v538
  %540 = vmatmul.bf16.gmra.mxu0 %v291
  %v541 = vpop.f32.mrf.mxu0
  %v542 = vadd.f32 %v115, %v541
  %v543 = vpop.f32.mrf.mxu0
  %v544 = vadd.f32 %v115, %v543
  %545 = vmatmul.bf16.gmra.mxu0 %v293
  %v546 = vpop.f32.mrf.mxu0
  %v547 = vadd.f32 %v115, %v546
  %v548 = vpop.f32.mrf.mxu0
  %v549 = vadd.f32 %v115, %v548
  %550 = vmatmul.bf16.gmra.mxu0 %v295
  %v551 = vpop.f32.mrf.mxu0
  %v552 = vadd.f32 %v115, %v551
  %v553 = vpop.f32.mrf.mxu0
  %v554 = vadd.f32 %v115, %v553
  %555 = vmatmul.bf16.gmra.mxu0 %v297
  %v556 = vpop.f32.mrf.mxu0
  %v557 = vadd.f32 %v115, %v556
  %v558 = vpop.f32.mrf.mxu0
  %v559 = vadd.f32 %v115, %v558
  %560 = vmatmul.bf16.gmra.mxu0 %v299
  %v561 = vpop.f32.mrf.mxu0
  %v562 = vadd.f32 %v115, %v561
  %v563 = vpop.f32.mrf.mxu0
  %v564 = vadd.f32 %v115, %v563
  %565 = vmatmul.bf16.gmra.mxu0 %v301
  %v566 = vpop.f32.mrf.mxu0
  %v567 = vadd.f32 %v115, %v566
  %v568 = vpop.f32.mrf.mxu0
  %v569 = vadd.f32 %v115, %v568
  %570 = vmatmul.bf16.gmra.mxu0 %v303
  %v571 = vpop.f32.mrf.mxu0
  %v572 = vadd.f32 %v115, %v571
  %v573 = vpop.f32.mrf.mxu0
  %v574 = vadd.f32 %v115, %v573
  %575 = vmatmul.bf16.gmra.mxu0 %v305
  %v576 = vpop.f32.mrf.mxu0
  %v577 = vadd.f32 %v115, %v576
  %v578 = vpop.f32.mrf.mxu0
  %v579 = vadd.f32 %v115, %v578
  %580 = vmatmul.bf16.gmra.mxu0 %v307
  %v581 = vpop.f32.mrf.mxu0
  %v582 = vadd.f32 %v115, %v581
  %v583 = vpop.f32.mrf.mxu0
  %v584 = vadd.f32 %v115, %v583
  %585 = vmatmul.bf16.gmra.mxu0 %v309
  %v586 = vpop.f32.mrf.mxu0
  %v587 = vadd.f32 %v115, %v586
  %v588 = vpop.f32.mrf.mxu0
  %v589 = vadd.f32 %v115, %v588
  %590 = vmatmul.bf16.gmra.mxu0 %v311
  %v591 = vpop.f32.mrf.mxu0
  %v592 = vadd.f32 %v115, %v591
  %v593 = vpop.f32.mrf.mxu0
  %v594 = vadd.f32 %v115, %v593
  %595 = vmatmul.bf16.gmra.mxu0 %v313
  %v596 = vpop.f32.mrf.mxu0
  %v597 = vadd.f32 %v115, %v596
  %v598 = vpop.f32.mrf.mxu0
  %v599 = vadd.f32 %v115, %v598
  %600 = vmatmul.bf16.gmra.mxu0 %v315
  %v601 = vpop.f32.mrf.mxu0
  %v602 = vadd.f32 %v115, %v601
  %v603 = vpop.f32.mrf.mxu0
  %v604 = vadd.f32 %v115, %v603
  %605 = vdwg.mxu0
  %606 = vmatpush.bf16.msra.mxu0 0
  %607 = vmatpush.bf16.msra.mxu0 0
  %608 = vmatpush.bf16.msra.mxu0 0
  %609 = vmatpush.bf16.msra.mxu0 0
  %610 = vmatpush.bf16.msra.mxu0 0
  %611 = vmatpush.bf16.msra.mxu0 0
  %612 = vmatpush.bf16.msra.mxu0 0
  %613 = vmatpush.bf16.msra.mxu0 %v386
  %614 = vmatmul.bf16.gmra.mxu0 %v398
  %v615 = vpop.f32.mrf.mxu0
  %v616 = vadd.f32 %v482, %v615
  %v617 = vpop.f32.mrf.mxu0
  %v618 = vadd.f32 %v484, %v617
  %619 = vmatmul.bf16.gmra.mxu0 %v401
  %v620 = vpop.f32.mrf.mxu0
  %v621 = vadd.f32 %v487, %v620
  %v622 = vpop.f32.mrf.mxu0
  %v623 = vadd.f32 %v489, %v622
  %624 = vmatmul.bf16.gmra.mxu0 %v404
  %v625 = vpop.f32.mrf.mxu0
  %v626 = vadd.f32 %v492, %v625
  %v627 = vpop.f32.mrf.mxu0
  %v628 = vadd.f32 %v494, %v627
  %629 = vmatmul.bf16.gmra.mxu0 %v407
  %v630 = vpop.f32.mrf.mxu0
  %v631 = vadd.f32 %v497, %v630
  %v632 = vpop.f32.mrf.mxu0
  %v633 = vadd.f32 %v499, %v632
  %634 = vmatmul.bf16.gmra.mxu0 %v410
  %v635 = vpop.f32.mrf.mxu0
  %v636 = vadd.f32 %v502, %v635
  %v637 = vpop.f32.mrf.mxu0
  %v638 = vadd.f32 %v504, %v637
  %639 = vmatmul.bf16.gmra.mxu0 %v413
  %v640 = vpop.f32.mrf.mxu0
  %v641 = vadd.f32 %v507, %v640
  %v642 = vpop.f32.mrf.mxu0
  %v643 = vadd.f32 %v509, %v642
  %644 = vmatmul.bf16.gmra.mxu0 %v416
  %v645 = vpop.f32.mrf.mxu0
  %v646 = vadd.f32 %v512, %v645
  %v647 = vpop.f32.mrf.mxu0
  %v648 = vadd.f32 %v514, %v647
  %649 = vmatmul.bf16.gmra.mxu0 %v419
  %v650 = vpop.f32.mrf.mxu0
  %v651 = vadd.f32 %v517, %v650
  %v652 = vpop.f32.mrf.mxu0
  %v653 = vadd.f32 %v519, %v652
  %654 = vmatmul.bf16.gmra.mxu0 %v422
  %v655 = vpop.f32.mrf.mxu0
  %v656 = vadd.f32 %v522, %v655
  %v657 = vpop.f32.mrf.mxu0
  %v658 = vadd.f32 %v524, %v657
  %659 = vmatmul.bf16.gmra.mxu0 %v425
  %v660 = vpop.f32.mrf.mxu0
  %v661 = vadd.f32 %v527, %v660
  %v662 = vpop.f32.mrf.mxu0
  %v663 = vadd.f32 %v529, %v662
  %664 = vmatmul.bf16.gmra.mxu0 %v428
  %v665 = vpop.f32.mrf.mxu0
  %v666 = vadd.f32 %v532, %v665
  %v667 = vpop.f32.mrf.mxu0
  %v668 = vadd.f32 %v534, %v667
  %669 = vmatmul.bf16.gmra.mxu0 %v431
  %v670 = vpop.f32.mrf.mxu0
  %v671 = vadd.f32 %v537, %v670
  %v672 = vpop.f32.mrf.mxu0
  %v673 = vadd.f32 %v539, %v672
  %674 = vmatmul.bf16.gmra.mxu0 %v434
  %v675 = vpop.f32.mrf.mxu0
  %v676 = vadd.f32 %v542, %v675
  %v677 = vpop.f32.mrf.mxu0
  %v678 = vadd.f32 %v544, %v677
  %679 = vmatmul.bf16.gmra.mxu0 %v437
  %v680 = vpop.f32.mrf.mxu0
  %v681 = vadd.f32 %v547, %v680
  %v682 = vpop.f32.mrf.mxu0
  %v683 = vadd.f32 %v549, %v682
  %684 = vmatmul.bf16.gmra.mxu0 %v440
  %v685 = vpop.f32.mrf.mxu0
  %v686 = vadd.f32 %v552, %v685
  %v687 = vpop.f32.mrf.mxu0
  %v688 = vadd.f32 %v554, %v687
  %689 = vmatmul.bf16.gmra.mxu0 %v443
  %v690 = vpop.f32.mrf.mxu0
  %v691 = vadd.f32 %v557, %v690
  %v692 = vpop.f32.mrf.mxu0
  %v693 = vadd.f32 %v559, %v692
  %694 = vmatmul.bf16.gmra.mxu0 %v446
  %v695 = vpop.f32.mrf.mxu0
  %v696 = vadd.f32 %v562, %v695
  %v697 = vpop.f32.mrf.mxu0
  %v698 = vadd.f32 %v564, %v697
  %699 = vmatmul.bf16.gmra.mxu0 %v449
  %v700 = vpop.f32.mrf.mxu0
  %v701 = vadd.f32 %v567, %v700
  %v702 = vpop.f32.mrf.mxu0
  %v703 = vadd.f32 %v569, %v702
  %704 = vmatmul.bf16.gmra.mxu0 %v452
  %v705 = vpop.f32.mrf.mxu0
  %v706 = vadd.f32 %v572, %v705
  %v707 = vpop.f32.mrf.mxu0
  %v708 = vadd.f32 %v574, %v707
  %709 = vmatmul.bf16.gmra.mxu0 %v455
  %v710 = vpop.f32.mrf.mxu0
  %v711 = vadd.f32 %v577, %v710
  %v712 = vpop.f32.mrf.mxu0
  %v713 = vadd.f32 %v579, %v712
  %714 = vmatmul.bf16.gmra.mxu0 %v458
  %v715 = vpop.f32.mrf.mxu0
  %v716 = vadd.f32 %v582, %v715
  %v717 = vpop.f32.mrf.mxu0
  %v718 = vadd.f32 %v584, %v717
  %719 = vmatmul.bf16.gmra.mxu0 %v461
  %v720 = vpop.f32.mrf.mxu0
  %v721 = vadd.f32 %v587, %v720
  %v722 = vpop.f32.mrf.mxu0
  %v723 = vadd.f32 %v589, %v722
  %724 = vmatmul.bf16.gmra.mxu0 %v464
  %v725 = vpop.f32.mrf.mxu0
  %v726 = vadd.f32 %v592, %v725
  %v727 = vpop.f32.mrf.mxu0
  %v728 = vadd.f32 %v594, %v727
  %729 = vmatmul.bf16.gmra.mxu0 %v467
  %v730 = vpop.f32.mrf.mxu0
  %v731 = vadd.f32 %v597, %v730
  %v732 = vpop.f32.mrf.mxu0
  %v733 = vadd.f32 %v599, %v732
  %734 = vmatmul.bf16.gmra.mxu0 %v470
  %v735 = vpop.f32.mrf.mxu0
  %v736 = vadd.f32 %v602, %v735
  %v737 = vpop.f32.mrf.mxu0
  %v738 = vadd.f32 %v604, %v737
  %739 = vdwg.mxu0
  %v740 = vmax.f32 %v616, 0.0
  %v741 = vmax.f32 %v618, 0.0
  %v742 = vmax.f32 %v621, 0.0
  %v743 = vmax.f32 %v623, 0.0
  %v744 = vmax.f32 %v626, 0.0
  %v745 = vmax.f32 %v628, 0.0
  %v746 = vmax.f32 %v631, 0.0
  %v747 = vmax.f32 %v633, 0.0
  %v748 = vmax.f32 %v636, 0.0
  %v749 = vmax.f32 %v638, 0.0
  %v750 = vmax.f32 %v641, 0.0
  %v751 = vmax.f32 %v643, 0.0
  %v752 = vmax.f32 %v646, 0.0
  %v753 = vmax.f32 %v648, 0.0
  %v754 = vmax.f32 %v651, 0.0
  %v755 = vmax.f32 %v653, 0.0
  %v756 = vmax.f32 %v656, 0.0
  %v757 = vmax.f32 %v658, 0.0
  %v758 = vmax.f32 %v661, 0.0
  %v759 = vmax.f32 %v663, 0.0
  %v760 = vmax.f32 %v666, 0.0
  %v761 = vmax.f32 %v668, 0.0
  %v762 = vmax.f32 %v671, 0.0
  %v763 = vmax.f32 %v673, 0.0
  %v764 = vmax.f32 %v676, 0.0
  %v765 = vmax.f32 %v678, 0.0
  %v766 = vmax.f32 %v681, 0.0
  %v767 = vmax.f32 %v683, 0.0
  %v768 = vmax.f32 %v686, 0.0
  %v769 = vmax.f32 %v688, 0.0
  %v770 = vmax.f32 %v691, 0.0
  %v771 = vmax.f32 %v693, 0.0
  %v772 = vmax.f32 %v696, 0.0
  %v773 = vmax.f32 %v698, 0.0
  %v774 = vmax.f32 %v701, 0.0
  %v775 = vmax.f32 %v703, 0.0
  %v776 = vmax.f32 %v706, 0.0
  %v777 = vmax.f32 %v708, 0.0
  %v778 = vmax.f32 %v711, 0.0
  %v779 = vmax.f32 %v713, 0.0
  %v780 = vmax.f32 %v716, 0.0
  %v781 = vmax.f32 %v718, 0.0
  %v782 = vmax.f32 %v721, 0.0
  %v783 = vmax.f32 %v723, 0.0
  %v784 = vmax.f32 %v726, 0.0
  %v785 = vmax.f32 %v728, 0.0
  %v786 = vmax.f32 %v731, 0.0
  %v787 = vmax.f32 %v733, 0.0
  %v788 = vmax.f32 %v736, 0.0
  %v789 = vmax.f32 %v738, 0.0
  %v790 = vpack.c.bf16 %v741, %v740
  %v791 = vpack.c.bf16 %v743, %v742
  %v792 = vpack.c.bf16 %v745, %v744
  %v793 = vpack.c.bf16 %v747, %v746
  %v794 = vpack.c.bf16 %v749, %v748
  %v795 = vpack.c.bf16 %v751, %v750
  %v796 = vpack.c.bf16 %v753, %v752
  %v797 = vpack.c.bf16 %v755, %v754
  %v798 = vpack.c.bf16 %v757, %v756
  %v799 = vpack.c.bf16 %v759, %v758
  %v800 = vpack.c.bf16 %v761, %v760
  %v801 = vpack.c.bf16 %v763, %v762
  %v802 = vpack.c.bf16 %v765, %v764
  %v803 = vpack.c.bf16 %v767, %v766
  %v804 = vpack.c.bf16 %v769, %v768
  %v805 = vpack.c.bf16 %v771, %v770
  %v806 = vpack.c.bf16 %v773, %v772
  %v807 = vpack.c.bf16 %v775, %v774
  %v808 = vpack.c.bf16 %v777, %v776
  %v809 = vpack.c.bf16 %v779, %v778
  %v810 = vpack.c.bf16 %v781, %v780
  %v811 = vpack.c.bf16 %v783, %v782
  %v812 = vpack.c.bf16 %v785, %v784
  %v813 = vpack.c.bf16 %v787, %v786
  %v814 = vpack.c.bf16 %v789, %v788
  %v815 = vld [vmem:[%s3] sm:$0xf]
  %v816 = vld [vmem:[%s3 + $0x4] sm:$0xf]
  %v817 = vld [vmem:[%s3 + $0x8] sm:$0xf]
  %v818 = vld [vmem:[%s3 + $0xc] sm:$0xf]
  %v819 = vld [vmem:[%s3 + $0x10] sm:$0xf]
  %v820 = vld [vmem:[%s3 + $0x14] sm:$0xf]
  %v821 = vld [vmem:[%s3 + $0x18] sm:$0xf]
  %v822 = vld [vmem:[%s3 + $0x1c] sm:$0xf]
  %v823 = vld [vmem:[%s3 + $0x20] sm:$0xf]
  %v824 = vld [vmem:[%s3 + $0x24] sm:$0xf]
  %v825 = vld [vmem:[%s3 + $0x28] sm:$0xf]
  %v826 = vld [vmem:[%s3 + $0x2c] sm:$0xf]
  %v827 = vld [vmem:[%s3 + $0x30] sm:$0xf]
  %v828 = vld [vmem:[%s3 + $0x34] sm:$0xf]
  %v829 = vld [vmem:[%s3 + $0x38] sm:$0xf]
  %v830 = vld [vmem:[%s3 + $0x3c] sm:$0xf]
  %v847 = vunpack.c.l.b16 %v815
  %v848 = vunpack.c.l.b16 %v816
  %v849 = vunpack.c.l.b16 %v817
  %v850 = vunpack.c.l.b16 %v818
  %v851 = vunpack.c.l.b16 %v819
  %v852 = vunpack.c.l.b16 %v820
  %v853 = vunpack.c.l.b16 %v821
  %v854 = vunpack.c.l.b16 %v822
  %v855 = vunpack.c.l.b16 %v823
  %v856 = vunpack.c.l.b16 %v824
  %v857 = vunpack.c.l.b16 %v825
  %v858 = vunpack.c.l.b16 %v826
  %v859 = vunpack.c.l.b16 %v827
  %v860 = vunpack.c.l.b16 %v828
  %v861 = vunpack.c.l.b16 %v829
  %v862 = vunpack.c.l.b16 %v830
  %v863 = vpack.c.b16 %v848, %v847
  %v864 = vpack.c.b16 %v850, %v849
  %v865 = vpack.c.b16 %v852, %v851
  %v866 = vpack.c.b16 %v854, %v853
  %v867 = vpack.c.b16 %v856, %v855
  %v868 = vpack.c.b16 %v858, %v857
  %v869 = vpack.c.b16 %v860, %v859
  %v870 = vpack.c.b16 %v862, %v861
  %879 = vmatpush.bf16.msra.mxu0 %v870
  %880 = vmatpush.bf16.msra.mxu0 %v869
  %881 = vmatpush.bf16.msra.mxu0 %v868
  %882 = vmatpush.bf16.msra.mxu0 %v867
  %883 = vmatpush.bf16.msra.mxu0 %v866
  %884 = vmatpush.bf16.msra.mxu0 %v865
  %885 = vmatpush.bf16.msra.mxu0 %v864
  %886 = vmatpush.bf16.msra.mxu0 %v863
  %887 = vmatmul.bf16.gmra.mxu0 %v790
  %v888 = vpop.f32.mrf.mxu0
  %v889 = vadd.f32 0.0, %v888
  %v890 = vpop.f32.mrf.mxu0
  %v891 = vadd.f32 0.0, %v890
  %892 = vmatmul.bf16.gmra.mxu0 %v791
  %v893 = vpop.f32.mrf.mxu0
  %v894 = vadd.f32 0.0, %v893
  %v895 = vpop.f32.mrf.mxu0
  %v896 = vadd.f32 0.0, %v895
  %897 = vmatmul.bf16.gmra.mxu0 %v792
  %v898 = vpop.f32.mrf.mxu0
  %v899 = vadd.f32 0.0, %v898
  %v900 = vpop.f32.mrf.mxu0
  %v901 = vadd.f32 0.0, %v900
  %902 = vmatmul.bf16.gmra.mxu0 %v793
  %v903 = vpop.f32.mrf.mxu0
  %v904 = vadd.f32 0.0, %v903
  %v905 = vpop.f32.mrf.mxu0
  %v906 = vadd.f32 0.0, %v905
  %907 = vmatmul.bf16.gmra.mxu0 %v794
  %v908 = vpop.f32.mrf.mxu0
  %v909 = vadd.f32 0.0, %v908
  %v910 = vpop.f32.mrf.mxu0
  %v911 = vadd.f32 0.0, %v910
  %912 = vmatmul.bf16.gmra.mxu0 %v795
  %v913 = vpop.f32.mrf.mxu0
  %v914 = vadd.f32 0.0, %v913
  %v915 = vpop.f32.mrf.mxu0
  %v916 = vadd.f32 0.0, %v915
  %917 = vmatmul.bf16.gmra.mxu0 %v796
  %v918 = vpop.f32.mrf.mxu0
  %v919 = vadd.f32 0.0, %v918
  %v920 = vpop.f32.mrf.mxu0
  %v921 = vadd.f32 0.0, %v920
  %922 = vmatmul.bf16.gmra.mxu0 %v797
  %v923 = vpop.f32.mrf.mxu0
  %v924 = vadd.f32 0.0, %v923
  %v925 = vpop.f32.mrf.mxu0
  %v926 = vadd.f32 0.0, %v925
  %927 = vmatmul.bf16.gmra.mxu0 %v798
  %v928 = vpop.f32.mrf.mxu0
  %v929 = vadd.f32 0.0, %v928
  %v930 = vpop.f32.mrf.mxu0
  %v931 = vadd.f32 0.0, %v930
  %932 = vmatmul.bf16.gmra.mxu0 %v799
  %v933 = vpop.f32.mrf.mxu0
  %v934 = vadd.f32 0.0, %v933
  %v935 = vpop.f32.mrf.mxu0
  %v936 = vadd.f32 0.0, %v935
  %937 = vmatmul.bf16.gmra.mxu0 %v800
  %v938 = vpop.f32.mrf.mxu0
  %v939 = vadd.f32 0.0, %v938
  %v940 = vpop.f32.mrf.mxu0
  %v941 = vadd.f32 0.0, %v940
  %942 = vmatmul.bf16.gmra.mxu0 %v801
  %v943 = vpop.f32.mrf.mxu0
  %v944 = vadd.f32 0.0, %v943
  %v945 = vpop.f32.mrf.mxu0
  %v946 = vadd.f32 0.0, %v945
  %947 = vmatmul.bf16.gmra.mxu0 %v802
  %v948 = vpop.f32.mrf.mxu0
  %v949 = vadd.f32 0.0, %v948
  %v950 = vpop.f32.mrf.mxu0
  %v951 = vadd.f32 0.0, %v950
  %952 = vmatmul.bf16.gmra.mxu0 %v803
  %v953 = vpop.f32.mrf.mxu0
  %v954 = vadd.f32 0.0, %v953
  %v955 = vpop.f32.mrf.mxu0
  %v956 = vadd.f32 0.0, %v955
  %957 = vmatmul.bf16.gmra.mxu0 %v804
  %v958 = vpop.f32.mrf.mxu0
  %v959 = vadd.f32 0.0, %v958
  %v960 = vpop.f32.mrf.mxu0
  %v961 = vadd.f32 0.0, %v960
  %962 = vmatmul.bf16.gmra.mxu0 %v805
  %v963 = vpop.f32.mrf.mxu0
  %v964 = vadd.f32 0.0, %v963
  %v965 = vpop.f32.mrf.mxu0
  %v966 = vadd.f32 0.0, %v965
  %967 = vmatmul.bf16.gmra.mxu0 %v806
  %v968 = vpop.f32.mrf.mxu0
  %v969 = vadd.f32 0.0, %v968
  %v970 = vpop.f32.mrf.mxu0
  %v971 = vadd.f32 0.0, %v970
  %972 = vmatmul.bf16.gmra.mxu0 %v807
  %v973 = vpop.f32.mrf.mxu0
  %v974 = vadd.f32 0.0, %v973
  %v975 = vpop.f32.mrf.mxu0
  %v976 = vadd.f32 0.0, %v975
  %977 = vmatmul.bf16.gmra.mxu0 %v808
  %v978 = vpop.f32.mrf.mxu0
  %v979 = vadd.f32 0.0, %v978
  %v980 = vpop.f32.mrf.mxu0
  %v981 = vadd.f32 0.0, %v980
  %982 = vmatmul.bf16.gmra.mxu0 %v809
  %v983 = vpop.f32.mrf.mxu0
  %v984 = vadd.f32 0.0, %v983
  %v985 = vpop.f32.mrf.mxu0
  %v986 = vadd.f32 0.0, %v985
  %987 = vmatmul.bf16.gmra.mxu0 %v810
  %v988 = vpop.f32.mrf.mxu0
  %v989 = vadd.f32 0.0, %v988
  %v990 = vpop.f32.mrf.mxu0
  %v991 = vadd.f32 0.0, %v990
  %992 = vmatmul.bf16.gmra.mxu0 %v811
  %v993 = vpop.f32.mrf.mxu0
  %v994 = vadd.f32 0.0, %v993
  %v995 = vpop.f32.mrf.mxu0
  %v996 = vadd.f32 0.0, %v995
  %997 = vmatmul.bf16.gmra.mxu0 %v812
  %v998 = vpop.f32.mrf.mxu0
  %v999 = vadd.f32 0.0, %v998
  %v1000 = vpop.f32.mrf.mxu0
  %v1001 = vadd.f32 0.0, %v1000
  %1002 = vmatmul.bf16.gmra.mxu0 %v813
  %v1003 = vpop.f32.mrf.mxu0
  %v1004 = vadd.f32 0.0, %v1003
  %v1005 = vpop.f32.mrf.mxu0
  %v1006 = vadd.f32 0.0, %v1005
  %1007 = vmatmul.bf16.gmra.mxu0 %v814
  %v1008 = vpop.f32.mrf.mxu0
  %v1009 = vadd.f32 0.0, %v1008
  %v1010 = vpop.f32.mrf.mxu0
  %v1011 = vadd.f32 0.0, %v1010
  %1012 = vdwg.mxu0
  %1013 = vst [vmem:[%s12] sm:$0xff] %v889
  %1014 = vst [vmem:[%s12 + $0x8] sm:$0xff] %v891
  %1015 = vst [vmem:[%s12 + $0x10] sm:$0xff] %v894
  %1016 = vst [vmem:[%s12 + $0x18] sm:$0xff] %v896
  %1017 = vst [vmem:[%s12 + $0x20] sm:$0xff] %v899
  %1018 = vst [vmem:[%s12 + $0x28] sm:$0xff] %v901
  %1019 = vst [vmem:[%s12 + $0x30] sm:$0xff] %v904
  %1020 = vst [vmem:[%s12 + $0x38] sm:$0xff] %v906
  %1021 = vst [vmem:[%s12 + $0x40] sm:$0xff] %v909
  %1022 = vst [vmem:[%s12 + $0x48] sm:$0xff] %v911
  %1023 = vst [vmem:[%s12 + $0x50] sm:$0xff] %v914
  %1024 = vst [vmem:[%s12 + $0x58] sm:$0xff] %v916
  %1025 = vst [vmem:[%s12 + $0x60] sm:$0xff] %v919
  %1026 = vst [vmem:[%s12 + $0x68] sm:$0xff] %v921
  %1027 = vst [vmem:[%s12 + $0x70] sm:$0xff] %v924
  %1028 = vst [vmem:[%s12 + $0x78] sm:$0xff] %v926
  %1029 = vst [vmem:[%s12 + $0x80] sm:$0xff] %v929
  %1030 = vst [vmem:[%s12 + $0x88] sm:$0xff] %v931
  %1031 = vst [vmem:[%s12 + $0x90] sm:$0xff] %v934
  %1032 = vst [vmem:[%s12 + $0x98] sm:$0xff] %v936
  %1033 = vst [vmem:[%s12 + $0xa0] sm:$0xff] %v939
  %1034 = vst [vmem:[%s12 + $0xa8] sm:$0xff] %v941
  %1035 = vst [vmem:[%s12 + $0xb0] sm:$0xff] %v944
  %1036 = vst [vmem:[%s12 + $0xb8] sm:$0xff] %v946
  %1037 = vst [vmem:[%s12 + $0xc0] sm:$0xff] %v949
  %1038 = vst [vmem:[%s12 + $0xc8] sm:$0xff] %v951
  %1039 = vst [vmem:[%s12 + $0xd0] sm:$0xff] %v954
  %1040 = vst [vmem:[%s12 + $0xd8] sm:$0xff] %v956
  %1041 = vst [vmem:[%s12 + $0xe0] sm:$0xff] %v959
  %1042 = vst [vmem:[%s12 + $0xe8] sm:$0xff] %v961
  %1043 = vst [vmem:[%s12 + $0xf0] sm:$0xff] %v964
  %1044 = vst [vmem:[%s12 + $0xf8] sm:$0xff] %v966
  %1045 = vst [vmem:[%s12 + $0x100] sm:$0xff] %v969
  %1046 = vst [vmem:[%s12 + $0x108] sm:$0xff] %v971
  %1047 = vst [vmem:[%s12 + $0x110] sm:$0xff] %v974
  %1048 = vst [vmem:[%s12 + $0x118] sm:$0xff] %v976
  %1049 = vst [vmem:[%s12 + $0x120] sm:$0xff] %v979
  %1050 = vst [vmem:[%s12 + $0x128] sm:$0xff] %v981
  %1051 = vst [vmem:[%s12 + $0x130] sm:$0xff] %v984
  %1052 = vst [vmem:[%s12 + $0x138] sm:$0xff] %v986
  %1053 = vst [vmem:[%s12 + $0x140] sm:$0xff] %v989
  %1054 = vst [vmem:[%s12 + $0x148] sm:$0xff] %v991
  %1055 = vst [vmem:[%s12 + $0x150] sm:$0xff] %v994
  %1056 = vst [vmem:[%s12 + $0x158] sm:$0xff] %v996
  %1057 = vst [vmem:[%s12 + $0x160] sm:$0xff] %v999
  %1058 = vst [vmem:[%s12 + $0x168] sm:$0xff] %v1001
  %1059 = vst [vmem:[%s12 + $0x170] sm:$0xff] %v1004
  %1060 = vst [vmem:[%s12 + $0x178] sm:$0xff] %v1006
  %1061 = vst [vmem:[%s12 + $0x180] sm:$0xff] %v1009
  %1062 = vst [vmem:[%s12 + $0x188] sm:$0xff] %v1011
  %v1063 = vld [vmem:[%s4] sm:$0xff]
  %v1064 = vld [vmem:[%s4 + $0x8] sm:$0xff]
  %v1065 = vld [vmem:[%s4 + $0x10] sm:$0xf]
  %v1066 = vld [vmem:[%s4 + $0x14] sm:$0xff]
  %v1067 = vld [vmem:[%s4 + $0x1c] sm:$0xff]
  %v1068 = vld [vmem:[%s4 + $0x24] sm:$0xf]
  %v1069 = vld [vmem:[%s4 + $0x28] sm:$0xff]
  %v1070 = vld [vmem:[%s4 + $0x30] sm:$0xff]
  %v1071 = vld [vmem:[%s4 + $0x38] sm:$0xf]
  %v1072 = vld [vmem:[%s4 + $0x3c] sm:$0xff]
  %v1073 = vld [vmem:[%s4 + $0x44] sm:$0xff]
  %v1074 = vld [vmem:[%s4 + $0x4c] sm:$0xf]
  %v1075 = vld [vmem:[%s4 + $0x50] sm:$0xff]
  %v1076 = vld [vmem:[%s4 + $0x58] sm:$0xff]
  %v1077 = vld [vmem:[%s4 + $0x60] sm:$0xf]
  %v1078 = vld [vmem:[%s4 + $0x64] sm:$0xff]
  %v1079 = vld [vmem:[%s4 + $0x6c] sm:$0xff]
  %v1080 = vld [vmem:[%s4 + $0x74] sm:$0xf]
  %v1081 = vld [vmem:[%s4 + $0x78] sm:$0xff]
  %v1082 = vld [vmem:[%s4 + $0x80] sm:$0xff]
  %v1083 = vld [vmem:[%s4 + $0x88] sm:$0xf]
  %v1084 = vld [vmem:[%s4 + $0x8c] sm:$0xff]
  %v1085 = vld [vmem:[%s4 + $0x94] sm:$0xff]
  %v1086 = vld [vmem:[%s4 + $0x9c] sm:$0xf]
  %v1087 = vld [vmem:[%s4 + $0xa0] sm:$0xff]
  %v1088 = vld [vmem:[%s4 + $0xa8] sm:$0xff]
  %v1089 = vld [vmem:[%s4 + $0xb0] sm:$0xf]
  %v1090 = vld [vmem:[%s4 + $0xb4] sm:$0xff]
  %v1091 = vld [vmem:[%s4 + $0xbc] sm:$0xff]
  %v1092 = vld [vmem:[%s4 + $0xc4] sm:$0xf]
  %v1093 = vld [vmem:[%s4 + $0xc8] sm:$0xff]
  %v1094 = vld [vmem:[%s4 + $0xd0] sm:$0xff]
  %v1095 = vld [vmem:[%s4 + $0xd8] sm:$0xf]
  %v1096 = vld [vmem:[%s4 + $0xdc] sm:$0xff]
  %v1097 = vld [vmem:[%s4 + $0xe4] sm:$0xff]
  %v1098 = vld [vmem:[%s4 + $0xec] sm:$0xf]
  %v1099 = vld [vmem:[%s4 + $0xf0] sm:$0xff]
  %v1100 = vld [vmem:[%s4 + $0xf8] sm:$0xff]
  %v1101 = vld [vmem:[%s4 + $0x100] sm:$0xf]
  %v1102 = vld [vmem:[%s4 + $0x104] sm:$0xff]
  %v1103 = vld [vmem:[%s4 + $0x10c] sm:$0xff]
  %v1104 = vld [vmem:[%s4 + $0x114] sm:$0xf]
  %v1105 = vld [vmem:[%s5] sm:$0xf]
  %v1106 = vld [vmem:[%s5 + $0x4] sm:$0xf]
  %v1107 = vld [vmem:[%s5 + $0x8] sm:$0xf]
  %v1108 = vld [vmem:[%s5 + $0xc] sm:$0xf]
  %v1109 = vld [vmem:[%s5 + $0x10] sm:$0xf]
  %v1110 = vld [vmem:[%s5 + $0x14] sm:$0xf]
  %v1111 = vld [vmem:[%s5 + $0x18] sm:$0xf]
  %v1112 = vld [vmem:[%s5 + $0x1c] sm:$0xf]
  %v1113 = vld [vmem:[%s5 + $0x20] sm:$0xf]
  %v1114 = vld [vmem:[%s5 + $0x24] sm:$0xf]
  %v1115 = vld [vmem:[%s5 + $0x28] sm:$0xf]
  %v1116 = vld [vmem:[%s5 + $0x2c] sm:$0xf]
  %v1117 = vld [vmem:[%s5 + $0x30] sm:$0xf]
  %v1118 = vld [vmem:[%s5 + $0x34] sm:$0xf]
  %v1119 = vld [vmem:[%s5 + $0x38] sm:$0xf]
  %v1120 = vld [vmem:[%s5 + $0x3c] sm:$0xf]
  %v1121 = vld [vmem:[%s5 + $0x40] sm:$0xf]
  %v1122 = vld [vmem:[%s5 + $0x44] sm:$0xf]
  %v1123 = vld [vmem:[%s5 + $0x48] sm:$0xf]
  %v1124 = vld [vmem:[%s5 + $0x4c] sm:$0xf]
  %v1125 = vld [vmem:[%s5 + $0x50] sm:$0xf]
  %v1126 = vld [vmem:[%s5 + $0x54] sm:$0xf]
  %v1127 = vld [vmem:[%s5 + $0x58] sm:$0xf]
  %v1128 = vld [vmem:[%s5 + $0x5c] sm:$0xf]
  %v1129 = vld [vmem:[%s5 + $0x60] sm:$0xf]
  %v1130 = vld [vmem:[%s5 + $0x64] sm:$0xf]
  %v1131 = vld [vmem:[%s5 + $0x68] sm:$0xf]
  %v1132 = vld [vmem:[%s5 + $0x6c] sm:$0xf]
  %v1133 = vld [vmem:[%s5 + $0x70] sm:$0xf]
  %v1134 = vld [vmem:[%s5 + $0x74] sm:$0xf]
  %v1135 = vld [vmem:[%s5 + $0x78] sm:$0xf]
  %v1136 = vld [vmem:[%s5 + $0x7c] sm:$0xf]
  %v1137 = vld [vmem:[%s5 + $0x80] sm:$0xf]
  %v1138 = vld [vmem:[%s5 + $0x84] sm:$0xf]
  %v1139 = vld [vmem:[%s5 + $0x88] sm:$0xf]
  %v1140 = vld [vmem:[%s5 + $0x8c] sm:$0xf]
  %v1141 = vld [vmem:[%s5 + $0x90] sm:$0xf]
  %v1142 = vld [vmem:[%s5 + $0x94] sm:$0xf]
  %v1143 = vld [vmem:[%s5 + $0x98] sm:$0xf]
  %v1144 = vld [vmem:[%s5 + $0x9c] sm:$0xf]
  %v1145 = vld [vmem:[%s5 + $0xa0] sm:$0xf]
  %v1146 = vld [vmem:[%s5 + $0xa4] sm:$0xf]
  %v1147 = vld [vmem:[%s5 + $0xa8] sm:$0xf]
  %v1148 = vld [vmem:[%s5 + $0xac] sm:$0xf]
  %v1149 = vld [vmem:[%s5 + $0xb0] sm:$0xf]
  %v1150 = vld [vmem:[%s5 + $0xb4] sm:$0xf]
  %v1151 = vld [vmem:[%s5 + $0xb8] sm:$0xf]
  %v1152 = vld [vmem:[%s5 + $0xbc] sm:$0xf]
  %v1153 = vld [vmem:[%s5 + $0xc0] sm:$0xf]
  %v1154 = vld [vmem:[%s5 + $0xc4] sm:$0xf]
  %v1155 = vld [vmem:[%s5 + $0xc8] sm:$0xf]
  %v1156 = vld [vmem:[%s5 + $0xcc] sm:$0xf]
  %v1157 = vld [vmem:[%s5 + $0xd0] sm:$0xf]
  %v1158 = vld [vmem:[%s5 + $0xd4] sm:$0xf]
  %v1159 = vld [vmem:[%s5 + $0xd8] sm:$0xf]
  %v1160 = vld [vmem:[%s5 + $0xdc] sm:$0xf]
  %v1161 = vld [vmem:[%s5 + $0xe0] sm:$0xf]
  %v1162 = vld [vmem:[%s5 + $0xe4] sm:$0xf]
  %v1163 = vld [vmem:[%s5 + $0xe8] sm:$0xf]
  %v1164 = vld [vmem:[%s5 + $0xec] sm:$0xf]
  %v1165 = vld [vmem:[%s5 + $0xf0] sm:$0xf]
  %v1166 = vld [vmem:[%s5 + $0xf4] sm:$0xf]
  %v1167 = vld [vmem:[%s5 + $0xf8] sm:$0xf]
  %v1168 = vld [vmem:[%s5 + $0xfc] sm:$0xf]
  %v1169 = vld [vmem:[%s5 + $0x100] sm:$0xf]
  %v1170 = vld [vmem:[%s5 + $0x104] sm:$0xf]
  %v1171 = vld [vmem:[%s5 + $0x108] sm:$0xf]
  %v1172 = vld [vmem:[%s5 + $0x10c] sm:$0xf]
  %v1173 = vld [vmem:[%s5 + $0x110] sm:$0xf]
  %v1174 = vld [vmem:[%s5 + $0x114] sm:$0xf]
  %v1175 = vld [vmem:[%s5 + $0x118] sm:$0xf]
  %v1176 = vld [vmem:[%s5 + $0x11c] sm:$0xf]
  %v1177 = vld [vmem:[%s6] sm:$0x1]
  %v1179 = vperm.slane %v1177, 0
  %v1223 = vunpack.c.l.b16 %v1063
  %v1224 = vunpack.c.h.b16 %v1063
  %v1225 = vunpack.c.l.b16 %v1064
  %v1226 = vunpack.c.h.b16 %v1064
  %v1227 = vunpack.c.l.b16 %v1065
  %v1228 = vunpack.c.l.b16 %v1066
  %v1229 = vunpack.c.h.b16 %v1066
  %v1230 = vunpack.c.l.b16 %v1067
  %v1231 = vunpack.c.h.b16 %v1067
  %v1232 = vunpack.c.l.b16 %v1068
  %v1233 = vunpack.c.l.b16 %v1069
  %v1234 = vunpack.c.h.b16 %v1069
  %v1235 = vunpack.c.l.b16 %v1070
  %v1236 = vunpack.c.h.b16 %v1070
  %v1237 = vunpack.c.l.b16 %v1071
  %v1238 = vunpack.c.l.b16 %v1072
  %v1239 = vunpack.c.h.b16 %v1072
  %v1240 = vunpack.c.l.b16 %v1073
  %v1241 = vunpack.c.h.b16 %v1073
  %v1242 = vunpack.c.l.b16 %v1074
  %v1243 = vunpack.c.l.b16 %v1075
  %v1244 = vunpack.c.h.b16 %v1075
  %v1245 = vunpack.c.l.b16 %v1076
  %v1246 = vunpack.c.h.b16 %v1076
  %v1247 = vunpack.c.l.b16 %v1077
  %v1248 = vunpack.c.l.b16 %v1078
  %v1249 = vunpack.c.h.b16 %v1078
  %v1250 = vunpack.c.l.b16 %v1079
  %v1251 = vunpack.c.h.b16 %v1079
  %v1252 = vunpack.c.l.b16 %v1080
  %v1253 = vunpack.c.l.b16 %v1081
  %v1254 = vunpack.c.h.b16 %v1081
  %v1255 = vunpack.c.l.b16 %v1082
  %v1256 = vunpack.c.h.b16 %v1082
  %v1257 = vunpack.c.l.b16 %v1083
  %v1258 = vunpack.c.l.b16 %v1084
  %v1259 = vunpack.c.h.b16 %v1084
  %v1260 = vunpack.c.l.b16 %v1085
  %v1261 = vunpack.c.h.b16 %v1085
  %v1262 = vunpack.c.l.b16 %v1086
  %v1263 = vunpack.c.l.b16 %v1087
  %v1264 = vunpack.c.h.b16 %v1087
  %v1265 = vunpack.c.l.b16 %v1088
  %v1266 = vunpack.c.h.b16 %v1088
  %v1267 = vunpack.c.l.b16 %v1089
  %v1268 = vunpack.c.l.b16 %v1090
  %v1269 = vunpack.c.h.b16 %v1090
  %v1270 = vunpack.c.l.b16 %v1091
  %v1271 = vunpack.c.h.b16 %v1091
  %v1272 = vunpack.c.l.b16 %v1092
  %v1273 = vunpack.c.l.b16 %v1093
  %v1274 = vunpack.c.h.b16 %v1093
  %v1275 = vunpack.c.l.b16 %v1094
  %v1276 = vunpack.c.h.b16 %v1094
  %v1277 = vunpack.c.l.b16 %v1095
  %v1278 = vunpack.c.l.b16 %v1096
  %v1279 = vunpack.c.h.b16 %v1096
  %v1280 = vunpack.c.l.b16 %v1097
  %v1281 = vunpack.c.h.b16 %v1097
  %v1282 = vunpack.c.l.b16 %v1098
  %v1283 = vunpack.c.l.b16 %v1099
  %v1284 = vunpack.c.h.b16 %v1099
  %v1285 = vunpack.c.l.b16 %v1100
  %v1286 = vunpack.c.h.b16 %v1100
  %v1287 = vunpack.c.l.b16 %v1101
  %v1288 = vunpack.c.l.b16 %v1102
  %v1289 = vunpack.c.h.b16 %v1102
  %v1290 = vunpack.c.l.b16 %v1103
  %v1291 = vunpack.c.h.b16 %v1103
  %v1292 = vunpack.c.l.b16 %v1104
  %v1293 = vpack.c.b16 %v1228, %v1223
  %v1294 = vpack.c.b16 %v1229, %v1224
  %v1295 = vpack.c.b16 %v1230, %v1225
  %v1296 = vpack.c.b16 %v1231, %v1226
  %v1297 = vpack.c.b16 %v1232, %v1227
  %v1298 = vpack.c.b16 %v1238, %v1233
  %v1299 = vpack.c.b16 %v1239, %v1234
  %v1300 = vpack.c.b16 %v1240, %v1235
  %v1301 = vpack.c.b16 %v1241, %v1236
  %v1302 = vpack.c.b16 %v1242, %v1237
  %v1303 = vpack.c.b16 %v1248, %v1243
  %v1304 = vpack.c.b16 %v1249, %v1244
  %v1305 = vpack.c.b16 %v1250, %v1245
  %v1306 = vpack.c.b16 %v1251, %v1246
  %v1307 = vpack.c.b16 %v1252, %v1247
  %v1308 = vpack.c.b16 %v1258, %v1253
  %v1309 = vpack.c.b16 %v1259, %v1254
  %v1310 = vpack.c.b16 %v1260, %v1255
  %v1311 = vpack.c.b16 %v1261, %v1256
  %v1312 = vpack.c.b16 %v1262, %v1257
  %v1313 = vpack.c.b16 %v1268, %v1263
  %v1314 = vpack.c.b16 %v1269, %v1264
  %v1315 = vpack.c.b16 %v1270, %v1265
  %v1316 = vpack.c.b16 %v1271, %v1266
  %v1317 = vpack.c.b16 %v1272, %v1267
  %v1318 = vpack.c.b16 %v1278, %v1273
  %v1319 = vpack.c.b16 %v1279, %v1274
  %v1320 = vpack.c.b16 %v1280, %v1275
  %v1321 = vpack.c.b16 %v1281, %v1276
  %v1322 = vpack.c.b16 %v1282, %v1277
  %v1323 = vpack.c.b16 %v1288, %v1283
  %v1324 = vpack.c.b16 %v1289, %v1284
  %v1325 = vpack.c.b16 %v1290, %v1285
  %v1326 = vpack.c.b16 %v1291, %v1286
  %v1327 = vpack.c.b16 %v1292, %v1287
  %v1428 = vunpack.c.l.b16 %v1105
  %v1429 = vunpack.c.l.b16 %v1106
  %v1430 = vunpack.c.l.b16 %v1107
  %v1431 = vunpack.c.l.b16 %v1108
  %v1432 = vunpack.c.l.b16 %v1109
  %v1433 = vunpack.c.l.b16 %v1110
  %v1434 = vunpack.c.l.b16 %v1111
  %v1435 = vunpack.c.l.b16 %v1112
  %v1436 = vunpack.c.l.b16 %v1113
  %v1437 = vunpack.c.l.b16 %v1114
  %v1438 = vunpack.c.l.b16 %v1115
  %v1439 = vunpack.c.l.b16 %v1116
  %v1440 = vunpack.c.l.b16 %v1117
  %v1441 = vunpack.c.l.b16 %v1118
  %v1442 = vunpack.c.l.b16 %v1119
  %v1443 = vunpack.c.l.b16 %v1120
  %v1444 = vunpack.c.l.b16 %v1121
  %v1445 = vunpack.c.l.b16 %v1122
  %v1446 = vunpack.c.l.b16 %v1123
  %v1447 = vunpack.c.l.b16 %v1124
  %v1448 = vunpack.c.l.b16 %v1125
  %v1449 = vunpack.c.l.b16 %v1126
  %v1450 = vunpack.c.l.b16 %v1127
  %v1451 = vunpack.c.l.b16 %v1128
  %v1452 = vunpack.c.l.b16 %v1129
  %v1453 = vunpack.c.l.b16 %v1130
  %v1454 = vunpack.c.l.b16 %v1131
  %v1455 = vunpack.c.l.b16 %v1132
  %v1456 = vunpack.c.l.b16 %v1133
  %v1457 = vunpack.c.l.b16 %v1134
  %v1458 = vunpack.c.l.b16 %v1135
  %v1459 = vunpack.c.l.b16 %v1136
  %v1460 = vunpack.c.l.b16 %v1137
  %v1461 = vunpack.c.l.b16 %v1138
  %v1462 = vunpack.c.l.b16 %v1139
  %v1463 = vunpack.c.l.b16 %v1140
  %v1464 = vunpack.c.l.b16 %v1141
  %v1465 = vunpack.c.l.b16 %v1142
  %v1466 = vunpack.c.l.b16 %v1143
  %v1467 = vunpack.c.l.b16 %v1144
  %v1468 = vunpack.c.l.b16 %v1145
  %v1469 = vunpack.c.l.b16 %v1146
  %v1470 = vunpack.c.l.b16 %v1147
  %v1471 = vunpack.c.l.b16 %v1148
  %v1472 = vunpack.c.l.b16 %v1149
  %v1473 = vunpack.c.l.b16 %v1150
  %v1474 = vunpack.c.l.b16 %v1151
  %v1475 = vunpack.c.l.b16 %v1152
  %v1476 = vunpack.c.l.b16 %v1153
  %v1477 = vunpack.c.l.b16 %v1154
  %v1478 = vunpack.c.l.b16 %v1155
  %v1479 = vunpack.c.l.b16 %v1156
  %v1480 = vunpack.c.l.b16 %v1157
  %v1481 = vunpack.c.l.b16 %v1158
  %v1482 = vunpack.c.l.b16 %v1159
  %v1483 = vunpack.c.l.b16 %v1160
  %v1484 = vunpack.c.l.b16 %v1161
  %v1485 = vunpack.c.l.b16 %v1162
  %v1486 = vunpack.c.l.b16 %v1163
  %v1487 = vunpack.c.l.b16 %v1164
  %v1488 = vunpack.c.l.b16 %v1165
  %v1489 = vunpack.c.l.b16 %v1166
  %v1490 = vunpack.c.l.b16 %v1167
  %v1491 = vunpack.c.l.b16 %v1168
  %v1492 = vunpack.c.l.b16 %v1169
  %v1493 = vunpack.c.l.b16 %v1170
  %v1494 = vunpack.c.l.b16 %v1171
  %v1495 = vunpack.c.l.b16 %v1172
  %v1496 = vunpack.c.l.b16 %v1173
  %v1497 = vunpack.c.l.b16 %v1174
  %v1498 = vunpack.c.l.b16 %v1175
  %v1499 = vunpack.c.l.b16 %v1176
  %v1500 = vpack.c.b16 %v1429, %v1428
  %v1501 = vpack.c.b16 %v1431, %v1430
  %v1502 = vpack.c.b16 %v1433, %v1432
  %v1503 = vpack.c.b16 %v1435, %v1434
  %v1504 = vpack.c.b16 %v1437, %v1436
  %v1505 = vpack.c.b16 %v1439, %v1438
  %v1506 = vpack.c.b16 %v1441, %v1440
  %v1507 = vpack.c.b16 %v1443, %v1442
  %v1508 = vpack.c.b16 %v1445, %v1444
  %v1509 = vpack.c.b16 %v1447, %v1446
  %v1510 = vpack.c.b16 %v1449, %v1448
  %v1511 = vpack.c.b16 %v1451, %v1450
  %v1512 = vpack.c.b16 %v1453, %v1452
  %v1513 = vpack.c.b16 %v1455, %v1454
  %v1514 = vpack.c.b16 %v1457, %v1456
  %v1515 = vpack.c.b16 %v1459, %v1458
  %v1516 = vpack.c.b16 %v1461, %v1460
  %v1517 = vpack.c.b16 %v1463, %v1462
  %v1518 = vpack.c.b16 %v1465, %v1464
  %v1519 = vpack.c.b16 %v1467, %v1466
  %v1520 = vpack.c.b16 %v1469, %v1468
  %v1521 = vpack.c.b16 %v1471, %v1470
  %v1522 = vpack.c.b16 %v1473, %v1472
  %v1523 = vpack.c.b16 %v1475, %v1474
  %v1524 = vpack.c.b16 %v1477, %v1476
  %v1525 = vpack.c.b16 %v1479, %v1478
  %v1526 = vpack.c.b16 %v1481, %v1480
  %v1527 = vpack.c.b16 %v1483, %v1482
  %v1528 = vpack.c.b16 %v1485, %v1484
  %v1529 = vpack.c.b16 %v1487, %v1486
  %v1530 = vpack.c.b16 %v1489, %v1488
  %v1531 = vpack.c.b16 %v1491, %v1490
  %v1532 = vpack.c.b16 %v1493, %v1492
  %v1533 = vpack.c.b16 %v1495, %v1494
  %v1534 = vpack.c.b16 %v1497, %v1496
  %v1535 = vpack.c.b16 %v1499, %v1498
  %vm1572 = vcmask 523264
  %v1574 = vsel %vm1572, %v1297, 0
  %v1577 = vsel %vm1572, %v1302, 0
  %v1580 = vsel %vm1572, %v1307, 0
  %v1583 = vsel %vm1572, %v1312, 0
  %v1586 = vsel %vm1572, %v1317, 0
  %v1589 = vsel %vm1572, %v1322, 0
  %v1592 = vsel %vm1572, %v1327, 0
  %1594 = vmatpush.bf16.msra.mxu0 %v1507
  %1595 = vmatpush.bf16.msra.mxu0 %v1506
  %1596 = vmatpush.bf16.msra.mxu0 %v1505
  %1597 = vmatpush.bf16.msra.mxu0 %v1504
  %1598 = vmatpush.bf16.msra.mxu0 %v1503
  %1599 = vmatpush.bf16.msra.mxu0 %v1502
  %1600 = vmatpush.bf16.msra.mxu0 %v1501
  %1601 = vmatpush.bf16.msra.mxu0 %v1500
  %1602 = vmatmul.bf16.gmra.mxu0 %v1293
  %v1603 = vpop.f32.mrf.mxu0
  %v1604 = vadd.f32 %v1179, %v1603
  %v1605 = vpop.f32.mrf.mxu0
  %v1606 = vadd.f32 %v1179, %v1605
  %1607 = vmatmul.bf16.gmra.mxu0 %v1298
  %v1608 = vpop.f32.mrf.mxu0
  %v1609 = vadd.f32 %v1179, %v1608
  %v1610 = vpop.f32.mrf.mxu0
  %v1611 = vadd.f32 %v1179, %v1610
  %1612 = vmatmul.bf16.gmra.mxu0 %v1303
  %v1613 = vpop.f32.mrf.mxu0
  %v1614 = vadd.f32 %v1179, %v1613
  %v1615 = vpop.f32.mrf.mxu0
  %v1616 = vadd.f32 %v1179, %v1615
  %1617 = vmatmul.bf16.gmra.mxu0 %v1308
  %v1618 = vpop.f32.mrf.mxu0
  %v1619 = vadd.f32 %v1179, %v1618
  %v1620 = vpop.f32.mrf.mxu0
  %v1621 = vadd.f32 %v1179, %v1620
  %1622 = vmatmul.bf16.gmra.mxu0 %v1313
  %v1623 = vpop.f32.mrf.mxu0
  %v1624 = vadd.f32 %v1179, %v1623
  %v1625 = vpop.f32.mrf.mxu0
  %v1626 = vadd.f32 %v1179, %v1625
  %1627 = vmatmul.bf16.gmra.mxu0 %v1318
  %v1628 = vpop.f32.mrf.mxu0
  %v1629 = vadd.f32 %v1179, %v1628
  %v1630 = vpop.f32.mrf.mxu0
  %v1631 = vadd.f32 %v1179, %v1630
  %1632 = vmatmul.bf16.gmra.mxu0 %v1323
  %v1633 = vpop.f32.mrf.mxu0
  %v1634 = vadd.f32 %v1179, %v1633
  %v1635 = vpop.f32.mrf.mxu0
  %v1636 = vadd.f32 %v1179, %v1635
  %1637 = vdwg.mxu0
  %1638 = vmatpush.bf16.msra.mxu0 %v1515
  %1639 = vmatpush.bf16.msra.mxu0 %v1514
  %1640 = vmatpush.bf16.msra.mxu0 %v1513
  %1641 = vmatpush.bf16.msra.mxu0 %v1512
  %1642 = vmatpush.bf16.msra.mxu0 %v1511
  %1643 = vmatpush.bf16.msra.mxu0 %v1510
  %1644 = vmatpush.bf16.msra.mxu0 %v1509
  %1645 = vmatpush.bf16.msra.mxu0 %v1508
  %1646 = vmatmul.bf16.gmra.mxu0 %v1294
  %v1647 = vpop.f32.mrf.mxu0
  %v1648 = vadd.f32 %v1604, %v1647
  %v1649 = vpop.f32.mrf.mxu0
  %v1650 = vadd.f32 %v1606, %v1649
  %1651 = vmatmul.bf16.gmra.mxu0 %v1299
  %v1652 = vpop.f32.mrf.mxu0
  %v1653 = vadd.f32 %v1609, %v1652
  %v1654 = vpop.f32.mrf.mxu0
  %v1655 = vadd.f32 %v1611, %v1654
  %1656 = vmatmul.bf16.gmra.mxu0 %v1304
  %v1657 = vpop.f32.mrf.mxu0
  %v1658 = vadd.f32 %v1614, %v1657
  %v1659 = vpop.f32.mrf.mxu0
  %v1660 = vadd.f32 %v1616, %v1659
  %1661 = vmatmul.bf16.gmra.mxu0 %v1309
  %v1662 = vpop.f32.mrf.mxu0
  %v1663 = vadd.f32 %v1619, %v1662
  %v1664 = vpop.f32.mrf.mxu0
  %v1665 = vadd.f32 %v1621, %v1664
  %1666 = vmatmul.bf16.gmra.mxu0 %v1314
  %v1667 = vpop.f32.mrf.mxu0
  %v1668 = vadd.f32 %v1624, %v1667
  %v1669 = vpop.f32.mrf.mxu0
  %v1670 = vadd.f32 %v1626, %v1669
  %1671 = vmatmul.bf16.gmra.mxu0 %v1319
  %v1672 = vpop.f32.mrf.mxu0
  %v1673 = vadd.f32 %v1629, %v1672
  %v1674 = vpop.f32.mrf.mxu0
  %v1675 = vadd.f32 %v1631, %v1674
  %1676 = vmatmul.bf16.gmra.mxu0 %v1324
  %v1677 = vpop.f32.mrf.mxu0
  %v1678 = vadd.f32 %v1634, %v1677
  %v1679 = vpop.f32.mrf.mxu0
  %v1680 = vadd.f32 %v1636, %v1679
  %1681 = vdwg.mxu0
  %1682 = vmatpush.bf16.msra.mxu0 %v1523
  %1683 = vmatpush.bf16.msra.mxu0 %v1522
  %1684 = vmatpush.bf16.msra.mxu0 %v1521
  %1685 = vmatpush.bf16.msra.mxu0 %v1520
  %1686 = vmatpush.bf16.msra.mxu0 %v1519
  %1687 = vmatpush.bf16.msra.mxu0 %v1518
  %1688 = vmatpush.bf16.msra.mxu0 %v1517
  %1689 = vmatpush.bf16.msra.mxu0 %v1516
  %1690 = vmatmul.bf16.gmra.mxu0 %v1295
  %v1691 = vpop.f32.mrf.mxu0
  %v1692 = vadd.f32 %v1648, %v1691
  %v1693 = vpop.f32.mrf.mxu0
  %v1694 = vadd.f32 %v1650, %v1693
  %1695 = vmatmul.bf16.gmra.mxu0 %v1300
  %v1696 = vpop.f32.mrf.mxu0
  %v1697 = vadd.f32 %v1653, %v1696
  %v1698 = vpop.f32.mrf.mxu0
  %v1699 = vadd.f32 %v1655, %v1698
  %1700 = vmatmul.bf16.gmra.mxu0 %v1305
  %v1701 = vpop.f32.mrf.mxu0
  %v1702 = vadd.f32 %v1658, %v1701
  %v1703 = vpop.f32.mrf.mxu0
  %v1704 = vadd.f32 %v1660, %v1703
  %1705 = vmatmul.bf16.gmra.mxu0 %v1310
  %v1706 = vpop.f32.mrf.mxu0
  %v1707 = vadd.f32 %v1663, %v1706
  %v1708 = vpop.f32.mrf.mxu0
  %v1709 = vadd.f32 %v1665, %v1708
  %1710 = vmatmul.bf16.gmra.mxu0 %v1315
  %v1711 = vpop.f32.mrf.mxu0
  %v1712 = vadd.f32 %v1668, %v1711
  %v1713 = vpop.f32.mrf.mxu0
  %v1714 = vadd.f32 %v1670, %v1713
  %1715 = vmatmul.bf16.gmra.mxu0 %v1320
  %v1716 = vpop.f32.mrf.mxu0
  %v1717 = vadd.f32 %v1673, %v1716
  %v1718 = vpop.f32.mrf.mxu0
  %v1719 = vadd.f32 %v1675, %v1718
  %1720 = vmatmul.bf16.gmra.mxu0 %v1325
  %v1721 = vpop.f32.mrf.mxu0
  %v1722 = vadd.f32 %v1678, %v1721
  %v1723 = vpop.f32.mrf.mxu0
  %v1724 = vadd.f32 %v1680, %v1723
  %1725 = vdwg.mxu0
  %1726 = vmatpush.bf16.msra.mxu0 %v1531
  %1727 = vmatpush.bf16.msra.mxu0 %v1530
  %1728 = vmatpush.bf16.msra.mxu0 %v1529
  %1729 = vmatpush.bf16.msra.mxu0 %v1528
  %1730 = vmatpush.bf16.msra.mxu0 %v1527
  %1731 = vmatpush.bf16.msra.mxu0 %v1526
  %1732 = vmatpush.bf16.msra.mxu0 %v1525
  %1733 = vmatpush.bf16.msra.mxu0 %v1524
  %1734 = vmatmul.bf16.gmra.mxu0 %v1296
  %v1735 = vpop.f32.mrf.mxu0
  %v1736 = vadd.f32 %v1692, %v1735
  %v1737 = vpop.f32.mrf.mxu0
  %v1738 = vadd.f32 %v1694, %v1737
  %1739 = vmatmul.bf16.gmra.mxu0 %v1301
  %v1740 = vpop.f32.mrf.mxu0
  %v1741 = vadd.f32 %v1697, %v1740
  %v1742 = vpop.f32.mrf.mxu0
  %v1743 = vadd.f32 %v1699, %v1742
  %1744 = vmatmul.bf16.gmra.mxu0 %v1306
  %v1745 = vpop.f32.mrf.mxu0
  %v1746 = vadd.f32 %v1702, %v1745
  %v1747 = vpop.f32.mrf.mxu0
  %v1748 = vadd.f32 %v1704, %v1747
  %1749 = vmatmul.bf16.gmra.mxu0 %v1311
  %v1750 = vpop.f32.mrf.mxu0
  %v1751 = vadd.f32 %v1707, %v1750
  %v1752 = vpop.f32.mrf.mxu0
  %v1753 = vadd.f32 %v1709, %v1752
  %1754 = vmatmul.bf16.gmra.mxu0 %v1316
  %v1755 = vpop.f32.mrf.mxu0
  %v1756 = vadd.f32 %v1712, %v1755
  %v1757 = vpop.f32.mrf.mxu0
  %v1758 = vadd.f32 %v1714, %v1757
  %1759 = vmatmul.bf16.gmra.mxu0 %v1321
  %v1760 = vpop.f32.mrf.mxu0
  %v1761 = vadd.f32 %v1717, %v1760
  %v1762 = vpop.f32.mrf.mxu0
  %v1763 = vadd.f32 %v1719, %v1762
  %1764 = vmatmul.bf16.gmra.mxu0 %v1326
  %v1765 = vpop.f32.mrf.mxu0
  %v1766 = vadd.f32 %v1722, %v1765
  %v1767 = vpop.f32.mrf.mxu0
  %v1768 = vadd.f32 %v1724, %v1767
  %1769 = vdwg.mxu0
  %1770 = vmatpush.bf16.msra.mxu0 0
  %1771 = vmatpush.bf16.msra.mxu0 0
  %1772 = vmatpush.bf16.msra.mxu0 0
  %1773 = vmatpush.bf16.msra.mxu0 0
  %1774 = vmatpush.bf16.msra.mxu0 %v1535
  %1775 = vmatpush.bf16.msra.mxu0 %v1534
  %1776 = vmatpush.bf16.msra.mxu0 %v1533
  %1777 = vmatpush.bf16.msra.mxu0 %v1532
  %1778 = vmatmul.bf16.gmra.mxu0 %v1574
  %v1779 = vpop.f32.mrf.mxu0
  %v1780 = vadd.f32 %v1736, %v1779
  %v1781 = vpop.f32.mrf.mxu0
  %v1782 = vadd.f32 %v1738, %v1781
  %1783 = vmatmul.bf16.gmra.mxu0 %v1577
  %v1784 = vpop.f32.mrf.mxu0
  %v1785 = vadd.f32 %v1741, %v1784
  %v1786 = vpop.f32.mrf.mxu0
  %v1787 = vadd.f32 %v1743, %v1786
  %1788 = vmatmul.bf16.gmra.mxu0 %v1580
  %v1789 = vpop.f32.mrf.mxu0
  %v1790 = vadd.f32 %v1746, %v1789
  %v1791 = vpop.f32.mrf.mxu0
  %v1792 = vadd.f32 %v1748, %v1791
  %1793 = vmatmul.bf16.gmra.mxu0 %v1583
  %v1794 = vpop.f32.mrf.mxu0
  %v1795 = vadd.f32 %v1751, %v1794
  %v1796 = vpop.f32.mrf.mxu0
  %v1797 = vadd.f32 %v1753, %v1796
  %1798 = vmatmul.bf16.gmra.mxu0 %v1586
  %v1799 = vpop.f32.mrf.mxu0
  %v1800 = vadd.f32 %v1756, %v1799
  %v1801 = vpop.f32.mrf.mxu0
  %v1802 = vadd.f32 %v1758, %v1801
  %1803 = vmatmul.bf16.gmra.mxu0 %v1589
  %v1804 = vpop.f32.mrf.mxu0
  %v1805 = vadd.f32 %v1761, %v1804
  %v1806 = vpop.f32.mrf.mxu0
  %v1807 = vadd.f32 %v1763, %v1806
  %1808 = vmatmul.bf16.gmra.mxu0 %v1592
  %v1809 = vpop.f32.mrf.mxu0
  %v1810 = vadd.f32 %v1766, %v1809
  %v1811 = vpop.f32.mrf.mxu0
  %v1812 = vadd.f32 %v1768, %v1811
  %1813 = vdwg.mxu0
  %v1814 = vmax.f32 %v1780, 0.0
  %v1815 = vmax.f32 %v1782, 0.0
  %v1816 = vmax.f32 %v1785, 0.0
  %v1817 = vmax.f32 %v1787, 0.0
  %v1818 = vmax.f32 %v1790, 0.0
  %v1819 = vmax.f32 %v1792, 0.0
  %v1820 = vmax.f32 %v1795, 0.0
  %v1821 = vmax.f32 %v1797, 0.0
  %v1822 = vmax.f32 %v1800, 0.0
  %v1823 = vmax.f32 %v1802, 0.0
  %v1824 = vmax.f32 %v1805, 0.0
  %v1825 = vmax.f32 %v1807, 0.0
  %v1826 = vmax.f32 %v1810, 0.0
  %v1827 = vmax.f32 %v1812, 0.0
  %v1828 = vpack.c.bf16 %v1815, %v1814
  %v1829 = vpack.c.bf16 %v1817, %v1816
  %v1830 = vpack.c.bf16 %v1819, %v1818
  %v1831 = vpack.c.bf16 %v1821, %v1820
  %v1832 = vpack.c.bf16 %v1823, %v1822
  %v1833 = vpack.c.bf16 %v1825, %v1824
  %v1834 = vpack.c.bf16 %v1827, %v1826
  %v1835 = vld [vmem:[%s7] sm:$0xf]
  %v1836 = vld [vmem:[%s7 + $0x4] sm:$0xf]
  %v1837 = vld [vmem:[%s7 + $0x8] sm:$0xf]
  %v1838 = vld [vmem:[%s7 + $0xc] sm:$0xf]
  %v1839 = vld [vmem:[%s7 + $0x10] sm:$0xf]
  %v1840 = vld [vmem:[%s7 + $0x14] sm:$0xf]
  %v1841 = vld [vmem:[%s7 + $0x18] sm:$0xf]
  %v1842 = vld [vmem:[%s7 + $0x1c] sm:$0xf]
  %v1843 = vld [vmem:[%s7 + $0x20] sm:$0xf]
  %v1844 = vld [vmem:[%s7 + $0x24] sm:$0xf]
  %v1845 = vld [vmem:[%s7 + $0x28] sm:$0xf]
  %v1846 = vld [vmem:[%s7 + $0x2c] sm:$0xf]
  %v1847 = vld [vmem:[%s7 + $0x30] sm:$0xf]
  %v1848 = vld [vmem:[%s7 + $0x34] sm:$0xf]
  %v1849 = vld [vmem:[%s7 + $0x38] sm:$0xf]
  %v1850 = vld [vmem:[%s7 + $0x3c] sm:$0xf]
  %v1867 = vunpack.c.l.b16 %v1835
  %v1868 = vunpack.c.l.b16 %v1836
  %v1869 = vunpack.c.l.b16 %v1837
  %v1870 = vunpack.c.l.b16 %v1838
  %v1871 = vunpack.c.l.b16 %v1839
  %v1872 = vunpack.c.l.b16 %v1840
  %v1873 = vunpack.c.l.b16 %v1841
  %v1874 = vunpack.c.l.b16 %v1842
  %v1875 = vunpack.c.l.b16 %v1843
  %v1876 = vunpack.c.l.b16 %v1844
  %v1877 = vunpack.c.l.b16 %v1845
  %v1878 = vunpack.c.l.b16 %v1846
  %v1879 = vunpack.c.l.b16 %v1847
  %v1880 = vunpack.c.l.b16 %v1848
  %v1881 = vunpack.c.l.b16 %v1849
  %v1882 = vunpack.c.l.b16 %v1850
  %v1883 = vpack.c.b16 %v1868, %v1867
  %v1884 = vpack.c.b16 %v1870, %v1869
  %v1885 = vpack.c.b16 %v1872, %v1871
  %v1886 = vpack.c.b16 %v1874, %v1873
  %v1887 = vpack.c.b16 %v1876, %v1875
  %v1888 = vpack.c.b16 %v1878, %v1877
  %v1889 = vpack.c.b16 %v1880, %v1879
  %v1890 = vpack.c.b16 %v1882, %v1881
  %1899 = vmatpush.bf16.msra.mxu0 %v1890
  %1900 = vmatpush.bf16.msra.mxu0 %v1889
  %1901 = vmatpush.bf16.msra.mxu0 %v1888
  %1902 = vmatpush.bf16.msra.mxu0 %v1887
  %1903 = vmatpush.bf16.msra.mxu0 %v1886
  %1904 = vmatpush.bf16.msra.mxu0 %v1885
  %1905 = vmatpush.bf16.msra.mxu0 %v1884
  %1906 = vmatpush.bf16.msra.mxu0 %v1883
  %1907 = vmatmul.bf16.gmra.mxu0 %v1828
  %v1908 = vpop.f32.mrf.mxu0
  %v1909 = vadd.f32 0.0, %v1908
  %v1910 = vpop.f32.mrf.mxu0
  %v1911 = vadd.f32 0.0, %v1910
  %1912 = vmatmul.bf16.gmra.mxu0 %v1829
  %v1913 = vpop.f32.mrf.mxu0
  %v1914 = vadd.f32 0.0, %v1913
  %v1915 = vpop.f32.mrf.mxu0
  %v1916 = vadd.f32 0.0, %v1915
  %1917 = vmatmul.bf16.gmra.mxu0 %v1830
  %v1918 = vpop.f32.mrf.mxu0
  %v1919 = vadd.f32 0.0, %v1918
  %v1920 = vpop.f32.mrf.mxu0
  %v1921 = vadd.f32 0.0, %v1920
  %1922 = vmatmul.bf16.gmra.mxu0 %v1831
  %v1923 = vpop.f32.mrf.mxu0
  %v1924 = vadd.f32 0.0, %v1923
  %v1925 = vpop.f32.mrf.mxu0
  %v1926 = vadd.f32 0.0, %v1925
  %1927 = vmatmul.bf16.gmra.mxu0 %v1832
  %v1928 = vpop.f32.mrf.mxu0
  %v1929 = vadd.f32 0.0, %v1928
  %v1930 = vpop.f32.mrf.mxu0
  %v1931 = vadd.f32 0.0, %v1930
  %1932 = vmatmul.bf16.gmra.mxu0 %v1833
  %v1933 = vpop.f32.mrf.mxu0
  %v1934 = vadd.f32 0.0, %v1933
  %v1935 = vpop.f32.mrf.mxu0
  %v1936 = vadd.f32 0.0, %v1935
  %1937 = vmatmul.bf16.gmra.mxu0 %v1834
  %v1938 = vpop.f32.mrf.mxu0
  %v1939 = vadd.f32 0.0, %v1938
  %v1940 = vpop.f32.mrf.mxu0
  %v1941 = vadd.f32 0.0, %v1940
  %1942 = vdwg.mxu0
  %1943 = vst [vmem:[%s13] sm:$0xff] %v1909
  %1944 = vst [vmem:[%s13 + $0x8] sm:$0xff] %v1911
  %1945 = vst [vmem:[%s13 + $0x10] sm:$0xff] %v1914
  %1946 = vst [vmem:[%s13 + $0x18] sm:$0xff] %v1916
  %1947 = vst [vmem:[%s13 + $0x20] sm:$0xff] %v1919
  %1948 = vst [vmem:[%s13 + $0x28] sm:$0xff] %v1921
  %1949 = vst [vmem:[%s13 + $0x30] sm:$0xff] %v1924
  %1950 = vst [vmem:[%s13 + $0x38] sm:$0xff] %v1926
  %1951 = vst [vmem:[%s13 + $0x40] sm:$0xff] %v1929
  %1952 = vst [vmem:[%s13 + $0x48] sm:$0xff] %v1931
  %1953 = vst [vmem:[%s13 + $0x50] sm:$0xff] %v1934
  %1954 = vst [vmem:[%s13 + $0x58] sm:$0xff] %v1936
  %1955 = vst [vmem:[%s13 + $0x60] sm:$0xff] %v1939
  %1956 = vst [vmem:[%s13 + $0x68] sm:$0xff] %v1941
  %v1957 = vld [vmem:[%s8] sm:$0xff]
  %v1958 = vld [vmem:[%s8 + $0x8] sm:$0xff]
  %v1959 = vld [vmem:[%s8 + $0x10] sm:$0xff]
  %v1960 = vld [vmem:[%s8 + $0x18] sm:$0xff]
  %v1961 = vld [vmem:[%s8 + $0x20] sm:$0xff]
  %v1962 = vld [vmem:[%s8 + $0x28] sm:$0xff]
  %v1963 = vld [vmem:[%s8 + $0x30] sm:$0xff]
  %v1964 = vld [vmem:[%s8 + $0x38] sm:$0xff]
  %v1965 = vld [vmem:[%s8 + $0x40] sm:$0xff]
  %v1966 = vld [vmem:[%s8 + $0x48] sm:$0xff]
  %v1967 = vld [vmem:[%s8 + $0x50] sm:$0xff]
  %v1968 = vld [vmem:[%s8 + $0x58] sm:$0xff]
  %v1969 = vld [vmem:[%s8 + $0x60] sm:$0xff]
  %v1970 = vld [vmem:[%s8 + $0x68] sm:$0xff]
  %v1971 = vld [vmem:[%s8 + $0x70] sm:$0xff]
  %v1972 = vld [vmem:[%s8 + $0x78] sm:$0xff]
  %v1973 = vld [vmem:[%s8 + $0x80] sm:$0xff]
  %v1974 = vld [vmem:[%s8 + $0x88] sm:$0xff]
  %v1975 = vld [vmem:[%s8 + $0x90] sm:$0xff]
  %v1976 = vld [vmem:[%s8 + $0x98] sm:$0xff]
  %v1977 = vld [vmem:[%s8 + $0xa0] sm:$0xff]
  %v1978 = vld [vmem:[%s8 + $0xa8] sm:$0xff]
  %v1979 = vld [vmem:[%s8 + $0xb0] sm:$0xff]
  %v1980 = vld [vmem:[%s8 + $0xb8] sm:$0xff]
  %v1981 = vld [vmem:[%s8 + $0xc0] sm:$0xff]
  %v1982 = vld [vmem:[%s8 + $0xc8] sm:$0xff]
  %v1983 = vld [vmem:[%s8 + $0xd0] sm:$0xff]
  %v1984 = vld [vmem:[%s8 + $0xd8] sm:$0xff]
  %v1985 = vld [vmem:[%s9] sm:$0xff]
  %v1986 = vld [vmem:[%s9 + $0x8] sm:$0xff]
  %v1987 = vld [vmem:[%s9 + $0x10] sm:$0xff]
  %v1988 = vld [vmem:[%s9 + $0x18] sm:$0xff]
  %v1989 = vld [vmem:[%s9 + $0x20] sm:$0xff]
  %v1990 = vld [vmem:[%s9 + $0x28] sm:$0xff]
  %v1991 = vld [vmem:[%s9 + $0x30] sm:$0xff]
  %v1992 = vld [vmem:[%s9 + $0x38] sm:$0xff]
  %v1993 = vld [vmem:[%s9 + $0x40] sm:$0xff]
  %v1994 = vld [vmem:[%s9 + $0x48] sm:$0xff]
  %v1995 = vld [vmem:[%s9 + $0x50] sm:$0xff]
  %v1996 = vld [vmem:[%s9 + $0x58] sm:$0xff]
  %v1997 = vld [vmem:[%s9 + $0x60] sm:$0xff]
  %v1998 = vld [vmem:[%s9 + $0x68] sm:$0xff]
  %v1999 = vld [vmem:[%s9 + $0x70] sm:$0xff]
  %v2000 = vld [vmem:[%s9 + $0x78] sm:$0xff]
  %v2001 = vld [vmem:[%s9 + $0x80] sm:$0xff]
  %v2002 = vld [vmem:[%s9 + $0x88] sm:$0xff]
  %v2003 = vld [vmem:[%s9 + $0x90] sm:$0xff]
  %v2004 = vld [vmem:[%s9 + $0x98] sm:$0xff]
  %v2005 = vld [vmem:[%s9 + $0xa0] sm:$0xff]
  %v2006 = vld [vmem:[%s9 + $0xa8] sm:$0xff]
  %v2007 = vld [vmem:[%s9 + $0xb0] sm:$0xff]
  %v2008 = vld [vmem:[%s9 + $0xb8] sm:$0xff]
  %v2009 = vld [vmem:[%s9 + $0xc0] sm:$0xff]
  %v2010 = vld [vmem:[%s9 + $0xc8] sm:$0xff]
  %v2011 = vld [vmem:[%s9 + $0xd0] sm:$0xff]
  %v2012 = vld [vmem:[%s9 + $0xd8] sm:$0xff]
  %v2013 = vld [vmem:[%s9 + $0xe0] sm:$0xff]
  %v2014 = vld [vmem:[%s9 + $0xe8] sm:$0xff]
  %v2015 = vld [vmem:[%s9 + $0xf0] sm:$0xff]
  %v2016 = vld [vmem:[%s9 + $0xf8] sm:$0xff]
  %v2017 = vld [vmem:[%s9 + $0x100] sm:$0xff]
  %v2018 = vld [vmem:[%s9 + $0x108] sm:$0xff]
  %v2019 = vld [vmem:[%s9 + $0x110] sm:$0xff]
  %v2020 = vld [vmem:[%s9 + $0x118] sm:$0xff]
  %v2021 = vld [vmem:[%s9 + $0x120] sm:$0xff]
  %v2022 = vld [vmem:[%s9 + $0x128] sm:$0xff]
  %v2023 = vld [vmem:[%s9 + $0x130] sm:$0xff]
  %v2024 = vld [vmem:[%s9 + $0x138] sm:$0xff]
  %v2025 = vld [vmem:[%s9 + $0x140] sm:$0xff]
  %v2026 = vld [vmem:[%s9 + $0x148] sm:$0xff]
  %v2027 = vld [vmem:[%s9 + $0x150] sm:$0xff]
  %v2028 = vld [vmem:[%s9 + $0x158] sm:$0xff]
  %v2029 = vld [vmem:[%s9 + $0x160] sm:$0xff]
  %v2030 = vld [vmem:[%s9 + $0x168] sm:$0xff]
  %v2031 = vld [vmem:[%s9 + $0x170] sm:$0xff]
  %v2032 = vld [vmem:[%s9 + $0x178] sm:$0xff]
  %v2033 = vld [vmem:[%s9 + $0x180] sm:$0xff]
  %v2034 = vld [vmem:[%s9 + $0x188] sm:$0xff]
  %v2035 = vld [vmem:[%s9 + $0x190] sm:$0xff]
  %v2036 = vld [vmem:[%s9 + $0x198] sm:$0xff]
  %v2037 = vld [vmem:[%s9 + $0x1a0] sm:$0xff]
  %v2038 = vld [vmem:[%s9 + $0x1a8] sm:$0xff]
  %v2039 = vld [vmem:[%s9 + $0x1b0] sm:$0xff]
  %v2040 = vld [vmem:[%s9 + $0x1b8] sm:$0xff]
  %v2041 = vld [vmem:[%s9 + $0x1c0] sm:$0xff]
  %v2042 = vld [vmem:[%s9 + $0x1c8] sm:$0xff]
  %v2043 = vld [vmem:[%s9 + $0x1d0] sm:$0xff]
  %v2044 = vld [vmem:[%s9 + $0x1d8] sm:$0xff]
  %v2045 = vld [vmem:[%s9 + $0x1e0] sm:$0xff]
  %v2046 = vld [vmem:[%s9 + $0x1e8] sm:$0xff]
  %v2047 = vld [vmem:[%s9 + $0x1f0] sm:$0xff]
  %v2048 = vld [vmem:[%s9 + $0x1f8] sm:$0xff]
  %v2049 = vld [vmem:[%s9 + $0x200] sm:$0xff]
  %v2050 = vld [vmem:[%s9 + $0x208] sm:$0xff]
  %v2051 = vld [vmem:[%s9 + $0x210] sm:$0xff]
  %v2052 = vld [vmem:[%s9 + $0x218] sm:$0xff]
  %v2053 = vld [vmem:[%s9 + $0x220] sm:$0xff]
  %v2054 = vld [vmem:[%s9 + $0x228] sm:$0xff]
  %v2055 = vld [vmem:[%s9 + $0x230] sm:$0xff]
  %v2056 = vld [vmem:[%s9 + $0x238] sm:$0xff]
  %v2057 = vld [vmem:[%s9 + $0x240] sm:$0xff]
  %v2058 = vld [vmem:[%s9 + $0x248] sm:$0xff]
  %v2059 = vld [vmem:[%s9 + $0x250] sm:$0xff]
  %v2060 = vld [vmem:[%s9 + $0x258] sm:$0xff]
  %v2061 = vld [vmem:[%s9 + $0x260] sm:$0xff]
  %v2062 = vld [vmem:[%s9 + $0x268] sm:$0xff]
  %v2063 = vld [vmem:[%s9 + $0x270] sm:$0xff]
  %v2064 = vld [vmem:[%s9 + $0x278] sm:$0xff]
  %v2065 = vld [vmem:[%s9 + $0x280] sm:$0xff]
  %v2066 = vld [vmem:[%s9 + $0x288] sm:$0xff]
  %v2067 = vld [vmem:[%s9 + $0x290] sm:$0xff]
  %v2068 = vld [vmem:[%s9 + $0x298] sm:$0xff]
  %v2069 = vld [vmem:[%s9 + $0x2a0] sm:$0xff]
  %v2070 = vld [vmem:[%s9 + $0x2a8] sm:$0xff]
  %v2071 = vld [vmem:[%s9 + $0x2b0] sm:$0xff]
  %v2072 = vld [vmem:[%s9 + $0x2b8] sm:$0xff]
  %v2073 = vld [vmem:[%s9 + $0x2c0] sm:$0xff]
  %v2074 = vld [vmem:[%s9 + $0x2c8] sm:$0xff]
  %v2075 = vld [vmem:[%s9 + $0x2d0] sm:$0xff]
  %v2076 = vld [vmem:[%s9 + $0x2d8] sm:$0xff]
  %v2077 = vld [vmem:[%s9 + $0x2e0] sm:$0xff]
  %v2078 = vld [vmem:[%s9 + $0x2e8] sm:$0xff]
  %v2079 = vld [vmem:[%s9 + $0x2f0] sm:$0xff]
  %v2080 = vld [vmem:[%s9 + $0x2f8] sm:$0xff]
  %v2081 = vld [vmem:[%s9 + $0x300] sm:$0xff]
  %v2082 = vld [vmem:[%s9 + $0x308] sm:$0xff]
  %v2083 = vld [vmem:[%s9 + $0x310] sm:$0xff]
  %v2084 = vld [vmem:[%s9 + $0x318] sm:$0xff]
  %v2085 = vld [vmem:[%s9 + $0x320] sm:$0xff]
  %v2086 = vld [vmem:[%s9 + $0x328] sm:$0xff]
  %v2087 = vld [vmem:[%s9 + $0x330] sm:$0xff]
  %v2088 = vld [vmem:[%s9 + $0x338] sm:$0xff]
  %v2089 = vld [vmem:[%s9 + $0x340] sm:$0xff]
  %v2090 = vld [vmem:[%s9 + $0x348] sm:$0xff]
  %v2091 = vld [vmem:[%s9 + $0x350] sm:$0xff]
  %v2092 = vld [vmem:[%s9 + $0x358] sm:$0xff]
  %v2093 = vld [vmem:[%s9 + $0x360] sm:$0xff]
  %v2094 = vld [vmem:[%s9 + $0x368] sm:$0xff]
  %v2095 = vld [vmem:[%s9 + $0x370] sm:$0xff]
  %v2096 = vld [vmem:[%s9 + $0x378] sm:$0xff]
  %v2097 = vld [vmem:[%s9 + $0x380] sm:$0xff]
  %v2098 = vld [vmem:[%s9 + $0x388] sm:$0xff]
  %v2099 = vld [vmem:[%s9 + $0x390] sm:$0xff]
  %v2100 = vld [vmem:[%s9 + $0x398] sm:$0xff]
  %v2101 = vld [vmem:[%s9 + $0x3a0] sm:$0xff]
  %v2102 = vld [vmem:[%s9 + $0x3a8] sm:$0xff]
  %v2103 = vld [vmem:[%s9 + $0x3b0] sm:$0xff]
  %v2104 = vld [vmem:[%s9 + $0x3b8] sm:$0xff]
  %v2105 = vld [vmem:[%s9 + $0x3c0] sm:$0xff]
  %v2106 = vld [vmem:[%s9 + $0x3c8] sm:$0xff]
  %v2107 = vld [vmem:[%s9 + $0x3d0] sm:$0xff]
  %v2108 = vld [vmem:[%s9 + $0x3d8] sm:$0xff]
  %v2109 = vld [vmem:[%s9 + $0x3e0] sm:$0xff]
  %v2110 = vld [vmem:[%s9 + $0x3e8] sm:$0xff]
  %v2111 = vld [vmem:[%s9 + $0x3f0] sm:$0xff]
  %v2112 = vld [vmem:[%s9 + $0x3f8] sm:$0xff]
  %v2113 = vld [vmem:[%s9 + $0x400] sm:$0xff]
  %v2114 = vld [vmem:[%s9 + $0x408] sm:$0xff]
  %v2115 = vld [vmem:[%s9 + $0x410] sm:$0xff]
  %v2116 = vld [vmem:[%s9 + $0x418] sm:$0xff]
  %v2117 = vld [vmem:[%s9 + $0x420] sm:$0xff]
  %v2118 = vld [vmem:[%s9 + $0x428] sm:$0xff]
  %v2119 = vld [vmem:[%s9 + $0x430] sm:$0xff]
  %v2120 = vld [vmem:[%s9 + $0x438] sm:$0xff]
  %v2121 = vld [vmem:[%s9 + $0x440] sm:$0xff]
  %v2122 = vld [vmem:[%s9 + $0x448] sm:$0xff]
  %v2123 = vld [vmem:[%s9 + $0x450] sm:$0xff]
  %v2124 = vld [vmem:[%s9 + $0x458] sm:$0xff]
  %v2125 = vld [vmem:[%s9 + $0x460] sm:$0xff]
  %v2126 = vld [vmem:[%s9 + $0x468] sm:$0xff]
  %v2127 = vld [vmem:[%s9 + $0x470] sm:$0xff]
  %v2128 = vld [vmem:[%s9 + $0x478] sm:$0xff]
  %v2129 = vld [vmem:[%s9 + $0x480] sm:$0xff]
  %v2130 = vld [vmem:[%s9 + $0x488] sm:$0xff]
  %v2131 = vld [vmem:[%s9 + $0x490] sm:$0xff]
  %v2132 = vld [vmem:[%s9 + $0x498] sm:$0xff]
  %v2133 = vld [vmem:[%s9 + $0x4a0] sm:$0xff]
  %v2134 = vld [vmem:[%s9 + $0x4a8] sm:$0xff]
  %v2135 = vld [vmem:[%s9 + $0x4b0] sm:$0xff]
  %v2136 = vld [vmem:[%s9 + $0x4b8] sm:$0xff]
  %v2137 = vld [vmem:[%s9 + $0x4c0] sm:$0xff]
  %v2138 = vld [vmem:[%s9 + $0x4c8] sm:$0xff]
  %v2139 = vld [vmem:[%s9 + $0x4d0] sm:$0xff]
  %v2140 = vld [vmem:[%s9 + $0x4d8] sm:$0xff]
  %v2141 = vld [vmem:[%s9 + $0x4e0] sm:$0xff]
  %v2142 = vld [vmem:[%s9 + $0x4e8] sm:$0xff]
  %v2143 = vld [vmem:[%s9 + $0x4f0] sm:$0xff]
  %v2144 = vld [vmem:[%s9 + $0x4f8] sm:$0xff]
  %v2145 = vld [vmem:[%s9 + $0x500] sm:$0xff]
  %v2146 = vld [vmem:[%s9 + $0x508] sm:$0xff]
  %v2147 = vld [vmem:[%s9 + $0x510] sm:$0xff]
  %v2148 = vld [vmem:[%s9 + $0x518] sm:$0xff]
  %v2149 = vld [vmem:[%s9 + $0x520] sm:$0xff]
  %v2150 = vld [vmem:[%s9 + $0x528] sm:$0xff]
  %v2151 = vld [vmem:[%s9 + $0x530] sm:$0xff]
  %v2152 = vld [vmem:[%s9 + $0x538] sm:$0xff]
  %v2153 = vld [vmem:[%s9 + $0x540] sm:$0xff]
  %v2154 = vld [vmem:[%s9 + $0x548] sm:$0xff]
  %v2155 = vld [vmem:[%s9 + $0x550] sm:$0xff]
  %v2156 = vld [vmem:[%s9 + $0x558] sm:$0xff]
  %v2157 = vld [vmem:[%s9 + $0x560] sm:$0xff]
  %v2158 = vld [vmem:[%s9 + $0x568] sm:$0xff]
  %v2159 = vld [vmem:[%s9 + $0x570] sm:$0xff]
  %v2160 = vld [vmem:[%s9 + $0x578] sm:$0xff]
  %v2161 = vld [vmem:[%s9 + $0x580] sm:$0xff]
  %v2162 = vld [vmem:[%s9 + $0x588] sm:$0xff]
  %v2163 = vld [vmem:[%s9 + $0x590] sm:$0xff]
  %v2164 = vld [vmem:[%s9 + $0x598] sm:$0xff]
  %v2165 = vld [vmem:[%s9 + $0x5a0] sm:$0xff]
  %v2166 = vld [vmem:[%s9 + $0x5a8] sm:$0xff]
  %v2167 = vld [vmem:[%s9 + $0x5b0] sm:$0xff]
  %v2168 = vld [vmem:[%s9 + $0x5b8] sm:$0xff]
  %v2169 = vld [vmem:[%s9 + $0x5c0] sm:$0xff]
  %v2170 = vld [vmem:[%s9 + $0x5c8] sm:$0xff]
  %v2171 = vld [vmem:[%s9 + $0x5d0] sm:$0xff]
  %v2172 = vld [vmem:[%s9 + $0x5d8] sm:$0xff]
  %v2173 = vld [vmem:[%s9 + $0x5e0] sm:$0xff]
  %v2174 = vld [vmem:[%s9 + $0x5e8] sm:$0xff]
  %v2175 = vld [vmem:[%s9 + $0x5f0] sm:$0xff]
  %v2176 = vld [vmem:[%s9 + $0x5f8] sm:$0xff]
  %v2177 = vld [vmem:[%s9 + $0x600] sm:$0xff]
  %v2178 = vld [vmem:[%s9 + $0x608] sm:$0xff]
  %v2179 = vld [vmem:[%s9 + $0x610] sm:$0xff]
  %v2180 = vld [vmem:[%s9 + $0x618] sm:$0xff]
  %v2181 = vld [vmem:[%s9 + $0x620] sm:$0xff]
  %v2182 = vld [vmem:[%s9 + $0x628] sm:$0xff]
  %v2183 = vld [vmem:[%s9 + $0x630] sm:$0xff]
  %v2184 = vld [vmem:[%s9 + $0x638] sm:$0xff]
  %v2185 = vld [vmem:[%s9 + $0x640] sm:$0xff]
  %v2186 = vld [vmem:[%s9 + $0x648] sm:$0xff]
  %v2187 = vld [vmem:[%s9 + $0x650] sm:$0xff]
  %v2188 = vld [vmem:[%s9 + $0x658] sm:$0xff]
  %v2189 = vld [vmem:[%s9 + $0x660] sm:$0xff]
  %v2190 = vld [vmem:[%s9 + $0x668] sm:$0xff]
  %v2191 = vld [vmem:[%s9 + $0x670] sm:$0xff]
  %v2192 = vld [vmem:[%s9 + $0x678] sm:$0xff]
  %v2193 = vld [vmem:[%s9 + $0x680] sm:$0xff]
  %v2194 = vld [vmem:[%s9 + $0x688] sm:$0xff]
  %v2195 = vld [vmem:[%s9 + $0x690] sm:$0xff]
  %v2196 = vld [vmem:[%s9 + $0x698] sm:$0xff]
  %v2197 = vld [vmem:[%s9 + $0x6a0] sm:$0xff]
  %v2198 = vld [vmem:[%s9 + $0x6a8] sm:$0xff]
  %v2199 = vld [vmem:[%s9 + $0x6b0] sm:$0xff]
  %v2200 = vld [vmem:[%s9 + $0x6b8] sm:$0xff]
  %v2201 = vld [vmem:[%s9 + $0x6c0] sm:$0xff]
  %v2202 = vld [vmem:[%s9 + $0x6c8] sm:$0xff]
  %v2203 = vld [vmem:[%s9 + $0x6d0] sm:$0xff]
  %v2204 = vld [vmem:[%s9 + $0x6d8] sm:$0xff]
  %v2205 = vld [vmem:[%s9 + $0x6e0] sm:$0x33]
  %v2206 = vld [vmem:[%s10] sm:$0x3]
  %v2208 = vperm.slane %v2206, 0
  %v2209 = vperm.slane %v2206, 1
  %v2240 = vunpack.c.l.b16 %v1957
  %v2241 = vunpack.c.h.b16 %v1957
  %v2242 = vunpack.c.l.b16 %v1958
  %v2243 = vunpack.c.h.b16 %v1958
  %v2244 = vunpack.c.l.b16 %v1959
  %v2245 = vunpack.c.h.b16 %v1959
  %v2246 = vunpack.c.l.b16 %v1960
  %v2247 = vunpack.c.h.b16 %v1960
  %v2248 = vunpack.c.l.b16 %v1961
  %v2249 = vunpack.c.h.b16 %v1961
  %v2250 = vunpack.c.l.b16 %v1962
  %v2251 = vunpack.c.h.b16 %v1962
  %v2252 = vunpack.c.l.b16 %v1963
  %v2253 = vunpack.c.h.b16 %v1963
  %v2254 = vunpack.c.l.b16 %v1964
  %v2255 = vunpack.c.h.b16 %v1964
  %v2256 = vunpack.c.l.b16 %v1965
  %v2257 = vunpack.c.h.b16 %v1965
  %v2258 = vunpack.c.l.b16 %v1966
  %v2259 = vunpack.c.h.b16 %v1966
  %v2260 = vunpack.c.l.b16 %v1967
  %v2261 = vunpack.c.h.b16 %v1967
  %v2262 = vunpack.c.l.b16 %v1968
  %v2263 = vunpack.c.h.b16 %v1968
  %v2264 = vunpack.c.l.b16 %v1969
  %v2265 = vunpack.c.h.b16 %v1969
  %v2266 = vunpack.c.l.b16 %v1970
  %v2267 = vunpack.c.h.b16 %v1970
  %v2268 = vunpack.c.l.b16 %v1971
  %v2269 = vunpack.c.h.b16 %v1971
  %v2270 = vunpack.c.l.b16 %v1972
  %v2271 = vunpack.c.h.b16 %v1972
  %v2272 = vunpack.c.l.b16 %v1973
  %v2273 = vunpack.c.h.b16 %v1973
  %v2274 = vunpack.c.l.b16 %v1974
  %v2275 = vunpack.c.h.b16 %v1974
  %v2276 = vunpack.c.l.b16 %v1975
  %v2277 = vunpack.c.h.b16 %v1975
  %v2278 = vunpack.c.l.b16 %v1976
  %v2279 = vunpack.c.h.b16 %v1976
  %v2280 = vunpack.c.l.b16 %v1977
  %v2281 = vunpack.c.h.b16 %v1977
  %v2282 = vunpack.c.l.b16 %v1978
  %v2283 = vunpack.c.h.b16 %v1978
  %v2284 = vunpack.c.l.b16 %v1979
  %v2285 = vunpack.c.h.b16 %v1979
  %v2286 = vunpack.c.l.b16 %v1980
  %v2287 = vunpack.c.h.b16 %v1980
  %v2288 = vunpack.c.l.b16 %v1981
  %v2289 = vunpack.c.h.b16 %v1981
  %v2290 = vunpack.c.l.b16 %v1982
  %v2291 = vunpack.c.h.b16 %v1982
  %v2292 = vunpack.c.l.b16 %v1983
  %v2293 = vunpack.c.h.b16 %v1983
  %v2294 = vunpack.c.l.b16 %v1984
  %v2295 = vunpack.c.h.b16 %v1984
  %v2296 = vpack.c.b16 %v2254, %v2240
  %v2297 = vpack.c.b16 %v2255, %v2241
  %v2298 = vpack.c.b16 %v2256, %v2242
  %v2299 = vpack.c.b16 %v2257, %v2243
  %v2300 = vpack.c.b16 %v2258, %v2244
  %v2301 = vpack.c.b16 %v2259, %v2245
  %v2302 = vpack.c.b16 %v2260, %v2246
  %v2303 = vpack.c.b16 %v2261, %v2247
  %v2304 = vpack.c.b16 %v2262, %v2248
  %v2305 = vpack.c.b16 %v2263, %v2249
  %v2306 = vpack.c.b16 %v2264, %v2250
  %v2307 = vpack.c.b16 %v2265, %v2251
  %v2308 = vpack.c.b16 %v2266, %v2252
  %v2309 = vpack.c.b16 %v2267, %v2253
  %v2310 = vpack.c.b16 %v2282, %v2268
  %v2311 = vpack.c.b16 %v2283, %v2269
  %v2312 = vpack.c.b16 %v2284, %v2270
  %v2313 = vpack.c.b16 %v2285, %v2271
  %v2314 = vpack.c.b16 %v2286, %v2272
  %v2315 = vpack.c.b16 %v2287, %v2273
  %v2316 = vpack.c.b16 %v2288, %v2274
  %v2317 = vpack.c.b16 %v2289, %v2275
  %v2318 = vpack.c.b16 %v2290, %v2276
  %v2319 = vpack.c.b16 %v2291, %v2277
  %v2320 = vpack.c.b16 %v2292, %v2278
  %v2321 = vpack.c.b16 %v2293, %v2279
  %v2322 = vpack.c.b16 %v2294, %v2280
  %v2323 = vpack.c.b16 %v2295, %v2281
  %v2571 = vunpack.c.l.b16 %v1985
  %v2572 = vunpack.c.h.b16 %v1985
  %v2573 = vunpack.c.l.b16 %v1986
  %v2574 = vunpack.c.h.b16 %v1986
  %v2575 = vunpack.c.l.b16 %v1987
  %v2576 = vunpack.c.h.b16 %v1987
  %v2577 = vunpack.c.l.b16 %v1988
  %v2578 = vunpack.c.h.b16 %v1988
  %v2579 = vunpack.c.l.b16 %v1989
  %v2580 = vunpack.c.h.b16 %v1989
  %v2581 = vunpack.c.l.b16 %v1990
  %v2582 = vunpack.c.h.b16 %v1990
  %v2583 = vunpack.c.l.b16 %v1991
  %v2584 = vunpack.c.h.b16 %v1991
  %v2585 = vunpack.c.l.b16 %v1992
  %v2586 = vunpack.c.h.b16 %v1992
  %v2587 = vunpack.c.l.b16 %v1993
  %v2588 = vunpack.c.h.b16 %v1993
  %v2589 = vunpack.c.l.b16 %v1994
  %v2590 = vunpack.c.h.b16 %v1994
  %v2591 = vunpack.c.l.b16 %v1995
  %v2592 = vunpack.c.h.b16 %v1995
  %v2593 = vunpack.c.l.b16 %v1996
  %v2594 = vunpack.c.h.b16 %v1996
  %v2595 = vunpack.c.l.b16 %v1997
  %v2596 = vunpack.c.h.b16 %v1997
  %v2597 = vunpack.c.l.b16 %v1998
  %v2598 = vunpack.c.h.b16 %v1998
  %v2599 = vunpack.c.l.b16 %v1999
  %v2600 = vunpack.c.h.b16 %v1999
  %v2601 = vunpack.c.l.b16 %v2000
  %v2602 = vunpack.c.h.b16 %v2000
  %v2603 = vunpack.c.l.b16 %v2001
  %v2604 = vunpack.c.h.b16 %v2001
  %v2605 = vunpack.c.l.b16 %v2002
  %v2606 = vunpack.c.h.b16 %v2002
  %v2607 = vunpack.c.l.b16 %v2003
  %v2608 = vunpack.c.h.b16 %v2003
  %v2609 = vunpack.c.l.b16 %v2004
  %v2610 = vunpack.c.h.b16 %v2004
  %v2611 = vunpack.c.l.b16 %v2005
  %v2612 = vunpack.c.h.b16 %v2005
  %v2613 = vunpack.c.l.b16 %v2006
  %v2614 = vunpack.c.h.b16 %v2006
  %v2615 = vunpack.c.l.b16 %v2007
  %v2616 = vunpack.c.h.b16 %v2007
  %v2617 = vunpack.c.l.b16 %v2008
  %v2618 = vunpack.c.h.b16 %v2008
  %v2619 = vunpack.c.l.b16 %v2009
  %v2620 = vunpack.c.h.b16 %v2009
  %v2621 = vunpack.c.l.b16 %v2010
  %v2622 = vunpack.c.h.b16 %v2010
  %v2623 = vunpack.c.l.b16 %v2011
  %v2624 = vunpack.c.h.b16 %v2011
  %v2625 = vunpack.c.l.b16 %v2012
  %v2626 = vunpack.c.h.b16 %v2012
  %v2627 = vunpack.c.l.b16 %v2013
  %v2628 = vunpack.c.h.b16 %v2013
  %v2629 = vunpack.c.l.b16 %v2014
  %v2630 = vunpack.c.h.b16 %v2014
  %v2631 = vunpack.c.l.b16 %v2015
  %v2632 = vunpack.c.h.b16 %v2015
  %v2633 = vunpack.c.l.b16 %v2016
  %v2634 = vunpack.c.h.b16 %v2016
  %v2635 = vunpack.c.l.b16 %v2017
  %v2636 = vunpack.c.h.b16 %v2017
  %v2637 = vunpack.c.l.b16 %v2018
  %v2638 = vunpack.c.h.b16 %v2018
  %v2639 = vunpack.c.l.b16 %v2019
  %v2640 = vunpack.c.h.b16 %v2019
  %v2641 = vunpack.c.l.b16 %v2020
  %v2642 = vunpack.c.h.b16 %v2020
  %v2643 = vunpack.c.l.b16 %v2021
  %v2644 = vunpack.c.h.b16 %v2021
  %v2645 = vunpack.c.l.b16 %v2022
  %v2646 = vunpack.c.h.b16 %v2022
  %v2647 = vunpack.c.l.b16 %v2023
  %v2648 = vunpack.c.h.b16 %v2023
  %v2649 = vunpack.c.l.b16 %v2024
  %v2650 = vunpack.c.h.b16 %v2024
  %v2651 = vunpack.c.l.b16 %v2025
  %v2652 = vunpack.c.h.b16 %v2025
  %v2653 = vunpack.c.l.b16 %v2026
  %v2654 = vunpack.c.h.b16 %v2026
  %v2655 = vunpack.c.l.b16 %v2027
  %v2656 = vunpack.c.h.b16 %v2027
  %v2657 = vunpack.c.l.b16 %v2028
  %v2658 = vunpack.c.h.b16 %v2028
  %v2659 = vunpack.c.l.b16 %v2029
  %v2660 = vunpack.c.h.b16 %v2029
  %v2661 = vunpack.c.l.b16 %v2030
  %v2662 = vunpack.c.h.b16 %v2030
  %v2663 = vunpack.c.l.b16 %v2031
  %v2664 = vunpack.c.h.b16 %v2031
  %v2665 = vunpack.c.l.b16 %v2032
  %v2666 = vunpack.c.h.b16 %v2032
  %v2667 = vunpack.c.l.b16 %v2033
  %v2668 = vunpack.c.h.b16 %v2033
  %v2669 = vunpack.c.l.b16 %v2034
  %v2670 = vunpack.c.h.b16 %v2034
  %v2671 = vunpack.c.l.b16 %v2035
  %v2672 = vunpack.c.h.b16 %v2035
  %v2673 = vunpack.c.l.b16 %v2036
  %v2674 = vunpack.c.h.b16 %v2036
  %v2675 = vunpack.c.l.b16 %v2037
  %v2676 = vunpack.c.h.b16 %v2037
  %v2677 = vunpack.c.l.b16 %v2038
  %v2678 = vunpack.c.h.b16 %v2038
  %v2679 = vunpack.c.l.b16 %v2039
  %v2680 = vunpack.c.h.b16 %v2039
  %v2681 = vunpack.c.l.b16 %v2040
  %v2682 = vunpack.c.h.b16 %v2040
  %v2683 = vunpack.c.l.b16 %v2041
  %v2684 = vunpack.c.h.b16 %v2041
  %v2685 = vunpack.c.l.b16 %v2042
  %v2686 = vunpack.c.h.b16 %v2042
  %v2687 = vunpack.c.l.b16 %v2043
  %v2688 = vunpack.c.h.b16 %v2043
  %v2689 = vunpack.c.l.b16 %v2044
  %v2690 = vunpack.c.h.b16 %v2044
  %v2691 = vunpack.c.l.b16 %v2045
  %v2692 = vunpack.c.h.b16 %v2045
  %v2693 = vunpack.c.l.b16 %v2046
  %v2694 = vunpack.c.h.b16 %v2046
  %v2695 = vunpack.c.l.b16 %v2047
  %v2696 = vunpack.c.h.b16 %v2047
  %v2697 = vunpack.c.l.b16 %v2048
  %v2698 = vunpack.c.h.b16 %v2048
  %v2699 = vunpack.c.l.b16 %v2049
  %v2700 = vunpack.c.h.b16 %v2049
  %v2701 = vunpack.c.l.b16 %v2050
  %v2702 = vunpack.c.h.b16 %v2050
  %v2703 = vunpack.c.l.b16 %v2051
  %v2704 = vunpack.c.h.b16 %v2051
  %v2705 = vunpack.c.l.b16 %v2052
  %v2706 = vunpack.c.h.b16 %v2052
  %v2707 = vunpack.c.l.b16 %v2053
  %v2708 = vunpack.c.h.b16 %v2053
  %v2709 = vunpack.c.l.b16 %v2054
  %v2710 = vunpack.c.h.b16 %v2054
  %v2711 = vunpack.c.l.b16 %v2055
  %v2712 = vunpack.c.h.b16 %v2055
  %v2713 = vunpack.c.l.b16 %v2056
  %v2714 = vunpack.c.h.b16 %v2056
  %v2715 = vunpack.c.l.b16 %v2057
  %v2716 = vunpack.c.h.b16 %v2057
  %v2717 = vunpack.c.l.b16 %v2058
  %v2718 = vunpack.c.h.b16 %v2058
  %v2719 = vunpack.c.l.b16 %v2059
  %v2720 = vunpack.c.h.b16 %v2059
  %v2721 = vunpack.c.l.b16 %v2060
  %v2722 = vunpack.c.h.b16 %v2060
  %v2723 = vunpack.c.l.b16 %v2061
  %v2724 = vunpack.c.h.b16 %v2061
  %v2725 = vunpack.c.l.b16 %v2062
  %v2726 = vunpack.c.h.b16 %v2062
  %v2727 = vunpack.c.l.b16 %v2063
  %v2728 = vunpack.c.h.b16 %v2063
  %v2729 = vunpack.c.l.b16 %v2064
  %v2730 = vunpack.c.h.b16 %v2064
  %v2731 = vunpack.c.l.b16 %v2065
  %v2732 = vunpack.c.h.b16 %v2065
  %v2733 = vunpack.c.l.b16 %v2066
  %v2734 = vunpack.c.h.b16 %v2066
  %v2735 = vunpack.c.l.b16 %v2067
  %v2736 = vunpack.c.h.b16 %v2067
  %v2737 = vunpack.c.l.b16 %v2068
  %v2738 = vunpack.c.h.b16 %v2068
  %v2739 = vunpack.c.l.b16 %v2069
  %v2740 = vunpack.c.h.b16 %v2069
  %v2741 = vunpack.c.l.b16 %v2070
  %v2742 = vunpack.c.h.b16 %v2070
  %v2743 = vunpack.c.l.b16 %v2071
  %v2744 = vunpack.c.h.b16 %v2071
  %v2745 = vunpack.c.l.b16 %v2072
  %v2746 = vunpack.c.h.b16 %v2072
  %v2747 = vunpack.c.l.b16 %v2073
  %v2748 = vunpack.c.h.b16 %v2073
  %v2749 = vunpack.c.l.b16 %v2074
  %v2750 = vunpack.c.h.b16 %v2074
  %v2751 = vunpack.c.l.b16 %v2075
  %v2752 = vunpack.c.h.b16 %v2075
  %v2753 = vunpack.c.l.b16 %v2076
  %v2754 = vunpack.c.h.b16 %v2076
  %v2755 = vunpack.c.l.b16 %v2077
  %v2756 = vunpack.c.h.b16 %v2077
  %v2757 = vunpack.c.l.b16 %v2078
  %v2758 = vunpack.c.h.b16 %v2078
  %v2759 = vunpack.c.l.b16 %v2079
  %v2760 = vunpack.c.h.b16 %v2079
  %v2761 = vunpack.c.l.b16 %v2080
  %v2762 = vunpack.c.h.b16 %v2080
  %v2763 = vunpack.c.l.b16 %v2081
  %v2764 = vunpack.c.h.b16 %v2081
  %v2765 = vunpack.c.l.b16 %v2082
  %v2766 = vunpack.c.h.b16 %v2082
  %v2767 = vunpack.c.l.b16 %v2083
  %v2768 = vunpack.c.h.b16 %v2083
  %v2769 = vunpack.c.l.b16 %v2084
  %v2770 = vunpack.c.h.b16 %v2084
  %v2771 = vunpack.c.l.b16 %v2085
  %v2772 = vunpack.c.h.b16 %v2085
  %v2773 = vunpack.c.l.b16 %v2086
  %v2774 = vunpack.c.h.b16 %v2086
  %v2775 = vunpack.c.l.b16 %v2087
  %v2776 = vunpack.c.h.b16 %v2087
  %v2777 = vunpack.c.l.b16 %v2088
  %v2778 = vunpack.c.h.b16 %v2088
  %v2779 = vunpack.c.l.b16 %v2089
  %v2780 = vunpack.c.h.b16 %v2089
  %v2781 = vunpack.c.l.b16 %v2090
  %v2782 = vunpack.c.h.b16 %v2090
  %v2783 = vunpack.c.l.b16 %v2091
  %v2784 = vunpack.c.h.b16 %v2091
  %v2785 = vunpack.c.l.b16 %v2092
  %v2786 = vunpack.c.h.b16 %v2092
  %v2787 = vunpack.c.l.b16 %v2093
  %v2788 = vunpack.c.h.b16 %v2093
  %v2789 = vunpack.c.l.b16 %v2094
  %v2790 = vunpack.c.h.b16 %v2094
  %v2791 = vunpack.c.l.b16 %v2095
  %v2792 = vunpack.c.h.b16 %v2095
  %v2793 = vunpack.c.l.b16 %v2096
  %v2794 = vunpack.c.h.b16 %v2096
  %v2795 = vunpack.c.l.b16 %v2097
  %v2796 = vunpack.c.h.b16 %v2097
  %v2797 = vunpack.c.l.b16 %v2098
  %v2798 = vunpack.c.h.b16 %v2098
  %v2799 = vunpack.c.l.b16 %v2099
  %v2800 = vunpack.c.h.b16 %v2099
  %v2801 = vunpack.c.l.b16 %v2100
  %v2802 = vunpack.c.h.b16 %v2100
  %v2803 = vunpack.c.l.b16 %v2101
  %v2804 = vunpack.c.h.b16 %v2101
  %v2805 = vunpack.c.l.b16 %v2102
  %v2806 = vunpack.c.h.b16 %v2102
  %v2807 = vunpack.c.l.b16 %v2103
  %v2808 = vunpack.c.h.b16 %v2103
  %v2809 = vunpack.c.l.b16 %v2104
  %v2810 = vunpack.c.h.b16 %v2104
  %v2811 = vunpack.c.l.b16 %v2105
  %v2812 = vunpack.c.h.b16 %v2105
  %v2813 = vunpack.c.l.b16 %v2106
  %v2814 = vunpack.c.h.b16 %v2106
  %v2815 = vunpack.c.l.b16 %v2107
  %v2816 = vunpack.c.h.b16 %v2107
  %v2817 = vunpack.c.l.b16 %v2108
  %v2818 = vunpack.c.h.b16 %v2108
  %v2819 = vunpack.c.l.b16 %v2109
  %v2820 = vunpack.c.h.b16 %v2109
  %v2821 = vunpack.c.l.b16 %v2110
  %v2822 = vunpack.c.h.b16 %v2110
  %v2823 = vunpack.c.l.b16 %v2111
  %v2824 = vunpack.c.h.b16 %v2111
  %v2825 = vunpack.c.l.b16 %v2112
  %v2826 = vunpack.c.h.b16 %v2112
  %v2827 = vunpack.c.l.b16 %v2113
  %v2828 = vunpack.c.h.b16 %v2113
  %v2829 = vunpack.c.l.b16 %v2114
  %v2830 = vunpack.c.h.b16 %v2114
  %v2831 = vunpack.c.l.b16 %v2115
  %v2832 = vunpack.c.h.b16 %v2115
  %v2833 = vunpack.c.l.b16 %v2116
  %v2834 = vunpack.c.h.b16 %v2116
  %v2835 = vunpack.c.l.b16 %v2117
  %v2836 = vunpack.c.h.b16 %v2117
  %v2837 = vunpack.c.l.b16 %v2118
  %v2838 = vunpack.c.h.b16 %v2118
  %v2839 = vunpack.c.l.b16 %v2119
  %v2840 = vunpack.c.h.b16 %v2119
  %v2841 = vunpack.c.l.b16 %v2120
  %v2842 = vunpack.c.h.b16 %v2120
  %v2843 = vunpack.c.l.b16 %v2121
  %v2844 = vunpack.c.h.b16 %v2121
  %v2845 = vunpack.c.l.b16 %v2122
  %v2846 = vunpack.c.h.b16 %v2122
  %v2847 = vunpack.c.l.b16 %v2123
  %v2848 = vunpack.c.h.b16 %v2123
  %v2849 = vunpack.c.l.b16 %v2124
  %v2850 = vunpack.c.h.b16 %v2124
  %v2851 = vunpack.c.l.b16 %v2125
  %v2852 = vunpack.c.h.b16 %v2125
  %v2853 = vunpack.c.l.b16 %v2126
  %v2854 = vunpack.c.h.b16 %v2126
  %v2855 = vunpack.c.l.b16 %v2127
  %v2856 = vunpack.c.h.b16 %v2127
  %v2857 = vunpack.c.l.b16 %v2128
  %v2858 = vunpack.c.h.b16 %v2128
  %v2859 = vunpack.c.l.b16 %v2129
  %v2860 = vunpack.c.h.b16 %v2129
  %v2861 = vunpack.c.l.b16 %v2130
  %v2862 = vunpack.c.h.b16 %v2130
  %v2863 = vunpack.c.l.b16 %v2131
  %v2864 = vunpack.c.h.b16 %v2131
  %v2865 = vunpack.c.l.b16 %v2132
  %v2866 = vunpack.c.h.b16 %v2132
  %v2867 = vunpack.c.l.b16 %v2133
  %v2868 = vunpack.c.h.b16 %v2133
  %v2869 = vunpack.c.l.b16 %v2134
  %v2870 = vunpack.c.h.b16 %v2134
  %v2871 = vunpack.c.l.b16 %v2135
  %v2872 = vunpack.c.h.b16 %v2135
  %v2873 = vunpack.c.l.b16 %v2136
  %v2874 = vunpack.c.h.b16 %v2136
  %v2875 = vunpack.c.l.b16 %v2137
  %v2876 = vunpack.c.h.b16 %v2137
  %v2877 = vunpack.c.l.b16 %v2138
  %v2878 = vunpack.c.h.b16 %v2138
  %v2879 = vunpack.c.l.b16 %v2139
  %v2880 = vunpack.c.h.b16 %v2139
  %v2881 = vunpack.c.l.b16 %v2140
  %v2882 = vunpack.c.h.b16 %v2140
  %v2883 = vunpack.c.l.b16 %v2141
  %v2884 = vunpack.c.h.b16 %v2141
  %v2885 = vunpack.c.l.b16 %v2142
  %v2886 = vunpack.c.h.b16 %v2142
  %v2887 = vunpack.c.l.b16 %v2143
  %v2888 = vunpack.c.h.b16 %v2143
  %v2889 = vunpack.c.l.b16 %v2144
  %v2890 = vunpack.c.h.b16 %v2144
  %v2891 = vunpack.c.l.b16 %v2145
  %v2892 = vunpack.c.h.b16 %v2145
  %v2893 = vunpack.c.l.b16 %v2146
  %v2894 = vunpack.c.h.b16 %v2146
  %v2895 = vunpack.c.l.b16 %v2147
  %v2896 = vunpack.c.h.b16 %v2147
  %v2897 = vunpack.c.l.b16 %v2148
  %v2898 = vunpack.c.h.b16 %v2148
  %v2899 = vunpack.c.l.b16 %v2149
  %v2900 = vunpack.c.h.b16 %v2149
  %v2901 = vunpack.c.l.b16 %v2150
  %v2902 = vunpack.c.h.b16 %v2150
  %v2903 = vunpack.c.l.b16 %v2151
  %v2904 = vunpack.c.h.b16 %v2151
  %v2905 = vunpack.c.l.b16 %v2152
  %v2906 = vunpack.c.h.b16 %v2152
  %v2907 = vunpack.c.l.b16 %v2153
  %v2908 = vunpack.c.h.b16 %v2153
  %v2909 = vunpack.c.l.b16 %v2154
  %v2910 = vunpack.c.h.b16 %v2154
  %v2911 = vunpack.c.l.b16 %v2155
  %v2912 = vunpack.c.h.b16 %v2155
  %v2913 = vunpack.c.l.b16 %v2156
  %v2914 = vunpack.c.h.b16 %v2156
  %v2915 = vunpack.c.l.b16 %v2157
  %v2916 = vunpack.c.h.b16 %v2157
  %v2917 = vunpack.c.l.b16 %v2158
  %v2918 = vunpack.c.h.b16 %v2158
  %v2919 = vunpack.c.l.b16 %v2159
  %v2920 = vunpack.c.h.b16 %v2159
  %v2921 = vunpack.c.l.b16 %v2160
  %v2922 = vunpack.c.h.b16 %v2160
  %v2923 = vunpack.c.l.b16 %v2161
  %v2924 = vunpack.c.h.b16 %v2161
  %v2925 = vunpack.c.l.b16 %v2162
  %v2926 = vunpack.c.h.b16 %v2162
  %v2927 = vunpack.c.l.b16 %v2163
  %v2928 = vunpack.c.h.b16 %v2163
  %v2929 = vunpack.c.l.b16 %v2164
  %v2930 = vunpack.c.h.b16 %v2164
  %v2931 = vunpack.c.l.b16 %v2165
  %v2932 = vunpack.c.h.b16 %v2165
  %v2933 = vunpack.c.l.b16 %v2166
  %v2934 = vunpack.c.h.b16 %v2166
  %v2935 = vunpack.c.l.b16 %v2167
  %v2936 = vunpack.c.h.b16 %v2167
  %v2937 = vunpack.c.l.b16 %v2168
  %v2938 = vunpack.c.h.b16 %v2168
  %v2939 = vunpack.c.l.b16 %v2169
  %v2940 = vunpack.c.h.b16 %v2169
  %v2941 = vunpack.c.l.b16 %v2170
  %v2942 = vunpack.c.h.b16 %v2170
  %v2943 = vunpack.c.l.b16 %v2171
  %v2944 = vunpack.c.h.b16 %v2171
  %v2945 = vunpack.c.l.b16 %v2172
  %v2946 = vunpack.c.h.b16 %v2172
  %v2947 = vunpack.c.l.b16 %v2173
  %v2948 = vunpack.c.h.b16 %v2173
  %v2949 = vunpack.c.l.b16 %v2174
  %v2950 = vunpack.c.h.b16 %v2174
  %v2951 = vunpack.c.l.b16 %v2175
  %v2952 = vunpack.c.h.b16 %v2175
  %v2953 = vunpack.c.l.b16 %v2176
  %v2954 = vunpack.c.h.b16 %v2176
  %v2955 = vunpack.c.l.b16 %v2177
  %v2956 = vunpack.c.h.b16 %v2177
  %v2957 = vunpack.c.l.b16 %v2178
  %v2958 = vunpack.c.h.b16 %v2178
  %v2959 = vunpack.c.l.b16 %v2179
  %v2960 = vunpack.c.h.b16 %v2179
  %v2961 = vunpack.c.l.b16 %v2180
  %v2962 = vunpack.c.h.b16 %v2180
  %v2963 = vunpack.c.l.b16 %v2181
  %v2964 = vunpack.c.h.b16 %v2181
  %v2965 = vunpack.c.l.b16 %v2182
  %v2966 = vunpack.c.h.b16 %v2182
  %v2967 = vunpack.c.l.b16 %v2183
  %v2968 = vunpack.c.h.b16 %v2183
  %v2969 = vunpack.c.l.b16 %v2184
  %v2970 = vunpack.c.h.b16 %v2184
  %v2971 = vunpack.c.l.b16 %v2185
  %v2972 = vunpack.c.h.b16 %v2185
  %v2973 = vunpack.c.l.b16 %v2186
  %v2974 = vunpack.c.h.b16 %v2186
  %v2975 = vunpack.c.l.b16 %v2187
  %v2976 = vunpack.c.h.b16 %v2187
  %v2977 = vunpack.c.l.b16 %v2188
  %v2978 = vunpack.c.h.b16 %v2188
  %v2979 = vunpack.c.l.b16 %v2189
  %v2980 = vunpack.c.h.b16 %v2189
  %v2981 = vunpack.c.l.b16 %v2190
  %v2982 = vunpack.c.h.b16 %v2190
  %v2983 = vunpack.c.l.b16 %v2191
  %v2984 = vunpack.c.h.b16 %v2191
  %v2985 = vunpack.c.l.b16 %v2192
  %v2986 = vunpack.c.h.b16 %v2192
  %v2987 = vunpack.c.l.b16 %v2193
  %v2988 = vunpack.c.h.b16 %v2193
  %v2989 = vunpack.c.l.b16 %v2194
  %v2990 = vunpack.c.h.b16 %v2194
  %v2991 = vunpack.c.l.b16 %v2195
  %v2992 = vunpack.c.h.b16 %v2195
  %v2993 = vunpack.c.l.b16 %v2196
  %v2994 = vunpack.c.h.b16 %v2196
  %v2995 = vunpack.c.l.b16 %v2197
  %v2996 = vunpack.c.h.b16 %v2197
  %v2997 = vunpack.c.l.b16 %v2198
  %v2998 = vunpack.c.h.b16 %v2198
  %v2999 = vunpack.c.l.b16 %v2199
  %v3000 = vunpack.c.h.b16 %v2199
  %v3001 = vunpack.c.l.b16 %v2200
  %v3002 = vunpack.c.h.b16 %v2200
  %v3003 = vunpack.c.l.b16 %v2201
  %v3004 = vunpack.c.h.b16 %v2201
  %v3005 = vunpack.c.l.b16 %v2202
  %v3006 = vunpack.c.h.b16 %v2202
  %v3007 = vunpack.c.l.b16 %v2203
  %v3008 = vunpack.c.h.b16 %v2203
  %v3009 = vunpack.c.l.b16 %v2204
  %v3010 = vunpack.c.h.b16 %v2204
  %v3011 = vunpack.c.l.b16 %v2205
  %v3012 = vunpack.c.h.b16 %v2205
  %v3013 = vpack.c.b16 %v2573, %v2571
  %v3014 = vpack.c.b16 %v2574, %v2572
  %v3015 = vpack.c.b16 %v2577, %v2575
  %v3016 = vpack.c.b16 %v2578, %v2576
  %v3017 = vpack.c.b16 %v2581, %v2579
  %v3018 = vpack.c.b16 %v2582, %v2580
  %v3019 = vpack.c.b16 %v2585, %v2583
  %v3020 = vpack.c.b16 %v2586, %v2584
  %v3021 = vpack.c.b16 %v2589, %v2587
  %v3022 = vpack.c.b16 %v2590, %v2588
  %v3023 = vpack.c.b16 %v2593, %v2591
  %v3024 = vpack.c.b16 %v2594, %v2592
  %v3025 = vpack.c.b16 %v2597, %v2595
  %v3026 = vpack.c.b16 %v2598, %v2596
  %v3027 = vpack.c.b16 %v2601, %v2599
  %v3028 = vpack.c.b16 %v2602, %v2600
  %v3029 = vpack.c.b16 %v2605, %v2603
  %v3030 = vpack.c.b16 %v2606, %v2604
  %v3031 = vpack.c.b16 %v2609, %v2607
  %v3032 = vpack.c.b16 %v2610, %v2608
  %v3033 = vpack.c.b16 %v2613, %v2611
  %v3034 = vpack.c.b16 %v2614, %v2612
  %v3035 = vpack.c.b16 %v2617, %v2615
  %v3036 = vpack.c.b16 %v2618, %v2616
  %v3037 = vpack.c.b16 %v2621, %v2619
  %v3038 = vpack.c.b16 %v2622, %v2620
  %v3039 = vpack.c.b16 %v2625, %v2623
  %v3040 = vpack.c.b16 %v2626, %v2624
  %v3041 = vpack.c.b16 %v2629, %v2627
  %v3042 = vpack.c.b16 %v2630, %v2628
  %v3043 = vpack.c.b16 %v2633, %v2631
  %v3044 = vpack.c.b16 %v2634, %v2632
  %v3045 = vpack.c.b16 %v2637, %v2635
  %v3046 = vpack.c.b16 %v2638, %v2636
  %v3047 = vpack.c.b16 %v2641, %v2639
  %v3048 = vpack.c.b16 %v2642, %v2640
  %v3049 = vpack.c.b16 %v2645, %v2643
  %v3050 = vpack.c.b16 %v2646, %v2644
  %v3051 = vpack.c.b16 %v2649, %v2647
  %v3052 = vpack.c.b16 %v2650, %v2648
  %v3053 = vpack.c.b16 %v2653, %v2651
  %v3054 = vpack.c.b16 %v2654, %v2652
  %v3055 = vpack.c.b16 %v2657, %v2655
  %v3056 = vpack.c.b16 %v2658, %v2656
  %v3057 = vpack.c.b16 %v2661, %v2659
  %v3058 = vpack.c.b16 %v2662, %v2660
  %v3059 = vpack.c.b16 %v2665, %v2663
  %v3060 = vpack.c.b16 %v2666, %v2664
  %v3061 = vpack.c.b16 %v2669, %v2667
  %v3062 = vpack.c.b16 %v2670, %v2668
  %v3063 = vpack.c.b16 %v2673, %v2671
  %v3064 = vpack.c.b16 %v2674, %v2672
  %v3065 = vpack.c.b16 %v2677, %v2675
  %v3066 = vpack.c.b16 %v2678, %v2676
  %v3067 = vpack.c.b16 %v2681, %v2679
  %v3068 = vpack.c.b16 %v2682, %v2680
  %v3069 = vpack.c.b16 %v2685, %v2683
  %v3070 = vpack.c.b16 %v2686, %v2684
  %v3071 = vpack.c.b16 %v2689, %v2687
  %v3072 = vpack.c.b16 %v2690, %v2688
  %v3073 = vpack.c.b16 %v2693, %v2691
  %v3074 = vpack.c.b16 %v2694, %v2692
  %v3075 = vpack.c.b16 %v2697, %v2695
  %v3076 = vpack.c.b16 %v2698, %v2696
  %v3077 = vpack.c.b16 %v2701, %v2699
  %v3078 = vpack.c.b16 %v2702, %v2700
  %v3079 = vpack.c.b16 %v2705, %v2703
  %v3080 = vpack.c.b16 %v2706, %v2704
  %v3081 = vpack.c.b16 %v2709, %v2707
  %v3082 = vpack.c.b16 %v2710, %v2708
  %v3083 = vpack.c.b16 %v2713, %v2711
  %v3084 = vpack.c.b16 %v2714, %v2712
  %v3085 = vpack.c.b16 %v2717, %v2715
  %v3086 = vpack.c.b16 %v2718, %v2716
  %v3087 = vpack.c.b16 %v2721, %v2719
  %v3088 = vpack.c.b16 %v2722, %v2720
  %v3089 = vpack.c.b16 %v2725, %v2723
  %v3090 = vpack.c.b16 %v2726, %v2724
  %v3091 = vpack.c.b16 %v2729, %v2727
  %v3092 = vpack.c.b16 %v2730, %v2728
  %v3093 = vpack.c.b16 %v2733, %v2731
  %v3094 = vpack.c.b16 %v2734, %v2732
  %v3095 = vpack.c.b16 %v2737, %v2735
  %v3096 = vpack.c.b16 %v2738, %v2736
  %v3097 = vpack.c.b16 %v2741, %v2739
  %v3098 = vpack.c.b16 %v2742, %v2740
  %v3099 = vpack.c.b16 %v2745, %v2743
  %v3100 = vpack.c.b16 %v2746, %v2744
  %v3101 = vpack.c.b16 %v2749, %v2747
  %v3102 = vpack.c.b16 %v2750, %v2748
  %v3103 = vpack.c.b16 %v2753, %v2751
  %v3104 = vpack.c.b16 %v2754, %v2752
  %v3105 = vpack.c.b16 %v2757, %v2755
  %v3106 = vpack.c.b16 %v2758, %v2756
  %v3107 = vpack.c.b16 %v2761, %v2759
  %v3108 = vpack.c.b16 %v2762, %v2760
  %v3109 = vpack.c.b16 %v2765, %v2763
  %v3110 = vpack.c.b16 %v2766, %v2764
  %v3111 = vpack.c.b16 %v2769, %v2767
  %v3112 = vpack.c.b16 %v2770, %v2768
  %v3113 = vpack.c.b16 %v2773, %v2771
  %v3114 = vpack.c.b16 %v2774, %v2772
  %v3115 = vpack.c.b16 %v2777, %v2775
  %v3116 = vpack.c.b16 %v2778, %v2776
  %v3117 = vpack.c.b16 %v2781, %v2779
  %v3118 = vpack.c.b16 %v2782, %v2780
  %v3119 = vpack.c.b16 %v2785, %v2783
  %v3120 = vpack.c.b16 %v2786, %v2784
  %v3121 = vpack.c.b16 %v2789, %v2787
  %v3122 = vpack.c.b16 %v2790, %v2788
  %v3123 = vpack.c.b16 %v2793, %v2791
  %v3124 = vpack.c.b16 %v2794, %v2792
  %v3125 = vpack.c.b16 %v2797, %v2795
  %v3126 = vpack.c.b16 %v2798, %v2796
  %v3127 = vpack.c.b16 %v2801, %v2799
  %v3128 = vpack.c.b16 %v2802, %v2800
  %v3129 = vpack.c.b16 %v2805, %v2803
  %v3130 = vpack.c.b16 %v2806, %v2804
  %v3131 = vpack.c.b16 %v2809, %v2807
  %v3132 = vpack.c.b16 %v2810, %v2808
  %v3133 = vpack.c.b16 %v2813, %v2811
  %v3134 = vpack.c.b16 %v2814, %v2812
  %v3135 = vpack.c.b16 %v2817, %v2815
  %v3136 = vpack.c.b16 %v2818, %v2816
  %v3137 = vpack.c.b16 %v2821, %v2819
  %v3138 = vpack.c.b16 %v2822, %v2820
  %v3139 = vpack.c.b16 %v2825, %v2823
  %v3140 = vpack.c.b16 %v2826, %v2824
  %v3141 = vpack.c.b16 %v2829, %v2827
  %v3142 = vpack.c.b16 %v2830, %v2828
  %v3143 = vpack.c.b16 %v2833, %v2831
  %v3144 = vpack.c.b16 %v2834, %v2832
  %v3145 = vpack.c.b16 %v2837, %v2835
  %v3146 = vpack.c.b16 %v2838, %v2836
  %v3147 = vpack.c.b16 %v2841, %v2839
  %v3148 = vpack.c.b16 %v2842, %v2840
  %v3149 = vpack.c.b16 %v2845, %v2843
  %v3150 = vpack.c.b16 %v2846, %v2844
  %v3151 = vpack.c.b16 %v2849, %v2847
  %v3152 = vpack.c.b16 %v2850, %v2848
  %v3153 = vpack.c.b16 %v2853, %v2851
  %v3154 = vpack.c.b16 %v2854, %v2852
  %v3155 = vpack.c.b16 %v2857, %v2855
  %v3156 = vpack.c.b16 %v2858, %v2856
  %v3157 = vpack.c.b16 %v2861, %v2859
  %v3158 = vpack.c.b16 %v2862, %v2860
  %v3159 = vpack.c.b16 %v2865, %v2863
  %v3160 = vpack.c.b16 %v2866, %v2864
  %v3161 = vpack.c.b16 %v2869, %v2867
  %v3162 = vpack.c.b16 %v2870, %v2868
  %v3163 = vpack.c.b16 %v2873, %v2871
  %v3164 = vpack.c.b16 %v2874, %v2872
  %v3165 = vpack.c.b16 %v2877, %v2875
  %v3166 = vpack.c.b16 %v2878, %v2876
  %v3167 = vpack.c.b16 %v2881, %v2879
  %v3168 = vpack.c.b16 %v2882, %v2880
  %v3169 = vpack.c.b16 %v2885, %v2883
  %v3170 = vpack.c.b16 %v2886, %v2884
  %v3171 = vpack.c.b16 %v2889, %v2887
  %v3172 = vpack.c.b16 %v2890, %v2888
  %v3173 = vpack.c.b16 %v2893, %v2891
  %v3174 = vpack.c.b16 %v2894, %v2892
  %v3175 = vpack.c.b16 %v2897, %v2895
  %v3176 = vpack.c.b16 %v2898, %v2896
  %v3177 = vpack.c.b16 %v2901, %v2899
  %v3178 = vpack.c.b16 %v2902, %v2900
  %v3179 = vpack.c.b16 %v2905, %v2903
  %v3180 = vpack.c.b16 %v2906, %v2904
  %v3181 = vpack.c.b16 %v2909, %v2907
  %v3182 = vpack.c.b16 %v2910, %v2908
  %v3183 = vpack.c.b16 %v2913, %v2911
  %v3184 = vpack.c.b16 %v2914, %v2912
  %v3185 = vpack.c.b16 %v2917, %v2915
  %v3186 = vpack.c.b16 %v2918, %v2916
  %v3187 = vpack.c.b16 %v2921, %v2919
  %v3188 = vpack.c.b16 %v2922, %v2920
  %v3189 = vpack.c.b16 %v2925, %v2923
  %v3190 = vpack.c.b16 %v2926, %v2924
  %v3191 = vpack.c.b16 %v2929, %v2927
  %v3192 = vpack.c.b16 %v2930, %v2928
  %v3193 = vpack.c.b16 %v2933, %v2931
  %v3194 = vpack.c.b16 %v2934, %v2932
  %v3195 = vpack.c.b16 %v2937, %v2935
  %v3196 = vpack.c.b16 %v2938, %v2936
  %v3197 = vpack.c.b16 %v2941, %v2939
  %v3198 = vpack.c.b16 %v2942, %v2940
  %v3199 = vpack.c.b16 %v2945, %v2943
  %v3200 = vpack.c.b16 %v2946, %v2944
  %v3201 = vpack.c.b16 %v2949, %v2947
  %v3202 = vpack.c.b16 %v2950, %v2948
  %v3203 = vpack.c.b16 %v2953, %v2951
  %v3204 = vpack.c.b16 %v2954, %v2952
  %v3205 = vpack.c.b16 %v2957, %v2955
  %v3206 = vpack.c.b16 %v2958, %v2956
  %v3207 = vpack.c.b16 %v2961, %v2959
  %v3208 = vpack.c.b16 %v2962, %v2960
  %v3209 = vpack.c.b16 %v2965, %v2963
  %v3210 = vpack.c.b16 %v2966, %v2964
  %v3211 = vpack.c.b16 %v2969, %v2967
  %v3212 = vpack.c.b16 %v2970, %v2968
  %v3213 = vpack.c.b16 %v2973, %v2971
  %v3214 = vpack.c.b16 %v2974, %v2972
  %v3215 = vpack.c.b16 %v2977, %v2975
  %v3216 = vpack.c.b16 %v2978, %v2976
  %v3217 = vpack.c.b16 %v2981, %v2979
  %v3218 = vpack.c.b16 %v2982, %v2980
  %v3219 = vpack.c.b16 %v2985, %v2983
  %v3220 = vpack.c.b16 %v2986, %v2984
  %v3221 = vpack.c.b16 %v2989, %v2987
  %v3222 = vpack.c.b16 %v2990, %v2988
  %v3223 = vpack.c.b16 %v2993, %v2991
  %v3224 = vpack.c.b16 %v2994, %v2992
  %v3225 = vpack.c.b16 %v2997, %v2995
  %v3226 = vpack.c.b16 %v2998, %v2996
  %v3227 = vpack.c.b16 %v3001, %v2999
  %v3228 = vpack.c.b16 %v3002, %v3000
  %v3229 = vpack.c.b16 %v3005, %v3003
  %v3230 = vpack.c.b16 %v3006, %v3004
  %v3231 = vpack.c.b16 %v3009, %v3007
  %v3232 = vpack.c.b16 %v3010, %v3008
  %v3233 = vpack.c.b16 %v3011, %v3011
  %v3234 = vpack.c.b16 %v3012, %v3012
  %vm3455 = vcmask 818176
  %v3457 = vsel %vm3455, %v2309, 0
  %v3460 = vsel %vm3455, %v2323, 0
  %vm3462 = vcmask 1041408
  %v3464 = vsel %vm3462, %v3233, 0
  %v3467 = vsel %vm3462, %v3234, 0
  %3469 = vmatpush.bf16.msra.mxu0 %v3027
  %3470 = vmatpush.bf16.msra.mxu0 %v3025
  %3471 = vmatpush.bf16.msra.mxu0 %v3023
  %3472 = vmatpush.bf16.msra.mxu0 %v3021
  %3473 = vmatpush.bf16.msra.mxu0 %v3019
  %3474 = vmatpush.bf16.msra.mxu0 %v3017
  %3475 = vmatpush.bf16.msra.mxu0 %v3015
  %3476 = vmatpush.bf16.msra.mxu0 %v3013
  %3477 = vmatmul.bf16.gmra.mxu0 %v2296
  %v3478 = vpop.f32.mrf.mxu0
  %v3479 = vadd.f32 %v2208, %v3478
  %v3480 = vpop.f32.mrf.mxu0
  %v3481 = vadd.f32 %v2208, %v3480
  %3482 = vmatmul.bf16.gmra.mxu0 %v2310
  %v3483 = vpop.f32.mrf.mxu0
  %v3484 = vadd.f32 %v2208, %v3483
  %v3485 = vpop.f32.mrf.mxu0
  %v3486 = vadd.f32 %v2208, %v3485
  %3487 = vdwg.mxu0
  %3488 = vmatpush.bf16.msra.mxu0 %v3043
  %3489 = vmatpush.bf16.msra.mxu0 %v3041
  %3490 = vmatpush.bf16.msra.mxu0 %v3039
  %3491 = vmatpush.bf16.msra.mxu0 %v3037
  %3492 = vmatpush.bf16.msra.mxu0 %v3035
  %3493 = vmatpush.bf16.msra.mxu0 %v3033
  %3494 = vmatpush.bf16.msra.mxu0 %v3031
  %3495 = vmatpush.bf16.msra.mxu0 %v3029
  %3496 = vmatmul.bf16.gmra.mxu0 %v2297
  %v3497 = vpop.f32.mrf.mxu0
  %v3498 = vadd.f32 %v3479, %v3497
  %v3499 = vpop.f32.mrf.mxu0
  %v3500 = vadd.f32 %v3481, %v3499
  %3501 = vmatmul.bf16.gmra.mxu0 %v2311
  %v3502 = vpop.f32.mrf.mxu0
  %v3503 = vadd.f32 %v3484, %v3502
  %v3504 = vpop.f32.mrf.mxu0
  %v3505 = vadd.f32 %v3486, %v3504
  %3506 = vdwg.mxu0
  %3507 = vmatpush.bf16.msra.mxu0 %v3059
  %3508 = vmatpush.bf16.msra.mxu0 %v3057
  %3509 = vmatpush.bf16.msra.mxu0 %v3055
  %3510 = vmatpush.bf16.msra.mxu0 %v3053
  %3511 = vmatpush.bf16.msra.mxu0 %v3051
  %3512 = vmatpush.bf16.msra.mxu0 %v3049
  %3513 = vmatpush.bf16.msra.mxu0 %v3047
  %3514 = vmatpush.bf16.msra.mxu0 %v3045
  %3515 = vmatmul.bf16.gmra.mxu0 %v2298
  %v3516 = vpop.f32.mrf.mxu0
  %v3517 = vadd.f32 %v3498, %v3516
  %v3518 = vpop.f32.mrf.mxu0
  %v3519 = vadd.f32 %v3500, %v3518
  %3520 = vmatmul.bf16.gmra.mxu0 %v2312
  %v3521 = vpop.f32.mrf.mxu0
  %v3522 = vadd.f32 %v3503, %v3521
  %v3523 = vpop.f32.mrf.mxu0
  %v3524 = vadd.f32 %v3505, %v3523
  %3525 = vdwg.mxu0
  %3526 = vmatpush.bf16.msra.mxu0 %v3075
  %3527 = vmatpush.bf16.msra.mxu0 %v3073
  %3528 = vmatpush.bf16.msra.mxu0 %v3071
  %3529 = vmatpush.bf16.msra.mxu0 %v3069
  %3530 = vmatpush.bf16.msra.mxu0 %v3067
  %3531 = vmatpush.bf16.msra.mxu0 %v3065
  %3532 = vmatpush.bf16.msra.mxu0 %v3063
  %3533 = vmatpush.bf16.msra.mxu0 %v3061
  %3534 = vmatmul.bf16.gmra.mxu0 %v2299
  %v3535 = vpop.f32.mrf.mxu0
  %v3536 = vadd.f32 %v3517, %v3535
  %v3537 = vpop.f32.mrf.mxu0
  %v3538 = vadd.f32 %v3519, %v3537
  %3539 = vmatmul.bf16.gmra.mxu0 %v2313
  %v3540 = vpop.f32.mrf.mxu0
  %v3541 = vadd.f32 %v3522, %v3540
  %v3542 = vpop.f32.mrf.mxu0
  %v3543 = vadd.f32 %v3524, %v3542
  %3544 = vdwg.mxu0
  %3545 = vmatpush.bf16.msra.mxu0 %v3091
  %3546 = vmatpush.bf16.msra.mxu0 %v3089
  %3547 = vmatpush.bf16.msra.mxu0 %v3087
  %3548 = vmatpush.bf16.msra.mxu0 %v3085
  %3549 = vmatpush.bf16.msra.mxu0 %v3083
  %3550 = vmatpush.bf16.msra.mxu0 %v3081
  %3551 = vmatpush.bf16.msra.mxu0 %v3079
  %3552 = vmatpush.bf16.msra.mxu0 %v3077
  %3553 = vmatmul.bf16.gmra.mxu0 %v2300
  %v3554 = vpop.f32.mrf.mxu0
  %v3555 = vadd.f32 %v3536, %v3554
  %v3556 = vpop.f32.mrf.mxu0
  %v3557 = vadd.f32 %v3538, %v3556
  %3558 = vmatmul.bf16.gmra.mxu0 %v2314
  %v3559 = vpop.f32.mrf.mxu0
  %v3560 = vadd.f32 %v3541, %v3559
  %v3561 = vpop.f32.mrf.mxu0
  %v3562 = vadd.f32 %v3543, %v3561
  %3563 = vdwg.mxu0
  %3564 = vmatpush.bf16.msra.mxu0 %v3107
  %3565 = vmatpush.bf16.msra.mxu0 %v3105
  %3566 = vmatpush.bf16.msra.mxu0 %v3103
  %3567 = vmatpush.bf16.msra.mxu0 %v3101
  %3568 = vmatpush.bf16.msra.mxu0 %v3099
  %3569 = vmatpush.bf16.msra.mxu0 %v3097
  %3570 = vmatpush.bf16.msra.mxu0 %v3095
  %3571 = vmatpush.bf16.msra.mxu0 %v3093
  %3572 = vmatmul.bf16.gmra.mxu0 %v2301
  %v3573 = vpop.f32.mrf.mxu0
  %v3574 = vadd.f32 %v3555, %v3573
  %v3575 = vpop.f32.mrf.mxu0
  %v3576 = vadd.f32 %v3557, %v3575
  %3577 = vmatmul.bf16.gmra.mxu0 %v2315
  %v3578 = vpop.f32.mrf.mxu0
  %v3579 = vadd.f32 %v3560, %v3578
  %v3580 = vpop.f32.mrf.mxu0
  %v3581 = vadd.f32 %v3562, %v3580
  %3582 = vdwg.mxu0
  %3583 = vmatpush.bf16.msra.mxu0 %v3123
  %3584 = vmatpush.bf16.msra.mxu0 %v3121
  %3585 = vmatpush.bf16.msra.mxu0 %v3119
  %3586 = vmatpush.bf16.msra.mxu0 %v3117
  %3587 = vmatpush.bf16.msra.mxu0 %v3115
  %3588 = vmatpush.bf16.msra.mxu0 %v3113
  %3589 = vmatpush.bf16.msra.mxu0 %v3111
  %3590 = vmatpush.bf16.msra.mxu0 %v3109
  %3591 = vmatmul.bf16.gmra.mxu0 %v2302
  %v3592 = vpop.f32.mrf.mxu0
  %v3593 = vadd.f32 %v3574, %v3592
  %v3594 = vpop.f32.mrf.mxu0
  %v3595 = vadd.f32 %v3576, %v3594
  %3596 = vmatmul.bf16.gmra.mxu0 %v2316
  %v3597 = vpop.f32.mrf.mxu0
  %v3598 = vadd.f32 %v3579, %v3597
  %v3599 = vpop.f32.mrf.mxu0
  %v3600 = vadd.f32 %v3581, %v3599
  %3601 = vdwg.mxu0
  %3602 = vmatpush.bf16.msra.mxu0 %v3139
  %3603 = vmatpush.bf16.msra.mxu0 %v3137
  %3604 = vmatpush.bf16.msra.mxu0 %v3135
  %3605 = vmatpush.bf16.msra.mxu0 %v3133
  %3606 = vmatpush.bf16.msra.mxu0 %v3131
  %3607 = vmatpush.bf16.msra.mxu0 %v3129
  %3608 = vmatpush.bf16.msra.mxu0 %v3127
  %3609 = vmatpush.bf16.msra.mxu0 %v3125
  %3610 = vmatmul.bf16.gmra.mxu0 %v2303
  %v3611 = vpop.f32.mrf.mxu0
  %v3612 = vadd.f32 %v3593, %v3611
  %v3613 = vpop.f32.mrf.mxu0
  %v3614 = vadd.f32 %v3595, %v3613
  %3615 = vmatmul.bf16.gmra.mxu0 %v2317
  %v3616 = vpop.f32.mrf.mxu0
  %v3617 = vadd.f32 %v3598, %v3616
  %v3618 = vpop.f32.mrf.mxu0
  %v3619 = vadd.f32 %v3600, %v3618
  %3620 = vdwg.mxu0
  %3621 = vmatpush.bf16.msra.mxu0 %v3155
  %3622 = vmatpush.bf16.msra.mxu0 %v3153
  %3623 = vmatpush.bf16.msra.mxu0 %v3151
  %3624 = vmatpush.bf16.msra.mxu0 %v3149
  %3625 = vmatpush.bf16.msra.mxu0 %v3147
  %3626 = vmatpush.bf16.msra.mxu0 %v3145
  %3627 = vmatpush.bf16.msra.mxu0 %v3143
  %3628 = vmatpush.bf16.msra.mxu0 %v3141
  %3629 = vmatmul.bf16.gmra.mxu0 %v2304
  %v3630 = vpop.f32.mrf.mxu0
  %v3631 = vadd.f32 %v3612, %v3630
  %v3632 = vpop.f32.mrf.mxu0
  %v3633 = vadd.f32 %v3614, %v3632
  %3634 = vmatmul.bf16.gmra.mxu0 %v2318
  %v3635 = vpop.f32.mrf.mxu0
  %v3636 = vadd.f32 %v3617, %v3635
  %v3637 = vpop.f32.mrf.mxu0
  %v3638 = vadd.f32 %v3619, %v3637
  %3639 = vdwg.mxu0
  %3640 = vmatpush.bf16.msra.mxu0 %v3171
  %3641 = vmatpush.bf16.msra.mxu0 %v3169
  %3642 = vmatpush.bf16.msra.mxu0 %v3167
  %3643 = vmatpush.bf16.msra.mxu0 %v3165
  %3644 = vmatpush.bf16.msra.mxu0 %v3163
  %3645 = vmatpush.bf16.msra.mxu0 %v3161
  %3646 = vmatpush.bf16.msra.mxu0 %v3159
  %3647 = vmatpush.bf16.msra.mxu0 %v3157
  %3648 = vmatmul.bf16.gmra.mxu0 %v2305
  %v3649 = vpop.f32.mrf.mxu0
  %v3650 = vadd.f32 %v3631, %v3649
  %v3651 = vpop.f32.mrf.mxu0
  %v3652 = vadd.f32 %v3633, %v3651
  %3653 = vmatmul.bf16.gmra.mxu0 %v2319
  %v3654 = vpop.f32.mrf.mxu0
  %v3655 = vadd.f32 %v3636, %v3654
  %v3656 = vpop.f32.mrf.mxu0
  %v3657 = vadd.f32 %v3638, %v3656
  %3658 = vdwg.mxu0
  %3659 = vmatpush.bf16.msra.mxu0 %v3187
  %3660 = vmatpush.bf16.msra.mxu0 %v3185
  %3661 = vmatpush.bf16.msra.mxu0 %v3183
  %3662 = vmatpush.bf16.msra.mxu0 %v3181
  %3663 = vmatpush.bf16.msra.mxu0 %v3179
  %3664 = vmatpush.bf16.msra.mxu0 %v3177
  %3665 = vmatpush.bf16.msra.mxu0 %v3175
  %3666 = vmatpush.bf16.msra.mxu0 %v3173
  %3667 = vmatmul.bf16.gmra.mxu0 %v2306
  %v3668 = vpop.f32.mrf.mxu0
  %v3669 = vadd.f32 %v3650, %v3668
  %v3670 = vpop.f32.mrf.mxu0
  %v3671 = vadd.f32 %v3652, %v3670
  %3672 = vmatmul.bf16.gmra.mxu0 %v2320
  %v3673 = vpop.f32.mrf.mxu0
  %v3674 = vadd.f32 %v3655, %v3673
  %v3675 = vpop.f32.mrf.mxu0
  %v3676 = vadd.f32 %v3657, %v3675
  %3677 = vdwg.mxu0
  %3678 = vmatpush.bf16.msra.mxu0 %v3203
  %3679 = vmatpush.bf16.msra.mxu0 %v3201
  %3680 = vmatpush.bf16.msra.mxu0 %v3199
  %3681 = vmatpush.bf16.msra.mxu0 %v3197
  %3682 = vmatpush.bf16.msra.mxu0 %v3195
  %3683 = vmatpush.bf16.msra.mxu0 %v3193
  %3684 = vmatpush.bf16.msra.mxu0 %v3191
  %3685 = vmatpush.bf16.msra.mxu0 %v3189
  %3686 = vmatmul.bf16.gmra.mxu0 %v2307
  %v3687 = vpop.f32.mrf.mxu0
  %v3688 = vadd.f32 %v3669, %v3687
  %v3689 = vpop.f32.mrf.mxu0
  %v3690 = vadd.f32 %v3671, %v3689
  %3691 = vmatmul.bf16.gmra.mxu0 %v2321
  %v3692 = vpop.f32.mrf.mxu0
  %v3693 = vadd.f32 %v3674, %v3692
  %v3694 = vpop.f32.mrf.mxu0
  %v3695 = vadd.f32 %v3676, %v3694
  %3696 = vdwg.mxu0
  %3697 = vmatpush.bf16.msra.mxu0 %v3219
  %3698 = vmatpush.bf16.msra.mxu0 %v3217
  %3699 = vmatpush.bf16.msra.mxu0 %v3215
  %3700 = vmatpush.bf16.msra.mxu0 %v3213
  %3701 = vmatpush.bf16.msra.mxu0 %v3211
  %3702 = vmatpush.bf16.msra.mxu0 %v3209
  %3703 = vmatpush.bf16.msra.mxu0 %v3207
  %3704 = vmatpush.bf16.msra.mxu0 %v3205
  %3705 = vmatmul.bf16.gmra.mxu0 %v2308
  %v3706 = vpop.f32.mrf.mxu0
  %v3707 = vadd.f32 %v3688, %v3706
  %v3708 = vpop.f32.mrf.mxu0
  %v3709 = vadd.f32 %v3690, %v3708
  %3710 = vmatmul.bf16.gmra.mxu0 %v2322
  %v3711 = vpop.f32.mrf.mxu0
  %v3712 = vadd.f32 %v3693, %v3711
  %v3713 = vpop.f32.mrf.mxu0
  %v3714 = vadd.f32 %v3695, %v3713
  %3715 = vdwg.mxu0
  %3716 = vmatpush.bf16.msra.mxu0 0
  %3717 = vmatpush.bf16.msra.mxu0 %v3464
  %3718 = vmatpush.bf16.msra.mxu0 %v3231
  %3719 = vmatpush.bf16.msra.mxu0 %v3229
  %3720 = vmatpush.bf16.msra.mxu0 %v3227
  %3721 = vmatpush.bf16.msra.mxu0 %v3225
  %3722 = vmatpush.bf16.msra.mxu0 %v3223
  %3723 = vmatpush.bf16.msra.mxu0 %v3221
  %3724 = vmatmul.bf16.gmra.mxu0 %v3457
  %v3725 = vpop.f32.mrf.mxu0
  %v3726 = vadd.f32 %v3707, %v3725
  %v3727 = vpop.f32.mrf.mxu0
  %v3728 = vadd.f32 %v3709, %v3727
  %3729 = vmatmul.bf16.gmra.mxu0 %v3460
  %v3730 = vpop.f32.mrf.mxu0
  %v3731 = vadd.f32 %v3712, %v3730
  %v3732 = vpop.f32.mrf.mxu0
  %v3733 = vadd.f32 %v3714, %v3732
  %3734 = vdwg.mxu0
  %3735 = vmatpush.bf16.msra.mxu0 %v3028
  %3736 = vmatpush.bf16.msra.mxu0 %v3026
  %3737 = vmatpush.bf16.msra.mxu0 %v3024
  %3738 = vmatpush.bf16.msra.mxu0 %v3022
  %3739 = vmatpush.bf16.msra.mxu0 %v3020
  %3740 = vmatpush.bf16.msra.mxu0 %v3018
  %3741 = vmatpush.bf16.msra.mxu0 %v3016
  %3742 = vmatpush.bf16.msra.mxu0 %v3014
  %3743 = vmatmul.bf16.gmra.mxu0 %v2296
  %v3744 = vpop.f32.mrf.mxu0
  %v3745 = vadd.f32 %v2209, %v3744
  %v3746 = vpop.f32.mrf.mxu0
  %v3747 = vadd.f32 %v2209, %v3746
  %3748 = vmatmul.bf16.gmra.mxu0 %v2310
  %v3749 = vpop.f32.mrf.mxu0
  %v3750 = vadd.f32 %v2209, %v3749
  %v3751 = vpop.f32.mrf.mxu0
  %v3752 = vadd.f32 %v2209, %v3751
  %3753 = vdwg.mxu0
  %3754 = vmatpush.bf16.msra.mxu0 %v3044
  %3755 = vmatpush.bf16.msra.mxu0 %v3042
  %3756 = vmatpush.bf16.msra.mxu0 %v3040
  %3757 = vmatpush.bf16.msra.mxu0 %v3038
  %3758 = vmatpush.bf16.msra.mxu0 %v3036
  %3759 = vmatpush.bf16.msra.mxu0 %v3034
  %3760 = vmatpush.bf16.msra.mxu0 %v3032
  %3761 = vmatpush.bf16.msra.mxu0 %v3030
  %3762 = vmatmul.bf16.gmra.mxu0 %v2297
  %v3763 = vpop.f32.mrf.mxu0
  %v3764 = vadd.f32 %v3745, %v3763
  %v3765 = vpop.f32.mrf.mxu0
  %v3766 = vadd.f32 %v3747, %v3765
  %3767 = vmatmul.bf16.gmra.mxu0 %v2311
  %v3768 = vpop.f32.mrf.mxu0
  %v3769 = vadd.f32 %v3750, %v3768
  %v3770 = vpop.f32.mrf.mxu0
  %v3771 = vadd.f32 %v3752, %v3770
  %3772 = vdwg.mxu0
  %3773 = vmatpush.bf16.msra.mxu0 %v3060
  %3774 = vmatpush.bf16.msra.mxu0 %v3058
  %3775 = vmatpush.bf16.msra.mxu0 %v3056
  %3776 = vmatpush.bf16.msra.mxu0 %v3054
  %3777 = vmatpush.bf16.msra.mxu0 %v3052
  %3778 = vmatpush.bf16.msra.mxu0 %v3050
  %3779 = vmatpush.bf16.msra.mxu0 %v3048
  %3780 = vmatpush.bf16.msra.mxu0 %v3046
  %3781 = vmatmul.bf16.gmra.mxu0 %v2298
  %v3782 = vpop.f32.mrf.mxu0
  %v3783 = vadd.f32 %v3764, %v3782
  %v3784 = vpop.f32.mrf.mxu0
  %v3785 = vadd.f32 %v3766, %v3784
  %3786 = vmatmul.bf16.gmra.mxu0 %v2312
  %v3787 = vpop.f32.mrf.mxu0
  %v3788 = vadd.f32 %v3769, %v3787
  %v3789 = vpop.f32.mrf.mxu0
  %v3790 = vadd.f32 %v3771, %v3789
  %3791 = vdwg.mxu0
  %3792 = vmatpush.bf16.msra.mxu0 %v3076
  %3793 = vmatpush.bf16.msra.mxu0 %v3074
  %3794 = vmatpush.bf16.msra.mxu0 %v3072
  %3795 = vmatpush.bf16.msra.mxu0 %v3070
  %3796 = vmatpush.bf16.msra.mxu0 %v3068
  %3797 = vmatpush.bf16.msra.mxu0 %v3066
  %3798 = vmatpush.bf16.msra.mxu0 %v3064
  %3799 = vmatpush.bf16.msra.mxu0 %v3062
  %3800 = vmatmul.bf16.gmra.mxu0 %v2299
  %v3801 = vpop.f32.mrf.mxu0
  %v3802 = vadd.f32 %v3783, %v3801
  %v3803 = vpop.f32.mrf.mxu0
  %v3804 = vadd.f32 %v3785, %v3803
  %3805 = vmatmul.bf16.gmra.mxu0 %v2313
  %v3806 = vpop.f32.mrf.mxu0
  %v3807 = vadd.f32 %v3788, %v3806
  %v3808 = vpop.f32.mrf.mxu0
  %v3809 = vadd.f32 %v3790, %v3808
  %3810 = vdwg.mxu0
  %3811 = vmatpush.bf16.msra.mxu0 %v3092
  %3812 = vmatpush.bf16.msra.mxu0 %v3090
  %3813 = vmatpush.bf16.msra.mxu0 %v3088
  %3814 = vmatpush.bf16.msra.mxu0 %v3086
  %3815 = vmatpush.bf16.msra.mxu0 %v3084
  %3816 = vmatpush.bf16.msra.mxu0 %v3082
  %3817 = vmatpush.bf16.msra.mxu0 %v3080
  %3818 = vmatpush.bf16.msra.mxu0 %v3078
  %3819 = vmatmul.bf16.gmra.mxu0 %v2300
  %v3820 = vpop.f32.mrf.mxu0
  %v3821 = vadd.f32 %v3802, %v3820
  %v3822 = vpop.f32.mrf.mxu0
  %v3823 = vadd.f32 %v3804, %v3822
  %3824 = vmatmul.bf16.gmra.mxu0 %v2314
  %v3825 = vpop.f32.mrf.mxu0
  %v3826 = vadd.f32 %v3807, %v3825
  %v3827 = vpop.f32.mrf.mxu0
  %v3828 = vadd.f32 %v3809, %v3827
  %3829 = vdwg.mxu0
  %3830 = vmatpush.bf16.msra.mxu0 %v3108
  %3831 = vmatpush.bf16.msra.mxu0 %v3106
  %3832 = vmatpush.bf16.msra.mxu0 %v3104
  %3833 = vmatpush.bf16.msra.mxu0 %v3102
  %3834 = vmatpush.bf16.msra.mxu0 %v3100
  %3835 = vmatpush.bf16.msra.mxu0 %v3098
  %3836 = vmatpush.bf16.msra.mxu0 %v3096
  %3837 = vmatpush.bf16.msra.mxu0 %v3094
  %3838 = vmatmul.bf16.gmra.mxu0 %v2301
  %v3839 = vpop.f32.mrf.mxu0
  %v3840 = vadd.f32 %v3821, %v3839
  %v3841 = vpop.f32.mrf.mxu0
  %v3842 = vadd.f32 %v3823, %v3841
  %3843 = vmatmul.bf16.gmra.mxu0 %v2315
  %v3844 = vpop.f32.mrf.mxu0
  %v3845 = vadd.f32 %v3826, %v3844
  %v3846 = vpop.f32.mrf.mxu0
  %v3847 = vadd.f32 %v3828, %v3846
  %3848 = vdwg.mxu0
  %3849 = vmatpush.bf16.msra.mxu0 %v3124
  %3850 = vmatpush.bf16.msra.mxu0 %v3122
  %3851 = vmatpush.bf16.msra.mxu0 %v3120
  %3852 = vmatpush.bf16.msra.mxu0 %v3118
  %3853 = vmatpush.bf16.msra.mxu0 %v3116
  %3854 = vmatpush.bf16.msra.mxu0 %v3114
  %3855 = vmatpush.bf16.msra.mxu0 %v3112
  %3856 = vmatpush.bf16.msra.mxu0 %v3110
  %3857 = vmatmul.bf16.gmra.mxu0 %v2302
  %v3858 = vpop.f32.mrf.mxu0
  %v3859 = vadd.f32 %v3840, %v3858
  %v3860 = vpop.f32.mrf.mxu0
  %v3861 = vadd.f32 %v3842, %v3860
  %3862 = vmatmul.bf16.gmra.mxu0 %v2316
  %v3863 = vpop.f32.mrf.mxu0
  %v3864 = vadd.f32 %v3845, %v3863
  %v3865 = vpop.f32.mrf.mxu0
  %v3866 = vadd.f32 %v3847, %v3865
  %3867 = vdwg.mxu0
  %3868 = vmatpush.bf16.msra.mxu0 %v3140
  %3869 = vmatpush.bf16.msra.mxu0 %v3138
  %3870 = vmatpush.bf16.msra.mxu0 %v3136
  %3871 = vmatpush.bf16.msra.mxu0 %v3134
  %3872 = vmatpush.bf16.msra.mxu0 %v3132
  %3873 = vmatpush.bf16.msra.mxu0 %v3130
  %3874 = vmatpush.bf16.msra.mxu0 %v3128
  %3875 = vmatpush.bf16.msra.mxu0 %v3126
  %3876 = vmatmul.bf16.gmra.mxu0 %v2303
  %v3877 = vpop.f32.mrf.mxu0
  %v3878 = vadd.f32 %v3859, %v3877
  %v3879 = vpop.f32.mrf.mxu0
  %v3880 = vadd.f32 %v3861, %v3879
  %3881 = vmatmul.bf16.gmra.mxu0 %v2317
  %v3882 = vpop.f32.mrf.mxu0
  %v3883 = vadd.f32 %v3864, %v3882
  %v3884 = vpop.f32.mrf.mxu0
  %v3885 = vadd.f32 %v3866, %v3884
  %3886 = vdwg.mxu0
  %3887 = vmatpush.bf16.msra.mxu0 %v3156
  %3888 = vmatpush.bf16.msra.mxu0 %v3154
  %3889 = vmatpush.bf16.msra.mxu0 %v3152
  %3890 = vmatpush.bf16.msra.mxu0 %v3150
  %3891 = vmatpush.bf16.msra.mxu0 %v3148
  %3892 = vmatpush.bf16.msra.mxu0 %v3146
  %3893 = vmatpush.bf16.msra.mxu0 %v3144
  %3894 = vmatpush.bf16.msra.mxu0 %v3142
  %3895 = vmatmul.bf16.gmra.mxu0 %v2304
  %v3896 = vpop.f32.mrf.mxu0
  %v3897 = vadd.f32 %v3878, %v3896
  %v3898 = vpop.f32.mrf.mxu0
  %v3899 = vadd.f32 %v3880, %v3898
  %3900 = vmatmul.bf16.gmra.mxu0 %v2318
  %v3901 = vpop.f32.mrf.mxu0
  %v3902 = vadd.f32 %v3883, %v3901
  %v3903 = vpop.f32.mrf.mxu0
  %v3904 = vadd.f32 %v3885, %v3903
  %3905 = vdwg.mxu0
  %3906 = vmatpush.bf16.msra.mxu0 %v3172
  %3907 = vmatpush.bf16.msra.mxu0 %v3170
  %3908 = vmatpush.bf16.msra.mxu0 %v3168
  %3909 = vmatpush.bf16.msra.mxu0 %v3166
  %3910 = vmatpush.bf16.msra.mxu0 %v3164
  %3911 = vmatpush.bf16.msra.mxu0 %v3162
  %3912 = vmatpush.bf16.msra.mxu0 %v3160
  %3913 = vmatpush.bf16.msra.mxu0 %v3158
  %3914 = vmatmul.bf16.gmra.mxu0 %v2305
  %v3915 = vpop.f32.mrf.mxu0
  %v3916 = vadd.f32 %v3897, %v3915
  %v3917 = vpop.f32.mrf.mxu0
  %v3918 = vadd.f32 %v3899, %v3917
  %3919 = vmatmul.bf16.gmra.mxu0 %v2319
  %v3920 = vpop.f32.mrf.mxu0
  %v3921 = vadd.f32 %v3902, %v3920
  %v3922 = vpop.f32.mrf.mxu0
  %v3923 = vadd.f32 %v3904, %v3922
  %3924 = vdwg.mxu0
  %3925 = vmatpush.bf16.msra.mxu0 %v3188
  %3926 = vmatpush.bf16.msra.mxu0 %v3186
  %3927 = vmatpush.bf16.msra.mxu0 %v3184
  %3928 = vmatpush.bf16.msra.mxu0 %v3182
  %3929 = vmatpush.bf16.msra.mxu0 %v3180
  %3930 = vmatpush.bf16.msra.mxu0 %v3178
  %3931 = vmatpush.bf16.msra.mxu0 %v3176
  %3932 = vmatpush.bf16.msra.mxu0 %v3174
  %3933 = vmatmul.bf16.gmra.mxu0 %v2306
  %v3934 = vpop.f32.mrf.mxu0
  %v3935 = vadd.f32 %v3916, %v3934
  %v3936 = vpop.f32.mrf.mxu0
  %v3937 = vadd.f32 %v3918, %v3936
  %3938 = vmatmul.bf16.gmra.mxu0 %v2320
  %v3939 = vpop.f32.mrf.mxu0
  %v3940 = vadd.f32 %v3921, %v3939
  %v3941 = vpop.f32.mrf.mxu0
  %v3942 = vadd.f32 %v3923, %v3941
  %3943 = vdwg.mxu0
  %3944 = vmatpush.bf16.msra.mxu0 %v3204
  %3945 = vmatpush.bf16.msra.mxu0 %v3202
  %3946 = vmatpush.bf16.msra.mxu0 %v3200
  %3947 = vmatpush.bf16.msra.mxu0 %v3198
  %3948 = vmatpush.bf16.msra.mxu0 %v3196
  %3949 = vmatpush.bf16.msra.mxu0 %v3194
  %3950 = vmatpush.bf16.msra.mxu0 %v3192
  %3951 = vmatpush.bf16.msra.mxu0 %v3190
  %3952 = vmatmul.bf16.gmra.mxu0 %v2307
  %v3953 = vpop.f32.mrf.mxu0
  %v3954 = vadd.f32 %v3935, %v3953
  %v3955 = vpop.f32.mrf.mxu0
  %v3956 = vadd.f32 %v3937, %v3955
  %3957 = vmatmul.bf16.gmra.mxu0 %v2321
  %v3958 = vpop.f32.mrf.mxu0
  %v3959 = vadd.f32 %v3940, %v3958
  %v3960 = vpop.f32.mrf.mxu0
  %v3961 = vadd.f32 %v3942, %v3960
  %3962 = vdwg.mxu0
  %3963 = vmatpush.bf16.msra.mxu0 %v3220
  %3964 = vmatpush.bf16.msra.mxu0 %v3218
  %3965 = vmatpush.bf16.msra.mxu0 %v3216
  %3966 = vmatpush.bf16.msra.mxu0 %v3214
  %3967 = vmatpush.bf16.msra.mxu0 %v3212
  %3968 = vmatpush.bf16.msra.mxu0 %v3210
  %3969 = vmatpush.bf16.msra.mxu0 %v3208
  %3970 = vmatpush.bf16.msra.mxu0 %v3206
  %3971 = vmatmul.bf16.gmra.mxu0 %v2308
  %v3972 = vpop.f32.mrf.mxu0
  %v3973 = vadd.f32 %v3954, %v3972
  %v3974 = vpop.f32.mrf.mxu0
  %v3975 = vadd.f32 %v3956, %v3974
  %3976 = vmatmul.bf16.gmra.mxu0 %v2322
  %v3977 = vpop.f32.mrf.mxu0
  %v3978 = vadd.f32 %v3959, %v3977
  %v3979 = vpop.f32.mrf.mxu0
  %v3980 = vadd.f32 %v3961, %v3979
  %3981 = vdwg.mxu0
  %3982 = vmatpush.bf16.msra.mxu0 0
  %3983 = vmatpush.bf16.msra.mxu0 %v3467
  %3984 = vmatpush.bf16.msra.mxu0 %v3232
  %3985 = vmatpush.bf16.msra.mxu0 %v3230
  %3986 = vmatpush.bf16.msra.mxu0 %v3228
  %3987 = vmatpush.bf16.msra.mxu0 %v3226
  %3988 = vmatpush.bf16.msra.mxu0 %v3224
  %3989 = vmatpush.bf16.msra.mxu0 %v3222
  %3990 = vmatmul.bf16.gmra.mxu0 %v3457
  %v3991 = vpop.f32.mrf.mxu0
  %v3992 = vadd.f32 %v3973, %v3991
  %v3993 = vpop.f32.mrf.mxu0
  %v3994 = vadd.f32 %v3975, %v3993
  %3995 = vmatmul.bf16.gmra.mxu0 %v3460
  %v3996 = vpop.f32.mrf.mxu0
  %v3997 = vadd.f32 %v3978, %v3996
  %v3998 = vpop.f32.mrf.mxu0
  %v3999 = vadd.f32 %v3980, %v3998
  %4000 = vdwg.mxu0
  %v4001 = vmax.f32 %v3726, 0.0
  %v4002 = vmax.f32 %v3992, 0.0
  %v4003 = vmax.f32 %v3728, 0.0
  %v4004 = vmax.f32 %v3994, 0.0
  %v4005 = vmax.f32 %v3731, 0.0
  %v4006 = vmax.f32 %v3997, 0.0
  %v4007 = vmax.f32 %v3733, 0.0
  %v4008 = vmax.f32 %v3999, 0.0
  %v4009 = vpack.c.bf16 %v4003, %v4001
  %v4010 = vpack.c.bf16 %v4004, %v4002
  %v4011 = vpack.c.bf16 %v4007, %v4005
  %v4012 = vpack.c.bf16 %v4008, %v4006
  %v4013 = vld [vmem:[%s11] sm:$0xff]
  %v4014 = vld [vmem:[%s11 + $0x8] sm:$0xff]
  %v4015 = vld [vmem:[%s11 + $0x10] sm:$0xff]
  %v4016 = vld [vmem:[%s11 + $0x18] sm:$0xff]
  %v4017 = vld [vmem:[%s11 + $0x20] sm:$0xff]
  %v4018 = vld [vmem:[%s11 + $0x28] sm:$0xff]
  %v4019 = vld [vmem:[%s11 + $0x30] sm:$0xff]
  %v4020 = vld [vmem:[%s11 + $0x38] sm:$0xff]
  %v4021 = vld [vmem:[%s11 + $0x40] sm:$0xff]
  %v4022 = vld [vmem:[%s11 + $0x48] sm:$0xff]
  %v4023 = vld [vmem:[%s11 + $0x50] sm:$0xff]
  %v4024 = vld [vmem:[%s11 + $0x58] sm:$0xff]
  %v4025 = vld [vmem:[%s11 + $0x60] sm:$0xff]
  %v4026 = vld [vmem:[%s11 + $0x68] sm:$0xff]
  %v4027 = vld [vmem:[%s11 + $0x70] sm:$0xff]
  %v4028 = vld [vmem:[%s11 + $0x78] sm:$0xff]
  %v4029 = vld [vmem:[%s11 + $0x80] sm:$0xff]
  %v4030 = vld [vmem:[%s11 + $0x88] sm:$0xff]
  %v4031 = vld [vmem:[%s11 + $0x90] sm:$0xff]
  %v4032 = vld [vmem:[%s11 + $0x98] sm:$0xff]
  %v4033 = vld [vmem:[%s11 + $0xa0] sm:$0xff]
  %v4034 = vld [vmem:[%s11 + $0xa8] sm:$0xff]
  %v4035 = vld [vmem:[%s11 + $0xb0] sm:$0xff]
  %v4036 = vld [vmem:[%s11 + $0xb8] sm:$0xff]
  %v4037 = vld [vmem:[%s11 + $0xc0] sm:$0xff]
  %v4038 = vld [vmem:[%s11 + $0xc8] sm:$0xff]
  %v4039 = vld [vmem:[%s11 + $0xd0] sm:$0xff]
  %v4040 = vld [vmem:[%s11 + $0xd8] sm:$0xff]
  %v4041 = vld [vmem:[%s11 + $0xe0] sm:$0xff]
  %v4042 = vld [vmem:[%s11 + $0xe8] sm:$0xff]
  %v4043 = vld [vmem:[%s11 + $0xf0] sm:$0xff]
  %v4044 = vld [vmem:[%s11 + $0xf8] sm:$0xff]
  %v4045 = vld [vmem:[%s11 + $0x100] sm:$0xff]
  %v4046 = vld [vmem:[%s11 + $0x108] sm:$0xff]
  %v4047 = vld [vmem:[%s11 + $0x110] sm:$0xff]
  %v4048 = vld [vmem:[%s11 + $0x118] sm:$0xff]
  %v4049 = vld [vmem:[%s11 + $0x120] sm:$0xff]
  %v4050 = vld [vmem:[%s11 + $0x128] sm:$0xff]
  %v4051 = vld [vmem:[%s11 + $0x130] sm:$0xff]
  %v4052 = vld [vmem:[%s11 + $0x138] sm:$0xff]
  %v4053 = vld [vmem:[%s11 + $0x140] sm:$0xff]
  %v4054 = vld [vmem:[%s11 + $0x148] sm:$0xff]
  %v4055 = vld [vmem:[%s11 + $0x150] sm:$0xff]
  %v4056 = vld [vmem:[%s11 + $0x158] sm:$0xff]
  %v4057 = vld [vmem:[%s11 + $0x160] sm:$0xff]
  %v4058 = vld [vmem:[%s11 + $0x168] sm:$0xff]
  %v4059 = vld [vmem:[%s11 + $0x170] sm:$0xff]
  %v4060 = vld [vmem:[%s11 + $0x178] sm:$0xff]
  %v4061 = vld [vmem:[%s11 + $0x180] sm:$0xff]
  %v4062 = vld [vmem:[%s11 + $0x188] sm:$0xff]
  %v4063 = vld [vmem:[%s11 + $0x190] sm:$0xff]
  %v4064 = vld [vmem:[%s11 + $0x198] sm:$0xff]
  %v4065 = vld [vmem:[%s11 + $0x1a0] sm:$0xff]
  %v4066 = vld [vmem:[%s11 + $0x1a8] sm:$0xff]
  %v4067 = vld [vmem:[%s11 + $0x1b0] sm:$0xff]
  %v4068 = vld [vmem:[%s11 + $0x1b8] sm:$0xff]
  %v4069 = vld [vmem:[%s11 + $0x1c0] sm:$0xff]
  %v4070 = vld [vmem:[%s11 + $0x1c8] sm:$0xff]
  %v4071 = vld [vmem:[%s11 + $0x1d0] sm:$0xff]
  %v4072 = vld [vmem:[%s11 + $0x1d8] sm:$0xff]
  %v4073 = vld [vmem:[%s11 + $0x1e0] sm:$0xff]
  %v4074 = vld [vmem:[%s11 + $0x1e8] sm:$0xff]
  %v4075 = vld [vmem:[%s11 + $0x1f0] sm:$0xff]
  %v4076 = vld [vmem:[%s11 + $0x1f8] sm:$0xff]
  %v4141 = vunpack.c.l.b16 %v4013
  %v4142 = vunpack.c.h.b16 %v4013
  %v4143 = vunpack.c.l.b16 %v4014
  %v4144 = vunpack.c.h.b16 %v4014
  %v4145 = vunpack.c.l.b16 %v4015
  %v4146 = vunpack.c.h.b16 %v4015
  %v4147 = vunpack.c.l.b16 %v4016
  %v4148 = vunpack.c.h.b16 %v4016
  %v4149 = vunpack.c.l.b16 %v4017
  %v4150 = vunpack.c.h.b16 %v4017
  %v4151 = vunpack.c.l.b16 %v4018
  %v4152 = vunpack.c.h.b16 %v4018
  %v4153 = vunpack.c.l.b16 %v4019
  %v4154 = vunpack.c.h.b16 %v4019
  %v4155 = vunpack.c.l.b16 %v4020
  %v4156 = vunpack.c.h.b16 %v4020
  %v4157 = vunpack.c.l.b16 %v4021
  %v4158 = vunpack.c.h.b16 %v4021
  %v4159 = vunpack.c.l.b16 %v4022
  %v4160 = vunpack.c.h.b16 %v4022
  %v4161 = vunpack.c.l.b16 %v4023
  %v4162 = vunpack.c.h.b16 %v4023
  %v4163 = vunpack.c.l.b16 %v4024
  %v4164 = vunpack.c.h.b16 %v4024
  %v4165 = vunpack.c.l.b16 %v4025
  %v4166 = vunpack.c.h.b16 %v4025
  %v4167 = vunpack.c.l.b16 %v4026
  %v4168 = vunpack.c.h.b16 %v4026
  %v4169 = vunpack.c.l.b16 %v4027
  %v4170 = vunpack.c.h.b16 %v4027
  %v4171 = vunpack.c.l.b16 %v4028
  %v4172 = vunpack.c.h.b16 %v4028
  %v4173 = vunpack.c.l.b16 %v4029
  %v4174 = vunpack.c.h.b16 %v4029
  %v4175 = vunpack.c.l.b16 %v4030
  %v4176 = vunpack.c.h.b16 %v4030
  %v4177 = vunpack.c.l.b16 %v4031
  %v4178 = vunpack.c.h.b16 %v4031
  %v4179 = vunpack.c.l.b16 %v4032
  %v4180 = vunpack.c.h.b16 %v4032
  %v4181 = vunpack.c.l.b16 %v4033
  %v4182 = vunpack.c.h.b16 %v4033
  %v4183 = vunpack.c.l.b16 %v4034
  %v4184 = vunpack.c.h.b16 %v4034
  %v4185 = vunpack.c.l.b16 %v4035
  %v4186 = vunpack.c.h.b16 %v4035
  %v4187 = vunpack.c.l.b16 %v4036
  %v4188 = vunpack.c.h.b16 %v4036
  %v4189 = vunpack.c.l.b16 %v4037
  %v4190 = vunpack.c.h.b16 %v4037
  %v4191 = vunpack.c.l.b16 %v4038
  %v4192 = vunpack.c.h.b16 %v4038
  %v4193 = vunpack.c.l.b16 %v4039
  %v4194 = vunpack.c.h.b16 %v4039
  %v4195 = vunpack.c.l.b16 %v4040
  %v4196 = vunpack.c.h.b16 %v4040
  %v4197 = vunpack.c.l.b16 %v4041
  %v4198 = vunpack.c.h.b16 %v4041
  %v4199 = vunpack.c.l.b16 %v4042
  %v4200 = vunpack.c.h.b16 %v4042
  %v4201 = vunpack.c.l.b16 %v4043
  %v4202 = vunpack.c.h.b16 %v4043
  %v4203 = vunpack.c.l.b16 %v4044
  %v4204 = vunpack.c.h.b16 %v4044
  %v4205 = vunpack.c.l.b16 %v4045
  %v4206 = vunpack.c.h.b16 %v4045
  %v4207 = vunpack.c.l.b16 %v4046
  %v4208 = vunpack.c.h.b16 %v4046
  %v4209 = vunpack.c.l.b16 %v4047
  %v4210 = vunpack.c.h.b16 %v4047
  %v4211 = vunpack.c.l.b16 %v4048
  %v4212 = vunpack.c.h.b16 %v4048
  %v4213 = vunpack.c.l.b16 %v4049
  %v4214 = vunpack.c.h.b16 %v4049
  %v4215 = vunpack.c.l.b16 %v4050
  %v4216 = vunpack.c.h.b16 %v4050
  %v4217 = vunpack.c.l.b16 %v4051
  %v4218 = vunpack.c.h.b16 %v4051
  %v4219 = vunpack.c.l.b16 %v4052
  %v4220 = vunpack.c.h.b16 %v4052
  %v4221 = vunpack.c.l.b16 %v4053
  %v4222 = vunpack.c.h.b16 %v4053
  %v4223 = vunpack.c.l.b16 %v4054
  %v4224 = vunpack.c.h.b16 %v4054
  %v4225 = vunpack.c.l.b16 %v4055
  %v4226 = vunpack.c.h.b16 %v4055
  %v4227 = vunpack.c.l.b16 %v4056
  %v4228 = vunpack.c.h.b16 %v4056
  %v4229 = vunpack.c.l.b16 %v4057
  %v4230 = vunpack.c.h.b16 %v4057
  %v4231 = vunpack.c.l.b16 %v4058
  %v4232 = vunpack.c.h.b16 %v4058
  %v4233 = vunpack.c.l.b16 %v4059
  %v4234 = vunpack.c.h.b16 %v4059
  %v4235 = vunpack.c.l.b16 %v4060
  %v4236 = vunpack.c.h.b16 %v4060
  %v4237 = vunpack.c.l.b16 %v4061
  %v4238 = vunpack.c.h.b16 %v4061
  %v4239 = vunpack.c.l.b16 %v4062
  %v4240 = vunpack.c.h.b16 %v4062
  %v4241 = vunpack.c.l.b16 %v4063
  %v4242 = vunpack.c.h.b16 %v4063
  %v4243 = vunpack.c.l.b16 %v4064
  %v4244 = vunpack.c.h.b16 %v4064
  %v4245 = vunpack.c.l.b16 %v4065
  %v4246 = vunpack.c.h.b16 %v4065
  %v4247 = vunpack.c.l.b16 %v4066
  %v4248 = vunpack.c.h.b16 %v4066
  %v4249 = vunpack.c.l.b16 %v4067
  %v4250 = vunpack.c.h.b16 %v4067
  %v4251 = vunpack.c.l.b16 %v4068
  %v4252 = vunpack.c.h.b16 %v4068
  %v4253 = vunpack.c.l.b16 %v4069
  %v4254 = vunpack.c.h.b16 %v4069
  %v4255 = vunpack.c.l.b16 %v4070
  %v4256 = vunpack.c.h.b16 %v4070
  %v4257 = vunpack.c.l.b16 %v4071
  %v4258 = vunpack.c.h.b16 %v4071
  %v4259 = vunpack.c.l.b16 %v4072
  %v4260 = vunpack.c.h.b16 %v4072
  %v4261 = vunpack.c.l.b16 %v4073
  %v4262 = vunpack.c.h.b16 %v4073
  %v4263 = vunpack.c.l.b16 %v4074
  %v4264 = vunpack.c.h.b16 %v4074
  %v4265 = vunpack.c.l.b16 %v4075
  %v4266 = vunpack.c.h.b16 %v4075
  %v4267 = vunpack.c.l.b16 %v4076
  %v4268 = vunpack.c.h.b16 %v4076
  %v4269 = vpack.c.b16 %v4145, %v4141
  %v4270 = vpack.c.b16 %v4146, %v4142
  %v4271 = vpack.c.b16 %v4147, %v4143
  %v4272 = vpack.c.b16 %v4148, %v4144
  %v4273 = vpack.c.b16 %v4153, %v4149
  %v4274 = vpack.c.b16 %v4154, %v4150
  %v4275 = vpack.c.b16 %v4155, %v4151
  %v4276 = vpack.c.b16 %v4156, %v4152
  %v4277 = vpack.c.b16 %v4161, %v4157
  %v4278 = vpack.c.b16 %v4162, %v4158
  %v4279 = vpack.c.b16 %v4163, %v4159
  %v4280 = vpack.c.b16 %v4164, %v4160
  %v4281 = vpack.c.b16 %v4169, %v4165
  %v4282 = vpack.c.b16 %v4170, %v4166
  %v4283 = vpack.c.b16 %v4171, %v4167
  %v4284 = vpack.c.b16 %v4172, %v4168
  %v4285 = vpack.c.b16 %v4177, %v4173
  %v4286 = vpack.c.b16 %v4178, %v4174
  %v4287 = vpack.c.b16 %v4179, %v4175
  %v4288 = vpack.c.b16 %v4180, %v4176
  %v4289 = vpack.c.b16 %v4185, %v4181
  %v4290 = vpack.c.b16 %v4186, %v4182
  %v4291 = vpack.c.b16 %v4187, %v4183
  %v4292 = vpack.c.b16 %v4188, %v4184
  %v4293 = vpack.c.b16 %v4193, %v4189
  %v4294 = vpack.c.b16 %v4194, %v4190
  %v4295 = vpack.c.b16 %v4195, %v4191
  %v4296 = vpack.c.b16 %v4196, %v4192
  %v4297 = vpack.c.b16 %v4201, %v4197
  %v4298 = vpack.c.b16 %v4202, %v4198
  %v4299 = vpack.c.b16 %v4203, %v4199
  %v4300 = vpack.c.b16 %v4204, %v4200
  %v4301 = vpack.c.b16 %v4209, %v4205
  %v4302 = vpack.c.b16 %v4210, %v4206
  %v4303 = vpack.c.b16 %v4211, %v4207
  %v4304 = vpack.c.b16 %v4212, %v4208
  %v4305 = vpack.c.b16 %v4217, %v4213
  %v4306 = vpack.c.b16 %v4218, %v4214
  %v4307 = vpack.c.b16 %v4219, %v4215
  %v4308 = vpack.c.b16 %v4220, %v4216
  %v4309 = vpack.c.b16 %v4225, %v4221
  %v4310 = vpack.c.b16 %v4226, %v4222
  %v4311 = vpack.c.b16 %v4227, %v4223
  %v4312 = vpack.c.b16 %v4228, %v4224
  %v4313 = vpack.c.b16 %v4233, %v4229
  %v4314 = vpack.c.b16 %v4234, %v4230
  %v4315 = vpack.c.b16 %v4235, %v4231
  %v4316 = vpack.c.b16 %v4236, %v4232
  %v4317 = vpack.c.b16 %v4241, %v4237
  %v4318 = vpack.c.b16 %v4242, %v4238
  %v4319 = vpack.c.b16 %v4243, %v4239
  %v4320 = vpack.c.b16 %v4244, %v4240
  %v4321 = vpack.c.b16 %v4249, %v4245
  %v4322 = vpack.c.b16 %v4250, %v4246
  %v4323 = vpack.c.b16 %v4251, %v4247
  %v4324 = vpack.c.b16 %v4252, %v4248
  %v4325 = vpack.c.b16 %v4257, %v4253
  %v4326 = vpack.c.b16 %v4258, %v4254
  %v4327 = vpack.c.b16 %v4259, %v4255
  %v4328 = vpack.c.b16 %v4260, %v4256
  %v4329 = vpack.c.b16 %v4265, %v4261
  %v4330 = vpack.c.b16 %v4266, %v4262
  %v4331 = vpack.c.b16 %v4267, %v4263
  %v4332 = vpack.c.b16 %v4268, %v4264
  %4397 = vmatpush.bf16.msra.mxu0 %v4297
  %4398 = vmatpush.bf16.msra.mxu0 %v4293
  %4399 = vmatpush.bf16.msra.mxu0 %v4289
  %4400 = vmatpush.bf16.msra.mxu0 %v4285
  %4401 = vmatpush.bf16.msra.mxu0 %v4281
  %4402 = vmatpush.bf16.msra.mxu0 %v4277
  %4403 = vmatpush.bf16.msra.mxu0 %v4273
  %4404 = vmatpush.bf16.msra.mxu0 %v4269
  %4405 = vmatmul.bf16.gmra.mxu0 %v4009
  %v4406 = vpop.f32.mrf.mxu0
  %v4407 = vadd.f32 0.0, %v4406
  %v4408 = vpop.f32.mrf.mxu0
  %v4409 = vadd.f32 0.0, %v4408
  %4410 = vmatmul.bf16.gmra.mxu0 %v4011
  %v4411 = vpop.f32.mrf.mxu0
  %v4412 = vadd.f32 0.0, %v4411
  %v4413 = vpop.f32.mrf.mxu0
  %v4414 = vadd.f32 0.0, %v4413
  %4415 = vdwg.mxu0
  %4416 = vmatpush.bf16.msra.mxu0 %v4329
  %4417 = vmatpush.bf16.msra.mxu0 %v4325
  %4418 = vmatpush.bf16.msra.mxu0 %v4321
  %4419 = vmatpush.bf16.msra.mxu0 %v4317
  %4420 = vmatpush.bf16.msra.mxu0 %v4313
  %4421 = vmatpush.bf16.msra.mxu0 %v4309
  %4422 = vmatpush.bf16.msra.mxu0 %v4305
  %4423 = vmatpush.bf16.msra.mxu0 %v4301
  %4424 = vmatmul.bf16.gmra.mxu0 %v4010
  %v4425 = vpop.f32.mrf.mxu0
  %v4426 = vadd.f32 %v4407, %v4425
  %v4427 = vpop.f32.mrf.mxu0
  %v4428 = vadd.f32 %v4409, %v4427
  %4429 = vmatmul.bf16.gmra.mxu0 %v4012
  %v4430 = vpop.f32.mrf.mxu0
  %v4431 = vadd.f32 %v4412, %v4430
  %v4432 = vpop.f32.mrf.mxu0
  %v4433 = vadd.f32 %v4414, %v4432
  %4434 = vdwg.mxu0
  %4435 = vmatpush.bf16.msra.mxu0 %v4298
  %4436 = vmatpush.bf16.msra.mxu0 %v4294
  %4437 = vmatpush.bf16.msra.mxu0 %v4290
  %4438 = vmatpush.bf16.msra.mxu0 %v4286
  %4439 = vmatpush.bf16.msra.mxu0 %v4282
  %4440 = vmatpush.bf16.msra.mxu0 %v4278
  %4441 = vmatpush.bf16.msra.mxu0 %v4274
  %4442 = vmatpush.bf16.msra.mxu0 %v4270
  %4443 = vmatmul.bf16.gmra.mxu0 %v4009
  %v4444 = vpop.f32.mrf.mxu0
  %v4445 = vadd.f32 0.0, %v4444
  %v4446 = vpop.f32.mrf.mxu0
  %v4447 = vadd.f32 0.0, %v4446
  %4448 = vmatmul.bf16.gmra.mxu0 %v4011
  %v4449 = vpop.f32.mrf.mxu0
  %v4450 = vadd.f32 0.0, %v4449
  %v4451 = vpop.f32.mrf.mxu0
  %v4452 = vadd.f32 0.0, %v4451
  %4453 = vdwg.mxu0
  %4454 = vmatpush.bf16.msra.mxu0 %v4330
  %4455 = vmatpush.bf16.msra.mxu0 %v4326
  %4456 = vmatpush.bf16.msra.mxu0 %v4322
  %4457 = vmatpush.bf16.msra.mxu0 %v4318
  %4458 = vmatpush.bf16.msra.mxu0 %v4314
  %4459 = vmatpush.bf16.msra.mxu0 %v4310
  %4460 = vmatpush.bf16.msra.mxu0 %v4306
  %4461 = vmatpush.bf16.msra.mxu0 %v4302
  %4462 = vmatmul.bf16.gmra.mxu0 %v4010
  %v4463 = vpop.f32.mrf.mxu0
  %v4464 = vadd.f32 %v4445, %v4463
  %v4465 = vpop.f32.mrf.mxu0
  %v4466 = vadd.f32 %v4447, %v4465
  %4467 = vmatmul.bf16.gmra.mxu0 %v4012
  %v4468 = vpop.f32.mrf.mxu0
  %v4469 = vadd.f32 %v4450, %v4468
  %v4470 = vpop.f32.mrf.mxu0
  %v4471 = vadd.f32 %v4452, %v4470
  %4472 = vdwg.mxu0
  %4473 = vmatpush.bf16.msra.mxu0 %v4299
  %4474 = vmatpush.bf16.msra.mxu0 %v4295
  %4475 = vmatpush.bf16.msra.mxu0 %v4291
  %4476 = vmatpush.bf16.msra.mxu0 %v4287
  %4477 = vmatpush.bf16.msra.mxu0 %v4283
  %4478 = vmatpush.bf16.msra.mxu0 %v4279
  %4479 = vmatpush.bf16.msra.mxu0 %v4275
  %4480 = vmatpush.bf16.msra.mxu0 %v4271
  %4481 = vmatmul.bf16.gmra.mxu0 %v4009
  %v4482 = vpop.f32.mrf.mxu0
  %v4483 = vadd.f32 0.0, %v4482
  %v4484 = vpop.f32.mrf.mxu0
  %v4485 = vadd.f32 0.0, %v4484
  %4486 = vmatmul.bf16.gmra.mxu0 %v4011
  %v4487 = vpop.f32.mrf.mxu0
  %v4488 = vadd.f32 0.0, %v4487
  %v4489 = vpop.f32.mrf.mxu0
  %v4490 = vadd.f32 0.0, %v4489
  %4491 = vdwg.mxu0
  %4492 = vmatpush.bf16.msra.mxu0 %v4331
  %4493 = vmatpush.bf16.msra.mxu0 %v4327
  %4494 = vmatpush.bf16.msra.mxu0 %v4323
  %4495 = vmatpush.bf16.msra.mxu0 %v4319
  %4496 = vmatpush.bf16.msra.mxu0 %v4315
  %4497 = vmatpush.bf16.msra.mxu0 %v4311
  %4498 = vmatpush.bf16.msra.mxu0 %v4307
  %4499 = vmatpush.bf16.msra.mxu0 %v4303
  %4500 = vmatmul.bf16.gmra.mxu0 %v4010
  %v4501 = vpop.f32.mrf.mxu0
  %v4502 = vadd.f32 %v4483, %v4501
  %v4503 = vpop.f32.mrf.mxu0
  %v4504 = vadd.f32 %v4485, %v4503
  %4505 = vmatmul.bf16.gmra.mxu0 %v4012
  %v4506 = vpop.f32.mrf.mxu0
  %v4507 = vadd.f32 %v4488, %v4506
  %v4508 = vpop.f32.mrf.mxu0
  %v4509 = vadd.f32 %v4490, %v4508
  %4510 = vdwg.mxu0
  %4511 = vmatpush.bf16.msra.mxu0 %v4300
  %4512 = vmatpush.bf16.msra.mxu0 %v4296
  %4513 = vmatpush.bf16.msra.mxu0 %v4292
  %4514 = vmatpush.bf16.msra.mxu0 %v4288
  %4515 = vmatpush.bf16.msra.mxu0 %v4284
  %4516 = vmatpush.bf16.msra.mxu0 %v4280
  %4517 = vmatpush.bf16.msra.mxu0 %v4276
  %4518 = vmatpush.bf16.msra.mxu0 %v4272
  %4519 = vmatmul.bf16.gmra.mxu0 %v4009
  %v4520 = vpop.f32.mrf.mxu0
  %v4521 = vadd.f32 0.0, %v4520
  %v4522 = vpop.f32.mrf.mxu0
  %v4523 = vadd.f32 0.0, %v4522
  %4524 = vmatmul.bf16.gmra.mxu0 %v4011
  %v4525 = vpop.f32.mrf.mxu0
  %v4526 = vadd.f32 0.0, %v4525
  %v4527 = vpop.f32.mrf.mxu0
  %v4528 = vadd.f32 0.0, %v4527
  %4529 = vdwg.mxu0
  %4530 = vmatpush.bf16.msra.mxu0 %v4332
  %4531 = vmatpush.bf16.msra.mxu0 %v4328
  %4532 = vmatpush.bf16.msra.mxu0 %v4324
  %4533 = vmatpush.bf16.msra.mxu0 %v4320
  %4534 = vmatpush.bf16.msra.mxu0 %v4316
  %4535 = vmatpush.bf16.msra.mxu0 %v4312
  %4536 = vmatpush.bf16.msra.mxu0 %v4308
  %4537 = vmatpush.bf16.msra.mxu0 %v4304
  %4538 = vmatmul.bf16.gmra.mxu0 %v4010
  %v4539 = vpop.f32.mrf.mxu0
  %v4540 = vadd.f32 %v4521, %v4539
  %v4541 = vpop.f32.mrf.mxu0
  %v4542 = vadd.f32 %v4523, %v4541
  %4543 = vmatmul.bf16.gmra.mxu0 %v4012
  %v4544 = vpop.f32.mrf.mxu0
  %v4545 = vadd.f32 %v4526, %v4544
  %v4546 = vpop.f32.mrf.mxu0
  %v4547 = vadd.f32 %v4528, %v4546
  %4548 = vdwg.mxu0
  %4549 = vst [vmem:[%s14] sm:$0xff] %v4426
  %4550 = vst [vmem:[%s14 + $0x8] sm:$0xff] %v4464
  %4551 = vst [vmem:[%s14 + $0x10] sm:$0xff] %v4502
  %4552 = vst [vmem:[%s14 + $0x18] sm:$0xff] %v4540
  %4553 = vst [vmem:[%s14 + $0x20] sm:$0xff] %v4428
  %4554 = vst [vmem:[%s14 + $0x28] sm:$0xff] %v4466
  %4555 = vst [vmem:[%s14 + $0x30] sm:$0xff] %v4504
  %4556 = vst [vmem:[%s14 + $0x38] sm:$0xff] %v4542
  %4557 = vst [vmem:[%s14 + $0x40] sm:$0xff] %v4431
  %4558 = vst [vmem:[%s14 + $0x48] sm:$0xff] %v4469
  %4559 = vst [vmem:[%s14 + $0x50] sm:$0xff] %v4507
  %4560 = vst [vmem:[%s14 + $0x58] sm:$0xff] %v4545
  %4561 = vst [vmem:[%s14 + $0x60] sm:$0xff] %v4433
  %4562 = vst [vmem:[%s14 + $0x68] sm:$0xff] %v4471
  %4563 = vst [vmem:[%s14 + $0x70] sm:$0xff] %v4509
  %4564 = vst [vmem:[%s14 + $0x78] sm:$0xff] %v4547
  // Predicated region
  $region50: #{gpm_forward.1} parent=0 // pred_check
    _
  $region51: #{gpm_forward.1} parent=0 // pred_check_branch
    %4566 = sbr.rel (0) target = $region53
  $region52: #{gpm_forward.1} parent=0 // pred_region
    _
  $region53: #{gpm_forward.1} parent=0 // pred_fallthru
    _
  // Predicated region
  $region54: #{gpm_forward.1} parent=0 // pred_check
    _
  $region55: #{gpm_forward.1} parent=0 // pred_check_branch
    %4568 = sbr.rel (0) target = $region57
  $region56: #{gpm_forward.1} parent=0 // pred_region
    _
  $region57: #{gpm_forward.1} parent=0 // pred_fallthru
    _
  // Predicated region
  $region58: #{gpm_forward.1} parent=0 // pred_check
    _
  $region59: #{gpm_forward.1} parent=0 // pred_check_branch
    %4570 = sbr.rel (0) target = $region61
  $region60: #{gpm_forward.1} parent=0 // pred_region
    _
  $region61: #{gpm_forward.1} parent=0 // pred_fallthru
    _
  // Predicated region
  $region62: #{gpm_forward.1} parent=0 // pred_check
    _
  $region63: #{gpm_forward.1} parent=0 // pred_check_branch
    %4572 = sbr.rel (0) target = $region65
  $region64: #{gpm_forward.1} parent=0 // pred_region
    _
  $region65: #{gpm_forward.1} parent=0 // pred_fallthru
    _
  // Predicated region
  $region66: #{gpm_forward.1} parent=0 // pred_check
    _
  $region67: #{gpm_forward.1} parent=0 // pred_check_branch
    %4574 = sbr.rel (0) target = $region69
  $region68: #{gpm_forward.1} parent=0 // pred_region
    _
  $region69: #{gpm_forward.1} parent=0 // pred_fallthru
    _
  // Predicated region
  $region70: #{gpm_forward.1} parent=0 // pred_check
    _
  $region71: #{gpm_forward.1} parent=0 // pred_check_branch
    %4576 = sbr.rel (0) target = $region73
  $region72: #{gpm_forward.1} parent=0 // pred_region
    _
  $region73: #{gpm_forward.1} parent=0 // pred_fallthru
    _

</llo_original>
